<compile_context>
chip_gen: v7x
topology: tpu7x:2x2x1
jax: 0.10.0
libtpu: 0.0.40
codegen_flags: <defaults>
</compile_context>

<pallas_src>
import jax
import jax.numpy as jnp
import numpy as np
from jax import lax
from jax.experimental import pallas as pl
from jax.experimental.pallas import tpu as pltpu


def conv_bn_silu_kernel(x_ref, w_ref, b_ref, o_ref, acc_ref):
    """One (batch, row-strip) grid step of SiLU(BN(Conv_kxk(x))), BN pre-folded into w/b.

    x_ref  : (Hp, Wp, C1)     bf16 zero-padded NHWC image (full image of this batch elem)
    w_ref  : (KH, KW, C1, C2p) bf16 BN-folded conv weights (C2 zero-padded to 128 lanes)
    b_ref  : (1, C2p)         f32 BN-folded bias
    o_ref  : (TILE_M, C2p)    f32 output row-strip (flattened spatial, lane-dense)
    acc_ref: (TILE_M, C2p)    f32 VMEM accumulator scratch
    """
    TILE_M, C2p = o_ref.shape
    KH, KW, C1, _ = w_ref.shape
    Hp, Wp, _ = x_ref.shape
    pad = (KH - 1) // 2
    W = Wp - 2 * pad
    TILE_H = TILE_M // W

    row0 = pl.program_id(1) * TILE_H
    if TILE_H % 8 == 0:
        row0 = pl.multiple_of(row0, 8)

    # Initialize the accumulator with the folded bias (single VMEM pass, no epilogue add).
    acc_ref[...] = jnp.broadcast_to(b_ref[...], (TILE_M, C2p))

    # K*K shifted matmuls on the MXU; slices taken directly from the ref, f32 accumulation
    # in VMEM scratch (bounds vreg live ranges).
    for dy in range(KH):
        for dx in range(KW):
            xs = x_ref[pl.ds(row0 + dy, TILE_H), pl.ds(dx, W), :]       # (TILE_H, W, C1) bf16
            acc_ref[...] += jnp.dot(xs.reshape(TILE_M, C1), w_ref[dy, dx],
                                    preferred_element_type=jnp.float32)

    # SiLU epilogue in f32, lane-dense (C2p multiple of 128) store.
    y = acc_ref[...]
    o_ref[...] = (y * jax.nn.sigmoid(y)).astype(o_ref.dtype)


def _pick_tile_h(H, W, target_m=128):
    """Largest TILE_H dividing H with TILE_H*W sublane-aligned and TILE_H*W <= target_m."""
    cap = max(1, target_m // max(W, 1))
    best = None
    for th in range(1, H + 1):
        if H % th == 0 and (th * W) % 8 == 0 and th <= cap:
            best = th
    return best if best is not None else H


def conv_bn_silu_forward(x_nchw, w_oihw, gamma, beta, mean, var, eps=1e-5):
    """Conv(k odd, s=1, g=1, d=1, bias=False) + BatchNorm2d(eval) + SiLU. NCHW in/out."""
    # TODO(synk): stride>1, groups>1 and dilation>1 Conv variants are not implemented here.
    N, C1, H, W = x_nchw.shape
    C2, _, KH, KW = w_oihw.shape
    pad = (KH - 1) // 2
    Hp, Wp = H + 2 * pad, W + 2 * pad
    C2p = ((C2 + 127) // 128) * 128          # lane-dense output channel count

    # --- fold BN (inference, running stats) into conv weight + bias ---
    scale = gamma / jnp.sqrt(var + eps)                       # (C2,)
    w_fold = w_oihw * scale[:, None, None, None]              # (C2, C1, KH, KW)
    b_fold = beta - mean * scale                              # (C2,)

    # OIHW -> (KH, KW, C1, C2p), bf16 operands for the MXU; bias stays f32.
    w = jnp.transpose(w_fold, (2, 3, 1, 0))
    w = jnp.pad(w, ((0, 0), (0, 0), (0, 0), (0, C2p - C2))).astype(jnp.bfloat16)
    b = jnp.pad(b_fold, (0, C2p - C2)).reshape(1, C2p).astype(jnp.float32)

    # NCHW -> NHWC, spatial zero-pad halo, bf16 (f32 accumulation happens in-kernel).
    x = jnp.transpose(x_nchw, (0, 2, 3, 1)).astype(jnp.bfloat16)
    xpad = jnp.pad(x, ((0, 0), (pad, pad), (pad, pad), (0, 0)))

    TILE_H = _pick_tile_h(H, W)
    TILE_M = TILE_H * W
    S = H // TILE_H

    out_flat = pl.pallas_call(
        conv_bn_silu_kernel,
        out_shape=jax.ShapeDtypeStruct((N, H * W, C2p), jnp.float32),
        grid_spec=pltpu.PrefetchScalarGridSpec(
            num_scalar_prefetch=0,
            grid=(N, S),
            in_specs=[
                # full padded image for batch n (re-used across row-strips, tiny here)
                pl.BlockSpec((None, Hp, Wp, C1), lambda n, s: (n, 0, 0, 0)),
                pl.BlockSpec((KH, KW, C1, C2p), lambda n, s: (0, 0, 0, 0)),
                pl.BlockSpec((1, C2p), lambda n, s: (0, 0)),
            ],
            out_specs=pl.BlockSpec((None, TILE_M, C2p), lambda n, s: (n, s, 0)),
            scratch_shapes=[pltpu.VMEM((TILE_M, C2p), jnp.float32)],
        ),
        compiler_params=pltpu.CompilerParams(
            dimension_semantics=("parallel", "parallel")),
    )(xpad, w, b)

    out = out_flat[..., :C2].reshape(N, H, W, C2)
    return jnp.transpose(out, (0, 3, 1, 2))


def _reference(x_nchw, w_oihw, gamma, beta, mean, var, eps=1e-5):
    """Pure-JAX f32 reference matching PyTorch eval-mode Conv->BN->SiLU semantics."""
    x = jnp.transpose(x_nchw, (0, 2, 3, 1)).astype(jnp.float32)
    k = jnp.transpose(w_oihw, (2, 3, 1, 0)).astype(jnp.float32)   # HWIO
    p = (w_oihw.shape[2] - 1) // 2
    dn = ("NHWC", "HWIO", "NHWC")
    y = lax.conv_general_dilated(x, k, (1, 1), ((p, p), (p, p)), dimension_numbers=dn)
    y = (y - mean) / jnp.sqrt(var + eps) * gamma + beta
    y = y * jax.nn.sigmoid(y)
    return jnp.transpose(y, (0, 3, 1, 2))


if __name__ == "__main__":
    N, C1, C2, H, W, K = 2, 4, 8, 16, 16, 3

    key = jax.random.PRNGKey(0)
    ks = jax.random.split(key, 6)
    x = jax.random.normal(ks[0], (N, C1, H, W), jnp.float32)
    w = jax.random.normal(ks[1], (C2, C1, K, K), jnp.float32) * 0.1     # conv.weight
    gamma = 1.0 + 0.1 * jax.random.normal(ks[2], (C2,), jnp.float32)    # bn.weight
    beta = 0.1 * jax.random.normal(ks[3], (C2,), jnp.float32)           # bn.bias
    mean = 0.05 * jax.random.normal(ks[4], (C2,), jnp.float32)          # bn.running_mean
    var = 0.5 + jnp.abs(jax.random.normal(ks[5], (C2,), jnp.float32)) * 0.5  # bn.running_var

    out = jax.block_until_ready(conv_bn_silu_forward(x, w, gamma, beta, mean, var))
    ref = jax.block_until_ready(_reference(x, w, gamma, beta, mean, var))

    # bf16 matmul operands with f32 accumulation -> compare at bf16-appropriate tolerance.
    np.testing.assert_allclose(np.asarray(out), np.asarray(ref), rtol=3e-2, atol=3e-2)

    print("KERNEL_OK")
</pallas_src>

<mosaic_0001>
module attributes {stable_mosaic.version = 11 : i64} {
  func.func @conv_bn_silu_kernel(%arg0: i32, %arg1: i32, %arg2: memref<1x18x18x4xbf16, #tpu.memory_space<vmem>>, %arg3: memref<3x3x4x128xbf16, #tpu.memory_space<vmem>>, %arg4: memref<1x128xf32, #tpu.memory_space<vmem>>, %arg5: memref<1x128x128xf32, #tpu.memory_space<vmem>>, %arg6: memref<128x128xf32, #tpu.memory_space<vmem>>) attributes {dimension_semantics = [#tpu.dimension_semantics<parallel>, #tpu.dimension_semantics<parallel>], iteration_bounds = array<i64: 2, 2>, scalar_prefetch = 0 : i64, scratch_operands = 1 : i64, tpu.core_type = #tpu.core_type<tc>, window_params = [{transform_indices = @transform_0, window_bounds = array<i64: 1, 18, 18, 4>}, {pipeline_mode = #tpu.pipeline_mode<synchronous>, transform_indices = @transform_1, window_bounds = array<i64: 3, 3, 4, 128>}, {pipeline_mode = #tpu.pipeline_mode<synchronous>, transform_indices = @transform_2, window_bounds = array<i64: 1, 128>}, {transform_indices = @transform_3, window_bounds = array<i64: 1, 128, 128>}]} {
    %c8_i32 = arith.constant 8 : i32
    %0 = arith.muli %arg1, %c8_i32 : i32
    %1 = tpu.assume_multiple %0, 8 : i32
    %c0 = arith.constant 0 : index
    %c0_0 = arith.constant 0 : index
    %2 = vector.load %arg4[%c0, %c0_0] : memref<1x128xf32, #tpu.memory_space<vmem>>, vector<1x128xf32>
    %3 = vector.shape_cast %2 : vector<1x128xf32> to vector<1x128xf32>
    %4 = vector.broadcast %3 : vector<1x128xf32> to vector<128x128xf32>
    %c0_1 = arith.constant 0 : index
    %c0_2 = arith.constant 0 : index
    %5 = vector.load %arg6[%c0_1, %c0_2] : memref<128x128xf32, #tpu.memory_space<vmem>>, vector<128x128xf32>
    tpu.vector_store %arg6[%c0_1, %c0_2], %4 {strides = array<i32>} : memref<128x128xf32, #tpu.memory_space<vmem>>, vector<128x128xf32>,
    %c0_i32 = arith.constant 0 : i32
    %6 = arith.addi %1, %c0_i32 : i32
    %c0_3 = arith.constant 0 : index
    %7 = arith.index_cast %6 : i32 to index
    %c0_4 = arith.constant 0 : index
    %c0_5 = arith.constant 0 : index
    %8 = vector.load %arg2[%c0_3, %7, %c0_4, %c0_5] : memref<1x18x18x4xbf16, #tpu.memory_space<vmem>>, vector<1x8x16x4xbf16>
    %9 = vector.shape_cast %8 : vector<1x8x16x4xbf16> to vector<8x16x4xbf16>
    %c0_6 = arith.constant 0 : index
    %c0_7 = arith.constant 0 : index
    %10 = vector.load %arg6[%c0_6, %c0_7] : memref<128x128xf32, #tpu.memory_space<vmem>>, vector<128x128xf32>
    %11 = vector.shape_cast %9 : vector<8x16x4xbf16> to vector<128x4xbf16>
    %c0_8 = arith.constant 0 : index
    %c0_9 = arith.constant 0 : index
    %c0_10 = arith.constant 0 : index
    %c0_11 = arith.constant 0 : index
    %12 = vector.load %arg3[%c0_8, %c0_9, %c0_10, %c0_11] : memref<3x3x4x128xbf16, #tpu.memory_space<vmem>>, vector<1x1x4x128xbf16>
    %13 = vector.shape_cast %12 : vector<1x1x4x128xbf16> to vector<4x128xbf16>
    %cst = arith.constant dense<0.000000e+00> : vector<128x128xf32>
    %14 = tpu.matmul %11, %13, %cst {dimension_numbers = #tpu.dot_dimension_numbers<[1], [0], [0], [1], [0, 0, 1, 1], [], []>} : vector<128x4xbf16>, vector<4x128xbf16>, vector<128x128xf32> -> vector<128x128xf32>
    %15 = arith.addf %10, %14 : vector<128x128xf32>
    %c0_12 = arith.constant 0 : index
    %c0_13 = arith.constant 0 : index
    %16 = vector.load %arg6[%c0_12, %c0_13] : memref<128x128xf32, #tpu.memory_space<vmem>>, vector<128x128xf32>
    tpu.vector_store %arg6[%c0_12, %c0_13], %15 {strides = array<i32>} : memref<128x128xf32, #tpu.memory_space<vmem>>, vector<128x128xf32>,
    %c0_i32_14 = arith.constant 0 : i32
    %17 = arith.addi %1, %c0_i32_14 : i32
    %c0_15 = arith.constant 0 : index
    %18 = arith.index_cast %17 : i32 to index
    %c1 = arith.constant 1 : index
    %c0_16 = arith.constant 0 : index
    %19 = vector.load %arg2[%c0_15, %18, %c1, %c0_16] : memref<1x18x18x4xbf16, #tpu.memory_space<vmem>>, vector<1x8x16x4xbf16>
    %20 = vector.shape_cast %19 : vector<1x8x16x4xbf16> to vector<8x16x4xbf16>
    %c0_17 = arith.constant 0 : index
    %c0_18 = arith.constant 0 : index
    %21 = vector.load %arg6[%c0_17, %c0_18] : memref<128x128xf32, #tpu.memory_space<vmem>>, vector<128x128xf32>
    %22 = vector.shape_cast %20 : vector<8x16x4xbf16> to vector<128x4xbf16>
    %c0_19 = arith.constant 0 : index
    %c1_20 = arith.constant 1 : index
    %c0_21 = arith.constant 0 : index
    %c0_22 = arith.constant 0 : index
    %23 = vector.load %arg3[%c0_19, %c1_20, %c0_21, %c0_22] : memref<3x3x4x128xbf16, #tpu.memory_space<vmem>>, vector<1x1x4x128xbf16>
    %24 = vector.shape_cast %23 : vector<1x1x4x128xbf16> to vector<4x128xbf16>
    %cst_23 = arith.constant dense<0.000000e+00> : vector<128x128xf32>
    %25 = tpu.matmul %22, %24, %cst_23 {dimension_numbers = #tpu.dot_dimension_numbers<[1], [0], [0], [1], [0, 0, 1, 1], [], []>} : vector<128x4xbf16>, vector<4x128xbf16>, vector<128x128xf32> -> vector<128x128xf32>
    %26 = arith.addf %21, %25 : vector<128x128xf32>
    %c0_24 = arith.constant 0 : index
    %c0_25 = arith.constant 0 : index
    %27 = vector.load %arg6[%c0_24, %c0_25] : memref<128x128xf32, #tpu.memory_space<vmem>>, vector<128x128xf32>
    tpu.vector_store %arg6[%c0_24, %c0_25], %26 {strides = array<i32>} : memref<128x128xf32, #tpu.memory_space<vmem>>, vector<128x128xf32>,
    %c0_i32_26 = arith.constant 0 : i32
    %28 = arith.addi %1, %c0_i32_26 : i32
    %c0_27 = arith.constant 0 : index
    %29 = arith.index_cast %28 : i32 to index
    %c2 = arith.constant 2 : index
    %c0_28 = arith.constant 0 : index
    %30 = vector.load %arg2[%c0_27, %29, %c2, %c0_28] : memref<1x18x18x4xbf16, #tpu.memory_space<vmem>>, vector<1x8x16x4xbf16>
    %31 = vector.shape_cast %30 : vector<1x8x16x4xbf16> to vector<8x16x4xbf16>
    %c0_29 = arith.constant 0 : index
    %c0_30 = arith.constant 0 : index
    %32 = vector.load %arg6[%c0_29, %c0_30] : memref<128x128xf32, #tpu.memory_space<vmem>>, vector<128x128xf32>
    %33 = vector.shape_cast %31 : vector<8x16x4xbf16> to vector<128x4xbf16>
    %c0_31 = arith.constant 0 : index
    %c2_32 = arith.constant 2 : index
    %c0_33 = arith.constant 0 : index
    %c0_34 = arith.constant 0 : index
    %34 = vector.load %arg3[%c0_31, %c2_32, %c0_33, %c0_34] : memref<3x3x4x128xbf16, #tpu.memory_space<vmem>>, vector<1x1x4x128xbf16>
    %35 = vector.shape_cast %34 : vector<1x1x4x128xbf16> to vector<4x128xbf16>
    %cst_35 = arith.constant dense<0.000000e+00> : vector<128x128xf32>
    %36 = tpu.matmul %33, %35, %cst_35 {dimension_numbers = #tpu.dot_dimension_numbers<[1], [0], [0], [1], [0, 0, 1, 1], [], []>} : vector<128x4xbf16>, vector<4x128xbf16>, vector<128x128xf32> -> vector<128x128xf32>
    %37 = arith.addf %32, %36 : vector<128x128xf32>
    %c0_36 = arith.constant 0 : index
    %c0_37 = arith.constant 0 : index
    %38 = vector.load %arg6[%c0_36, %c0_37] : memref<128x128xf32, #tpu.memory_space<vmem>>, vector<128x128xf32>
    tpu.vector_store %arg6[%c0_36, %c0_37], %37 {strides = array<i32>} : memref<128x128xf32, #tpu.memory_space<vmem>>, vector<128x128xf32>,
    %c1_i32 = arith.constant 1 : i32
    %39 = arith.addi %1, %c1_i32 : i32
    %c0_38 = arith.constant 0 : index
    %40 = arith.index_cast %39 : i32 to index
    %c0_39 = arith.constant 0 : index
    %c0_40 = arith.constant 0 : index
    %41 = vector.load %arg2[%c0_38, %40, %c0_39, %c0_40] : memref<1x18x18x4xbf16, #tpu.memory_space<vmem>>, vector<1x8x16x4xbf16>
    %42 = vector.shape_cast %41 : vector<1x8x16x4xbf16> to vector<8x16x4xbf16>
    %c0_41 = arith.constant 0 : index
    %c0_42 = arith.constant 0 : index
    %43 = vector.load %arg6[%c0_41, %c0_42] : memref<128x128xf32, #tpu.memory_space<vmem>>, vector<128x128xf32>
    %44 = vector.shape_cast %42 : vector<8x16x4xbf16> to vector<128x4xbf16>
    %c1_43 = arith.constant 1 : index
    %c0_44 = arith.constant 0 : index
    %c0_45 = arith.constant 0 : index
    %c0_46 = arith.constant 0 : index
    %45 = vector.load %arg3[%c1_43, %c0_44, %c0_45, %c0_46] : memref<3x3x4x128xbf16, #tpu.memory_space<vmem>>, vector<1x1x4x128xbf16>
    %46 = vector.shape_cast %45 : vector<1x1x4x128xbf16> to vector<4x128xbf16>
    %cst_47 = arith.constant dense<0.000000e+00> : vector<128x128xf32>
    %47 = tpu.matmul %44, %46, %cst_47 {dimension_numbers = #tpu.dot_dimension_numbers<[1], [0], [0], [1], [0, 0, 1, 1], [], []>} : vector<128x4xbf16>, vector<4x128xbf16>, vector<128x128xf32> -> vector<128x128xf32>
    %48 = arith.addf %43, %47 : vector<128x128xf32>
    %c0_48 = arith.constant 0 : index
    %c0_49 = arith.constant 0 : index
    %49 = vector.load %arg6[%c0_48, %c0_49] : memref<128x128xf32, #tpu.memory_space<vmem>>, vector<128x128xf32>
    tpu.vector_store %arg6[%c0_48, %c0_49], %48 {strides = array<i32>} : memref<128x128xf32, #tpu.memory_space<vmem>>, vector<128x128xf32>,
    %c1_i32_50 = arith.constant 1 : i32
    %50 = arith.addi %1, %c1_i32_50 : i32
    %c0_51 = arith.constant 0 : index
    %51 = arith.index_cast %50 : i32 to index
    %c1_52 = arith.constant 1 : index
    %c0_53 = arith.constant 0 : index
    %52 = vector.load %arg2[%c0_51, %51, %c1_52, %c0_53] : memref<1x18x18x4xbf16, #tpu.memory_space<vmem>>, vector<1x8x16x4xbf16>
    %53 = vector.shape_cast %52 : vector<1x8x16x4xbf16> to vector<8x16x4xbf16>
    %c0_54 = arith.constant 0 : index
    %c0_55 = arith.constant 0 : index
    %54 = vector.load %arg6[%c0_54, %c0_55] : memref<128x128xf32, #tpu.memory_space<vmem>>, vector<128x128xf32>
    %55 = vector.shape_cast %53 : vector<8x16x4xbf16> to vector<128x4xbf16>
    %c1_56 = arith.constant 1 : index
    %c1_57 = arith.constant 1 : index
    %c0_58 = arith.constant 0 : index
    %c0_59 = arith.constant 0 : index
    %56 = vector.load %arg3[%c1_56, %c1_57, %c0_58, %c0_59] : memref<3x3x4x128xbf16, #tpu.memory_space<vmem>>, vector<1x1x4x128xbf16>
    %57 = vector.shape_cast %56 : vector<1x1x4x128xbf16> to vector<4x128xbf16>
    %cst_60 = arith.constant dense<0.000000e+00> : vector<128x128xf32>
    %58 = tpu.matmul %55, %57, %cst_60 {dimension_numbers = #tpu.dot_dimension_numbers<[1], [0], [0], [1], [0, 0, 1, 1], [], []>} : vector<128x4xbf16>, vector<4x128xbf16>, vector<128x128xf32> -> vector<128x128xf32>
    %59 = arith.addf %54, %58 : vector<128x128xf32>
    %c0_61 = arith.constant 0 : index
    %c0_62 = arith.constant 0 : index
    %60 = vector.load %arg6[%c0_61, %c0_62] : memref<128x128xf32, #tpu.memory_space<vmem>>, vector<128x128xf32>
    tpu.vector_store %arg6[%c0_61, %c0_62], %59 {strides = array<i32>} : memref<128x128xf32, #tpu.memory_space<vmem>>, vector<128x128xf32>,
    %c1_i32_63 = arith.constant 1 : i32
    %61 = arith.addi %1, %c1_i32_63 : i32
    %c0_64 = arith.constant 0 : index
    %62 = arith.index_cast %61 : i32 to index
    %c2_65 = arith.constant 2 : index
    %c0_66 = arith.constant 0 : index
    %63 = vector.load %arg2[%c0_64, %62, %c2_65, %c0_66] : memref<1x18x18x4xbf16, #tpu.memory_space<vmem>>, vector<1x8x16x4xbf16>
    %64 = vector.shape_cast %63 : vector<1x8x16x4xbf16> to vector<8x16x4xbf16>
    %c0_67 = arith.constant 0 : index
    %c0_68 = arith.constant 0 : index
    %65 = vector.load %arg6[%c0_67, %c0_68] : memref<128x128xf32, #tpu.memory_space<vmem>>, vector<128x128xf32>
    %66 = vector.shape_cast %64 : vector<8x16x4xbf16> to vector<128x4xbf16>
    %c1_69 = arith.constant 1 : index
    %c2_70 = arith.constant 2 : index
    %c0_71 = arith.constant 0 : index
    %c0_72 = arith.constant 0 : index
    %67 = vector.load %arg3[%c1_69, %c2_70, %c0_71, %c0_72] : memref<3x3x4x128xbf16, #tpu.memory_space<vmem>>, vector<1x1x4x128xbf16>
    %68 = vector.shape_cast %67 : vector<1x1x4x128xbf16> to vector<4x128xbf16>
    %cst_73 = arith.constant dense<0.000000e+00> : vector<128x128xf32>
    %69 = tpu.matmul %66, %68, %cst_73 {dimension_numbers = #tpu.dot_dimension_numbers<[1], [0], [0], [1], [0, 0, 1, 1], [], []>} : vector<128x4xbf16>, vector<4x128xbf16>, vector<128x128xf32> -> vector<128x128xf32>
    %70 = arith.addf %65, %69 : vector<128x128xf32>
    %c0_74 = arith.constant 0 : index
    %c0_75 = arith.constant 0 : index
    %71 = vector.load %arg6[%c0_74, %c0_75] : memref<128x128xf32, #tpu.memory_space<vmem>>, vector<128x128xf32>
    tpu.vector_store %arg6[%c0_74, %c0_75], %70 {strides = array<i32>} : memref<128x128xf32, #tpu.memory_space<vmem>>, vector<128x128xf32>,
    %c2_i32 = arith.constant 2 : i32
    %72 = arith.addi %1, %c2_i32 : i32
    %c0_76 = arith.constant 0 : index
    %73 = arith.index_cast %72 : i32 to index
    %c0_77 = arith.constant 0 : index
    %c0_78 = arith.constant 0 : index
    %74 = vector.load %arg2[%c0_76, %73, %c0_77, %c0_78] : memref<1x18x18x4xbf16, #tpu.memory_space<vmem>>, vector<1x8x16x4xbf16>
    %75 = vector.shape_cast %74 : vector<1x8x16x4xbf16> to vector<8x16x4xbf16>
    %c0_79 = arith.constant 0 : index
    %c0_80 = arith.constant 0 : index
    %76 = vector.load %arg6[%c0_79, %c0_80] : memref<128x128xf32, #tpu.memory_space<vmem>>, vector<128x128xf32>
    %77 = vector.shape_cast %75 : vector<8x16x4xbf16> to vector<128x4xbf16>
    %c2_81 = arith.constant 2 : index
    %c0_82 = arith.constant 0 : index
    %c0_83 = arith.constant 0 : index
    %c0_84 = arith.constant 0 : index
    %78 = vector.load %arg3[%c2_81, %c0_82, %c0_83, %c0_84] : memref<3x3x4x128xbf16, #tpu.memory_space<vmem>>, vector<1x1x4x128xbf16>
    %79 = vector.shape_cast %78 : vector<1x1x4x128xbf16> to vector<4x128xbf16>
    %cst_85 = arith.constant dense<0.000000e+00> : vector<128x128xf32>
    %80 = tpu.matmul %77, %79, %cst_85 {dimension_numbers = #tpu.dot_dimension_numbers<[1], [0], [0], [1], [0, 0, 1, 1], [], []>} : vector<128x4xbf16>, vector<4x128xbf16>, vector<128x128xf32> -> vector<128x128xf32>
    %81 = arith.addf %76, %80 : vector<128x128xf32>
    %c0_86 = arith.constant 0 : index
    %c0_87 = arith.constant 0 : index
    %82 = vector.load %arg6[%c0_86, %c0_87] : memref<128x128xf32, #tpu.memory_space<vmem>>, vector<128x128xf32>
    tpu.vector_store %arg6[%c0_86, %c0_87], %81 {strides = array<i32>} : memref<128x128xf32, #tpu.memory_space<vmem>>, vector<128x128xf32>,
    %c2_i32_88 = arith.constant 2 : i32
    %83 = arith.addi %1, %c2_i32_88 : i32
    %c0_89 = arith.constant 0 : index
    %84 = arith.index_cast %83 : i32 to index
    %c1_90 = arith.constant 1 : index
    %c0_91 = arith.constant 0 : index
    %85 = vector.load %arg2[%c0_89, %84, %c1_90, %c0_91] : memref<1x18x18x4xbf16, #tpu.memory_space<vmem>>, vector<1x8x16x4xbf16>
    %86 = vector.shape_cast %85 : vector<1x8x16x4xbf16> to vector<8x16x4xbf16>
    %c0_92 = arith.constant 0 : index
    %c0_93 = arith.constant 0 : index
    %87 = vector.load %arg6[%c0_92, %c0_93] : memref<128x128xf32, #tpu.memory_space<vmem>>, vector<128x128xf32>
    %88 = vector.shape_cast %86 : vector<8x16x4xbf16> to vector<128x4xbf16>
    %c2_94 = arith.constant 2 : index
    %c1_95 = arith.constant 1 : index
    %c0_96 = arith.constant 0 : index
    %c0_97 = arith.constant 0 : index
    %89 = vector.load %arg3[%c2_94, %c1_95, %c0_96, %c0_97] : memref<3x3x4x128xbf16, #tpu.memory_space<vmem>>, vector<1x1x4x128xbf16>
    %90 = vector.shape_cast %89 : vector<1x1x4x128xbf16> to vector<4x128xbf16>
    %cst_98 = arith.constant dense<0.000000e+00> : vector<128x128xf32>
    %91 = tpu.matmul %88, %90, %cst_98 {dimension_numbers = #tpu.dot_dimension_numbers<[1], [0], [0], [1], [0, 0, 1, 1], [], []>} : vector<128x4xbf16>, vector<4x128xbf16>, vector<128x128xf32> -> vector<128x128xf32>
    %92 = arith.addf %87, %91 : vector<128x128xf32>
    %c0_99 = arith.constant 0 : index
    %c0_100 = arith.constant 0 : index
    %93 = vector.load %arg6[%c0_99, %c0_100] : memref<128x128xf32, #tpu.memory_space<vmem>>, vector<128x128xf32>
    tpu.vector_store %arg6[%c0_99, %c0_100], %92 {strides = array<i32>} : memref<128x128xf32, #tpu.memory_space<vmem>>, vector<128x128xf32>,
    %c2_i32_101 = arith.constant 2 : i32
    %94 = arith.addi %1, %c2_i32_101 : i32
    %c0_102 = arith.constant 0 : index
    %95 = arith.index_cast %94 : i32 to index
    %c2_103 = arith.constant 2 : index
    %c0_104 = arith.constant 0 : index
    %96 = vector.load %arg2[%c0_102, %95, %c2_103, %c0_104] : memref<1x18x18x4xbf16, #tpu.memory_space<vmem>>, vector<1x8x16x4xbf16>
    %97 = vector.shape_cast %96 : vector<1x8x16x4xbf16> to vector<8x16x4xbf16>
    %c0_105 = arith.constant 0 : index
    %c0_106 = arith.constant 0 : index
    %98 = vector.load %arg6[%c0_105, %c0_106] : memref<128x128xf32, #tpu.memory_space<vmem>>, vector<128x128xf32>
    %99 = vector.shape_cast %97 : vector<8x16x4xbf16> to vector<128x4xbf16>
    %c2_107 = arith.constant 2 : index
    %c2_108 = arith.constant 2 : index
    %c0_109 = arith.constant 0 : index
    %c0_110 = arith.constant 0 : index
    %100 = vector.load %arg3[%c2_107, %c2_108, %c0_109, %c0_110] : memref<3x3x4x128xbf16, #tpu.memory_space<vmem>>, vector<1x1x4x128xbf16>
    %101 = vector.shape_cast %100 : vector<1x1x4x128xbf16> to vector<4x128xbf16>
    %cst_111 = arith.constant dense<0.000000e+00> : vector<128x128xf32>
    %102 = tpu.matmul %99, %101, %cst_111 {dimension_numbers = #tpu.dot_dimension_numbers<[1], [0], [0], [1], [0, 0, 1, 1], [], []>} : vector<128x4xbf16>, vector<4x128xbf16>, vector<128x128xf32> -> vector<128x128xf32>
    %103 = arith.addf %98, %102 : vector<128x128xf32>
    %c0_112 = arith.constant 0 : index
    %c0_113 = arith.constant 0 : index
    %104 = vector.load %arg6[%c0_112, %c0_113] : memref<128x128xf32, #tpu.memory_space<vmem>>, vector<128x128xf32>
    tpu.vector_store %arg6[%c0_112, %c0_113], %103 {strides = array<i32>} : memref<128x128xf32, #tpu.memory_space<vmem>>, vector<128x128xf32>,
    %c0_114 = arith.constant 0 : index
    %c0_115 = arith.constant 0 : index
    %105 = vector.load %arg6[%c0_114, %c0_115] : memref<128x128xf32, #tpu.memory_space<vmem>>, vector<128x128xf32>
    %106 = arith.negf %105 : vector<128x128xf32>
    %107 = math.exp %106 : vector<128x128xf32>
    %cst_116 = arith.constant 1.000000e+00 : f32
    %108 = vector.broadcast %cst_116 : f32 to vector<128x128xf32>
    %109 = arith.addf %108, %107 : vector<128x128xf32>
    %110 = arith.divf %108, %109 : vector<128x128xf32>
    %111 = arith.mulf %105, %110 : vector<128x128xf32>
    %c0_117 = arith.constant 0 : index
    %c0_118 = arith.constant 0 : index
    %c0_119 = arith.constant 0 : index
    %112 = vector.load %arg5[%c0_117, %c0_118, %c0_119] : memref<1x128x128xf32, #tpu.memory_space<vmem>>, vector<1x128x128xf32>
    %113 = vector.shape_cast %112 : vector<1x128x128xf32> to vector<128x128xf32>
    %114 = vector.shape_cast %111 : vector<128x128xf32> to vector<1x128x128xf32>
    tpu.vector_store %arg5[%c0_117, %c0_118, %c0_119], %114 {strides = array<i32>} : memref<1x128x128xf32, #tpu.memory_space<vmem>>, vector<1x128x128xf32>,
    return
  }
  func.func @transform_0(%arg0: i32, %arg1: i32) -> (i32, i32, i32, i32) {
    %c0_i32 = arith.constant 0 : i32
    %c0_i32_0 = arith.constant 0 : i32
    %c0_i32_1 = arith.constant 0 : i32
    %c0_i32_2 = arith.constant 0 : i32
    return %arg0, %c0_i32, %c0_i32_0, %c0_i32_1 : i32, i32, i32, i32
  }
  func.func @transform_1(%arg0: i32, %arg1: i32) -> (i32, i32, i32, i32) {
    %c0_i32 = arith.constant 0 : i32
    %c0_i32_0 = arith.constant 0 : i32
    %c0_i32_1 = arith.constant 0 : i32
    %c0_i32_2 = arith.constant 0 : i32
    %c0_i32_3 = arith.constant 0 : i32
    return %c0_i32, %c0_i32_0, %c0_i32_1, %c0_i32_2 : i32, i32, i32, i32
  }
  func.func @transform_2(%arg0: i32, %arg1: i32) -> (i32, i32) {
    %c0_i32 = arith.constant 0 : i32
    %c0_i32_0 = arith.constant 0 : i32
    %c0_i32_1 = arith.constant 0 : i32
    return %c0_i32, %c0_i32_0 : i32, i32
  }
  func.func @transform_3(%arg0: i32, %arg1: i32) -> (i32, i32, i32) {
    %c0_i32 = arith.constant 0 : i32
    %c0_i32_0 = arith.constant 0 : i32
    return %arg0, %arg1, %c0_i32 : i32, i32, i32
  }
}

</mosaic_0001>

<llo_original>
// kernel: tpu_custom_call.1
$region0: #{tpu_custom_call.1}
  #allocation0 [shape = 'u32[]', space=smem, size = 0x4, offset = 0x4, fixed_abs, tag = 'smem constant byte address 0x4 - core index']
  #allocation1 [shape = 'u32[144,128]{1,0:T(1,128)}', space=vmem, size = 0x12000, scoped, tag = 'internal scratch']
  #allocation2 [shape = 'f32[128,128]{1,0:T(8,128)}', space=vmem, size = 0x10000, scoped, tag = 'scratch operand']
  %s0 = inlined_call_operand.vmem [shape: bf16[2,18,18,4], index: 0, kind: input, shape index: {}]
  %s1 = inlined_call_operand.vmem [shape: bf16[3,3,4,128], index: 1, kind: input, shape index: {}]
  %s2 = inlined_call_operand.vmem [shape: f32[1,128], index: 2, kind: input, shape index: {}]
  %s3 = inlined_call_operand.hbm [shape: f32[2,256,128], index: 3, kind: output, shape index: {}]
  %s4 = sld [smem:[#allocation0]]
  $region45: #{tpu_custom_call.1} parent=0
    _
  %s6 = ssub.s32 1, %s4
  %s7 = scalar_select 0, %s6, %s4
  $region1: #{tpu_custom_call.1} parent=0
    #allocation3 [shape = 'u8[131072]{0}', space=vmem, size = 0x20000, scoped, tag = 'output window, operand 0']
    #allocation4 [shape = 's32[2]{0}', space=sflag, size = 0x8, scoped, tag = 'scoped memory for tpu_custom_call.1']
    %8 = vsyncpa [#allocation4], 0
    %s9 = scalar_lea.sflag [#allocation4], 1
    %10 = vsyncpa %s9, 0
    loop: start=0, step=1, limit=6
    $region2: #{tpu_custom_call.1} parent=1 // loop_pre_header
      _
    $region3: #{tpu_custom_call.1} parent=1 // loop_header
      %s12 = sphi 0, %s16
      %p13 = scmp.ge.s32.totalorder %s12, 6
      %s19 = sphi 0, %s31
      %s20 = sphi 0, %s27
      %s21 = sphi 0, %s19
      %s22 = sphi 0, %s20
      %s23 = sphi 0, %s21
      %s24 = sphi 0, %s22
      %s34 = sphi 0, %s36
      %s37 = sphi 0, %s34
      %s38 = sphi 0, %s37
      %s54 = sphi 0, %s38
      %s58 = sphi 0, %s58
      %s60 = sphi 0, %s58
      %s61 = sphi 0, %s60
      %s75 = sphi 0, %s61
      %s79 = sphi 0, %s79
      %s81 = sphi 0, %s79
      %s82 = sphi 0, %s81
      %s96 = sphi 0, %s82
      %s104 = sphi 0, %s106
      %s107 = sphi 0, %s104
      %s108 = sphi 0, %s107
      %s124 = sphi 0, %s108
    $region4: #{tpu_custom_call.1} parent=1 // loop_header_branch
      %15 = sbr.rel (%p13) target = $region8
    $region5: #{tpu_custom_call.1} parent=1 // loop_body
      %s17 = ssub.s32 %s12, 1
      %s18 = ssub.s32 %s12, 2
      %s25 = sadd.s32 1, %s20
      %p26 = scmp.ge.s32.totalorder %s25, 2
      %s27 = scalar_select %p26, 0, %s25
      %s28 = sadd.s32 1, %s19
      %s29 = scalar_select %p26, %s28, %s19
      %p30 = scmp.ge.s32.totalorder %s29, 2
      %s31 = scalar_select %p30, 0, %s29
      %s32 = ssub.s32 %s19, %s31
      %p33 = scmp.eq.s32.totalorder %s32, 0
      %s35 = sadd.s32 %s34, 1
      %s36 = scalar_select %p33, %s34, %s35
      %p39 = pneg %p33
      %p40 = scmp.eq.s32.totalorder %s12, 3
      %p41 = por %p39, %p40
      %p42 = scmp.ne.s32.totalorder %s34, %s37
      %p43 = scmp.eq.s32.totalorder %s12, 0
      %p44 = por %p42, %p43
      %p45 = scmp.ne.s32.totalorder %s34, %s37
      %p46 = scmp.eq.s32.totalorder %s17, 3
      %p47 = por %p45, %p46
      %p48 = scmp.ne.s32.totalorder %s37, %s38
      %p49 = scmp.eq.s32.totalorder %s17, 0
      %p50 = por %p48, %p49
      %p51 = scmp.ne.s32.totalorder %s37, %s38
      %p52 = scmp.eq.s32.totalorder %s18, 3
      %p53 = por %p51, %p52
      %p55 = scmp.ne.s32.totalorder %s38, %s54
      %p56 = scmp.eq.s32.totalorder %s18, 0
      %p57 = por %p55, %p56
      %s59 = sadd.s32 %s58, 1
      %p62 = scmp.eq.s32.totalorder %s12, 3
      %p63 = scmp.ne.s32.totalorder %s58, %s60
      %p64 = scmp.eq.s32.totalorder %s12, 0
      %p65 = por %p63, %p64
      %p66 = scmp.ne.s32.totalorder %s58, %s60
      %p67 = scmp.eq.s32.totalorder %s17, 3
      %p68 = por %p66, %p67
      %p69 = scmp.ne.s32.totalorder %s60, %s61
      %p70 = scmp.eq.s32.totalorder %s17, 0
      %p71 = por %p69, %p70
      %p72 = scmp.ne.s32.totalorder %s60, %s61
      %p73 = scmp.eq.s32.totalorder %s18, 3
      %p74 = por %p72, %p73
      %p76 = scmp.ne.s32.totalorder %s61, %s75
      %p77 = scmp.eq.s32.totalorder %s18, 0
      %p78 = por %p76, %p77
      %s80 = sadd.s32 %s79, 1
      %p83 = scmp.eq.s32.totalorder %s12, 3
      %p84 = scmp.ne.s32.totalorder %s79, %s81
      %p85 = scmp.eq.s32.totalorder %s12, 0
      %p86 = por %p84, %p85
      %p87 = scmp.ne.s32.totalorder %s79, %s81
      %p88 = scmp.eq.s32.totalorder %s17, 3
      %p89 = por %p87, %p88
      %p90 = scmp.ne.s32.totalorder %s81, %s82
      %p91 = scmp.eq.s32.totalorder %s17, 0
      %p92 = por %p90, %p91
      %p93 = scmp.ne.s32.totalorder %s81, %s82
      %p94 = scmp.eq.s32.totalorder %s18, 3
      %p95 = por %p93, %p94
      %p97 = scmp.ne.s32.totalorder %s82, %s96
      %p98 = scmp.eq.s32.totalorder %s18, 0
      %p99 = por %p97, %p98
      %s100 = ssub.s32 %s19, %s31
      %s101 = ssub.s32 %s20, %s27
      %s102 = sor.u32 %s100, %s101
      %p103 = scmp.eq.s32.totalorder %s102, 0
      %s105 = sadd.s32 %s104, 1
      %s106 = scalar_select %p103, %s104, %s105
      %p109 = pneg %p103
      %p110 = scmp.eq.s32.totalorder %s12, 3
      %p111 = por %p109, %p110
      %p112 = scmp.ne.s32.totalorder %s104, %s107
      %p113 = scmp.eq.s32.totalorder %s12, 0
      %p114 = por %p112, %p113
      %p115 = scmp.ne.s32.totalorder %s104, %s107
      %p116 = scmp.eq.s32.totalorder %s17, 3
      %p117 = por %p115, %p116
      %p118 = scmp.ne.s32.totalorder %s107, %s108
      %p119 = scmp.eq.s32.totalorder %s17, 0
      %p120 = por %p118, %p119
      %p121 = scmp.ne.s32.totalorder %s107, %s108
      %p122 = scmp.eq.s32.totalorder %s18, 3
      %p123 = por %p121, %p122
      %p125 = scmp.ne.s32.totalorder %s108, %s124
      %p126 = scmp.eq.s32.totalorder %s18, 0
      %p127 = por %p125, %p126
      %p128 = scmp.le.s32.totalorder 1, %s12
      %p129 = scmp.lt.s32.totalorder %s12, 5
      %p130 = pnand %p128, %p129
      %p131 = pneg %p130
      // Predicated region
      $region9: #{tpu_custom_call.1} parent=5 // pred_check
        _
      $region10: #{tpu_custom_call.1} parent=5 // pred_check_branch
        %133 = sbr.rel (%p130) target = $region12
      $region11: #{tpu_custom_call.1} parent=5 // pred_region
        %s134 = ssub.s32 %s12, 1
        // Predicated region
        $region13: #{tpu_custom_call.1} parent=11 // pred_check
          %p135 = pneg %p71
        $region14: #{tpu_custom_call.1} parent=11 // pred_check_branch
          %137 = sbr.rel (%p135) target = $region16
        $region15: #{tpu_custom_call.1} parent=11 // pred_region
          _
        $region16: #{tpu_custom_call.1} parent=11 // pred_fallthru
          _
        // Predicated region
        $region17: #{tpu_custom_call.1} parent=11 // pred_check
          %p138 = pneg %p92
        $region18: #{tpu_custom_call.1} parent=11 // pred_check_branch
          %140 = sbr.rel (%p138) target = $region20
        $region19: #{tpu_custom_call.1} parent=11 // pred_region
          _
        $region20: #{tpu_custom_call.1} parent=11 // pred_fallthru
          _
      $region12: #{tpu_custom_call.1} parent=5 // pred_fallthru
        _
      %p141 = scmp.lt.s32.totalorder %s12, 4
      // Predicated region
      $region21: #{tpu_custom_call.1} parent=5 // pred_check
        %p142 = pneg %p141
      $region22: #{tpu_custom_call.1} parent=5 // pred_check_branch
        %144 = sbr.rel (%p142) target = $region24
      $region23: #{tpu_custom_call.1} parent=5 // pred_region
        // Predicated region
        $region25: #{tpu_custom_call.1} parent=23 // pred_check
          %p145 = pneg %p44
        $region26: #{tpu_custom_call.1} parent=23 // pred_check_branch
          %147 = sbr.rel (%p145) target = $region28
        $region27: #{tpu_custom_call.1} parent=23 // pred_region
          %p148 = scmp.lt.s32.totalorder %s19, 1
          %s149 = scalar_select %p148, %s19, 1
          %s150 = smul.addr %s149, 54
          %s151 = smul.addr %s150, 4
          %s152 = scalar_lea.vmem %s0, %s151
        $region28: #{tpu_custom_call.1} parent=23 // pred_fallthru
          _
      $region24: #{tpu_custom_call.1} parent=5 // pred_fallthru
        _
      %p153 = scmp.le.s32.totalorder 1, %s12
      %p154 = scmp.lt.s32.totalorder %s12, 5
      %p155 = pnand %p153, %p154
      %p156 = pneg %p155
      // Predicated region
      $region29: #{tpu_custom_call.1} parent=5 // pred_check
        _
      $region30: #{tpu_custom_call.1} parent=5 // pred_check_branch
        %158 = sbr.rel (%p155) target = $region32
      $region31: #{tpu_custom_call.1} parent=5 // pred_region
        %s159 = ssub.s32 %s12, 1
        %p160 = scmp.lt.s32.totalorder %s21, 1
        %s161 = scalar_select %p160, %s21, 1
        %s162 = smul.addr %s161, 54
        %s163 = smul.addr %s162, 4
        %s164 = scalar_lea.vmem %s0, %s163
        %p165 = pneg %p50
        %p166 = pneg %p47
        %p167 = pneg %p71
        %p168 = pneg %p68
        %p169 = pneg %p92
        %p170 = pneg %p89
        %p171 = pneg %p120
        %p172 = pneg %p117
        %s173 = sand.u32 %s107, 1
        %s174 = scalar_lea.sflag [#allocation4], %s173
        %s175 = sand.u32 %s107, 1
        %s176 = smul.addr %s175, 128
        %s177 = scalar_lea.vmem [#allocation3], %s176
        %p178 = scmp.lt.s32.totalorder %s21, 1
        %s179 = scalar_select %p178, %s21, 1
        %s180 = smul.addr %s179, 54
        %s181 = smul.addr %s180, 4
        %s182 = scalar_lea.vmem %s0, %s181
        %s183 = smul.u32 16, %s22
        %s185 = smul.u32 %s22, 8
        %v186 = vld [vmem:[%s2] sm:$0x1]
        %v188 = vlaneseq
        %v189 = vshrl.u32 %v188, 7
        %v190 = vsub.s32 0, %v189
        %v191 = vrot.slane %v186, %v190
        %193 = vst [vmem:[#allocation2] sm:$0xff] %v191
        %194 = vst [vmem:[#allocation2 + $0x8] sm:$0xff] %v191
        %195 = vst [vmem:[#allocation2 + $0x10] sm:$0xff] %v191
        %196 = vst [vmem:[#allocation2 + $0x18] sm:$0xff] %v191
        %197 = vst [vmem:[#allocation2 + $0x20] sm:$0xff] %v191
        %198 = vst [vmem:[#allocation2 + $0x28] sm:$0xff] %v191
        %199 = vst [vmem:[#allocation2 + $0x30] sm:$0xff] %v191
        %200 = vst [vmem:[#allocation2 + $0x38] sm:$0xff] %v191
        %201 = vst [vmem:[#allocation2 + $0x40] sm:$0xff] %v191
        %202 = vst [vmem:[#allocation2 + $0x48] sm:$0xff] %v191
        %203 = vst [vmem:[#allocation2 + $0x50] sm:$0xff] %v191
        %204 = vst [vmem:[#allocation2 + $0x58] sm:$0xff] %v191
        %205 = vst [vmem:[#allocation2 + $0x60] sm:$0xff] %v191
        %206 = vst [vmem:[#allocation2 + $0x68] sm:$0xff] %v191
        %207 = vst [vmem:[#allocation2 + $0x70] sm:$0xff] %v191
        %208 = vst [vmem:[#allocation2 + $0x78] sm:$0xff] %v191
        %s209 = smul.u32 %s185, 3
        %s210 = smul.addr %s209, 4
        %s211 = scalar_lea.vmem %s182, %s210
        %v212 = vld [vmem:[%s211] sm:$0xf]
        %v213 = vld [vmem:[%s211 + $0x4] sm:$0xf]
        %v214 = vld [vmem:[%s211 + $0xc] sm:$0xf]
        %v215 = vld [vmem:[%s211 + $0x10] sm:$0xf]
        %v216 = vld [vmem:[%s211 + $0x18] sm:$0xf]
        %v217 = vld [vmem:[%s211 + $0x1c] sm:$0xf]
        %v218 = vld [vmem:[%s211 + $0x24] sm:$0xf]
        %v219 = vld [vmem:[%s211 + $0x28] sm:$0xf]
        %v220 = vld [vmem:[%s211 + $0x30] sm:$0xf]
        %v221 = vld [vmem:[%s211 + $0x34] sm:$0xf]
        %v222 = vld [vmem:[%s211 + $0x3c] sm:$0xf]
        %v223 = vld [vmem:[%s211 + $0x40] sm:$0xf]
        %v224 = vld [vmem:[%s211 + $0x48] sm:$0xf]
        %v225 = vld [vmem:[%s211 + $0x4c] sm:$0xf]
        %v226 = vld [vmem:[%s211 + $0x54] sm:$0xf]
        %v227 = vld [vmem:[%s211 + $0x58] sm:$0xf]
        %v228 = vld [vmem:[#allocation2] sm:$0xff]
        %v229 = vld [vmem:[#allocation2 + $0x8] sm:$0xff]
        %v230 = vld [vmem:[#allocation2 + $0x10] sm:$0xff]
        %v231 = vld [vmem:[#allocation2 + $0x18] sm:$0xff]
        %v232 = vld [vmem:[#allocation2 + $0x20] sm:$0xff]
        %v233 = vld [vmem:[#allocation2 + $0x28] sm:$0xff]
        %v234 = vld [vmem:[#allocation2 + $0x30] sm:$0xff]
        %v235 = vld [vmem:[#allocation2 + $0x38] sm:$0xff]
        %v236 = vld [vmem:[#allocation2 + $0x40] sm:$0xff]
        %v237 = vld [vmem:[#allocation2 + $0x48] sm:$0xff]
        %v238 = vld [vmem:[#allocation2 + $0x50] sm:$0xff]
        %v239 = vld [vmem:[#allocation2 + $0x58] sm:$0xff]
        %v240 = vld [vmem:[#allocation2 + $0x60] sm:$0xff]
        %v241 = vld [vmem:[#allocation2 + $0x68] sm:$0xff]
        %v242 = vld [vmem:[#allocation2 + $0x70] sm:$0xff]
        %v243 = vld [vmem:[#allocation2 + $0x78] sm:$0xff]
        %v244 = vld [vmem:[%s1] sm:$0x3]
        %v261 = vunpack.c.l.b16 %v212
        %v262 = vunpack.c.l.b16 %v213
        %v263 = vunpack.c.l.b16 %v214
        %v264 = vunpack.c.l.b16 %v215
        %v265 = vunpack.c.l.b16 %v216
        %v266 = vunpack.c.l.b16 %v217
        %v267 = vunpack.c.l.b16 %v218
        %v268 = vunpack.c.l.b16 %v219
        %v269 = vunpack.c.l.b16 %v220
        %v270 = vunpack.c.l.b16 %v221
        %v271 = vunpack.c.l.b16 %v222
        %v272 = vunpack.c.l.b16 %v223
        %v273 = vunpack.c.l.b16 %v224
        %v274 = vunpack.c.l.b16 %v225
        %v275 = vunpack.c.l.b16 %v226
        %v276 = vunpack.c.l.b16 %v227
        %v277 = vpack.c.b16 %v262, %v261
        %v278 = vpack.c.b16 %v264, %v263
        %v279 = vpack.c.b16 %v266, %v265
        %v280 = vpack.c.b16 %v268, %v267
        %v281 = vpack.c.b16 %v270, %v269
        %v282 = vpack.c.b16 %v272, %v271
        %v283 = vpack.c.b16 %v274, %v273
        %v284 = vpack.c.b16 %v276, %v275
        %vm285 = vcmask 31744
        %v287 = vsel %vm285, %v277, 0
        %v290 = vsel %vm285, %v278, 0
        %v293 = vsel %vm285, %v279, 0
        %v296 = vsel %vm285, %v280, 0
        %v299 = vsel %vm285, %v281, 0
        %v302 = vsel %vm285, %v282, 0
        %v305 = vsel %vm285, %v283, 0
        %v308 = vsel %vm285, %v284, 0
        %vm310 = vcmask 1041408
        %v312 = vsel %vm310, %v244, 0
        %314 = vmatprep.subr.bf16.mxu0 0
        %315 = vmatpush1.bf16.msra.mxu0 %v312
        %316 = vmatprep.subr.bf16.mxu0 0
        %317 = vmatpush1.bf16.msra.mxu0 0
        %318 = vmatprep.subr.bf16.mxu0 0
        %319 = vmatpush1.bf16.msra.mxu0 0
        %320 = vmatprep.subr.bf16.mxu0 0
        %321 = vmatpush1.bf16.msra.mxu0 0
        %322 = vmatprep.subr.bf16.mxu0 0
        %323 = vmatpush1.bf16.msra.mxu0 0
        %324 = vmatprep.subr.bf16.mxu0 0
        %325 = vmatpush1.bf16.msra.mxu0 0
        %326 = vmatprep.subr.bf16.mxu0 0
        %327 = vmatpush1.bf16.msra.mxu0 0
        %328 = vmatprep.subr.bf16.mxu0 0
        %329 = vmatpush1.bf16.msra.mxu0 0
        %330 = vmatprep.subr.bf16.mxu0 0
        %331 = vmatpush1.bf16.msra.mxu0 0
        %332 = vmatprep.subr.bf16.mxu0 0
        %333 = vmatpush1.bf16.msra.mxu0 0
        %334 = vmatprep.subr.bf16.mxu0 0
        %335 = vmatpush1.bf16.msra.mxu0 0
        %336 = vmatprep.subr.bf16.mxu0 0
        %337 = vmatpush1.bf16.msra.mxu0 0
        %338 = vmatprep.subr.bf16.mxu0 0
        %339 = vmatpush1.bf16.msra.mxu0 0
        %340 = vmatprep.subr.bf16.mxu0 0
        %341 = vmatpush1.bf16.msra.mxu0 0
        %342 = vmatprep.subr.bf16.mxu0 0
        %343 = vmatpush1.bf16.msra.mxu0 0
        %344 = vmatprep.subr.bf16.mxu0 0
        %345 = vmatpush1.bf16.msra.mxu0 0
        %346 = vmatprep.mubr.bf16.mxu0 0
        %347 = vmatmul.mubr.bf16.gmra.mrb[0].mxu0 %v287
        %v348 = vpop.f32.mrb[0].mxu0
        %v349 = vadd.f32 0.0, %v348
        %v350 = vpop.f32.mrb[0].mxu0
        %v351 = vpop.f32.mrb[0].mxu0
        %v352 = vadd.f32 0.0, %v351
        %v353 = vpop.f32.mrb[0].mxu0
        %354 = vmatprep.mubr.bf16.mxu0 0
        %355 = vmatmul.mubr.bf16.gmra.mrb[0].mxu0 %v290
        %v356 = vpop.f32.mrb[0].mxu0
        %v357 = vadd.f32 0.0, %v356
        %v358 = vpop.f32.mrb[0].mxu0
        %v359 = vpop.f32.mrb[0].mxu0
        %v360 = vadd.f32 0.0, %v359
        %v361 = vpop.f32.mrb[0].mxu0
        %362 = vmatprep.mubr.bf16.mxu0 0
        %363 = vmatmul.mubr.bf16.gmra.mrb[0].mxu0 %v293
        %v364 = vpop.f32.mrb[0].mxu0
        %v365 = vadd.f32 0.0, %v364
        %v366 = vpop.f32.mrb[0].mxu0
        %v367 = vpop.f32.mrb[0].mxu0
        %v368 = vadd.f32 0.0, %v367
        %v369 = vpop.f32.mrb[0].mxu0
        %370 = vmatprep.mubr.bf16.mxu0 0
        %371 = vmatmul.mubr.bf16.gmra.mrb[0].mxu0 %v296
        %v372 = vpop.f32.mrb[0].mxu0
        %v373 = vadd.f32 0.0, %v372
        %v374 = vpop.f32.mrb[0].mxu0
        %v375 = vpop.f32.mrb[0].mxu0
        %v376 = vadd.f32 0.0, %v375
        %v377 = vpop.f32.mrb[0].mxu0
        %378 = vmatprep.mubr.bf16.mxu0 0
        %379 = vmatmul.mubr.bf16.gmra.mrb[0].mxu0 %v299
        %v380 = vpop.f32.mrb[0].mxu0
        %v381 = vadd.f32 0.0, %v380
        %v382 = vpop.f32.mrb[0].mxu0
        %v383 = vpop.f32.mrb[0].mxu0
        %v384 = vadd.f32 0.0, %v383
        %v385 = vpop.f32.mrb[0].mxu0
        %386 = vmatprep.mubr.bf16.mxu0 0
        %387 = vmatmul.mubr.bf16.gmra.mrb[0].mxu0 %v302
        %v388 = vpop.f32.mrb[0].mxu0
        %v389 = vadd.f32 0.0, %v388
        %v390 = vpop.f32.mrb[0].mxu0
        %v391 = vpop.f32.mrb[0].mxu0
        %v392 = vadd.f32 0.0, %v391
        %v393 = vpop.f32.mrb[0].mxu0
        %394 = vmatprep.mubr.bf16.mxu0 0
        %395 = vmatmul.mubr.bf16.gmra.mrb[0].mxu0 %v305
        %v396 = vpop.f32.mrb[0].mxu0
        %v397 = vadd.f32 0.0, %v396
        %v398 = vpop.f32.mrb[0].mxu0
        %v399 = vpop.f32.mrb[0].mxu0
        %v400 = vadd.f32 0.0, %v399
        %v401 = vpop.f32.mrb[0].mxu0
        %402 = vmatprep.mubr.bf16.mxu0 0
        %403 = vmatmul.mubr.bf16.gmra.mrb[0].mxu0 %v308
        %v404 = vpop.f32.mrb[0].mxu0
        %v405 = vadd.f32 0.0, %v404
        %v406 = vpop.f32.mrb[0].mxu0
        %v407 = vpop.f32.mrb[0].mxu0
        %v408 = vadd.f32 0.0, %v407
        %v409 = vpop.f32.mrb[0].mxu0
        %410 = vdwg.mxu0
        %v411 = vadd.f32 %v228, %v349
        %v412 = vadd.f32 %v229, %v352
        %v413 = vadd.f32 %v230, %v357
        %v414 = vadd.f32 %v231, %v360
        %v415 = vadd.f32 %v232, %v365
        %v416 = vadd.f32 %v233, %v368
        %v417 = vadd.f32 %v234, %v373
        %v418 = vadd.f32 %v235, %v376
        %v419 = vadd.f32 %v236, %v381
        %v420 = vadd.f32 %v237, %v384
        %v421 = vadd.f32 %v238, %v389
        %v422 = vadd.f32 %v239, %v392
        %v423 = vadd.f32 %v240, %v397
        %v424 = vadd.f32 %v241, %v400
        %v425 = vadd.f32 %v242, %v405
        %v426 = vadd.f32 %v243, %v408
        %427 = vst [vmem:[#allocation2] sm:$0xff] %v411
        %428 = vst [vmem:[#allocation2 + $0x8] sm:$0xff] %v412
        %429 = vst [vmem:[#allocation2 + $0x10] sm:$0xff] %v413
        %430 = vst [vmem:[#allocation2 + $0x18] sm:$0xff] %v414
        %431 = vst [vmem:[#allocation2 + $0x20] sm:$0xff] %v415
        %432 = vst [vmem:[#allocation2 + $0x28] sm:$0xff] %v416
        %433 = vst [vmem:[#allocation2 + $0x30] sm:$0xff] %v417
        %434 = vst [vmem:[#allocation2 + $0x38] sm:$0xff] %v418
        %435 = vst [vmem:[#allocation2 + $0x40] sm:$0xff] %v419
        %436 = vst [vmem:[#allocation2 + $0x48] sm:$0xff] %v420
        %437 = vst [vmem:[#allocation2 + $0x50] sm:$0xff] %v421
        %438 = vst [vmem:[#allocation2 + $0x58] sm:$0xff] %v422
        %439 = vst [vmem:[#allocation2 + $0x60] sm:$0xff] %v423
        %440 = vst [vmem:[#allocation2 + $0x68] sm:$0xff] %v424
        %441 = vst [vmem:[#allocation2 + $0x70] sm:$0xff] %v425
        %442 = vst [vmem:[#allocation2 + $0x78] sm:$0xff] %v426
        %v443 = vld [vmem:[%s211] sm:$0xf]
        %v444 = vld [vmem:[%s211 + $0x4] sm:$0xf]
        %v445 = vld [vmem:[%s211 + $0x8] sm:$0x1]
        %v446 = vld [vmem:[%s211 + $0xc] sm:$0xf]
        %v447 = vld [vmem:[%s211 + $0x10] sm:$0xf]
        %v448 = vld [vmem:[%s211 + $0x14] sm:$0x1]
        %v449 = vld [vmem:[%s211 + $0x18] sm:$0xf]
        %v450 = vld [vmem:[%s211 + $0x1c] sm:$0xf]
        %v451 = vld [vmem:[%s211 + $0x20] sm:$0x1]
        %v452 = vld [vmem:[%s211 + $0x24] sm:$0xf]
        %v453 = vld [vmem:[%s211 + $0x28] sm:$0xf]
        %v454 = vld [vmem:[%s211 + $0x2c] sm:$0x1]
        %v455 = vld [vmem:[%s211 + $0x30] sm:$0xf]
        %v456 = vld [vmem:[%s211 + $0x34] sm:$0xf]
        %v457 = vld [vmem:[%s211 + $0x38] sm:$0x1]
        %v458 = vld [vmem:[%s211 + $0x3c] sm:$0xf]
        %v459 = vld [vmem:[%s211 + $0x40] sm:$0xf]
        %v460 = vld [vmem:[%s211 + $0x44] sm:$0x1]
        %v461 = vld [vmem:[%s211 + $0x48] sm:$0xf]
        %v462 = vld [vmem:[%s211 + $0x4c] sm:$0xf]
        %v463 = vld [vmem:[%s211 + $0x50] sm:$0x1]
        %v464 = vld [vmem:[%s211 + $0x54] sm:$0xf]
        %v465 = vld [vmem:[%s211 + $0x58] sm:$0xf]
        %v466 = vld [vmem:[%s211 + $0x5c] sm:$0x1]
        %v467 = vld [vmem:[#allocation2] sm:$0xff]
        %v468 = vld [vmem:[#allocation2 + $0x8] sm:$0xff]
        %v469 = vld [vmem:[#allocation2 + $0x10] sm:$0xff]
        %v470 = vld [vmem:[#allocation2 + $0x18] sm:$0xff]
        %v471 = vld [vmem:[#allocation2 + $0x20] sm:$0xff]
        %v472 = vld [vmem:[#allocation2 + $0x28] sm:$0xff]
        %v473 = vld [vmem:[#allocation2 + $0x30] sm:$0xff]
        %v474 = vld [vmem:[#allocation2 + $0x38] sm:$0xff]
        %v475 = vld [vmem:[#allocation2 + $0x40] sm:$0xff]
        %v476 = vld [vmem:[#allocation2 + $0x48] sm:$0xff]
        %v477 = vld [vmem:[#allocation2 + $0x50] sm:$0xff]
        %v478 = vld [vmem:[#allocation2 + $0x58] sm:$0xff]
        %v479 = vld [vmem:[#allocation2 + $0x60] sm:$0xff]
        %v480 = vld [vmem:[#allocation2 + $0x68] sm:$0xff]
        %v481 = vld [vmem:[#allocation2 + $0x70] sm:$0xff]
        %v482 = vld [vmem:[#allocation2 + $0x78] sm:$0xff]
        %vm483 = vsmask.f32 3328
        %vm484 = vsmask.f32 7440
        %vm485 = vmor %vm483, %vm484
        %v487 = vshrl.u32 %v443, 16
        %v489 = vrot.slane %v487, 4
        %v490 = vshll.u32 %v443, 16
        %v492 = vrot.slane %v490, 5
        %v493 = vor.u32 %v489, %v492
        %v494 = vrot.slane %v493, 4
        %v496 = vshll.u32 %v444, 16
        %v498 = vrot.slane %v496, 5
        %v499 = vsel %vm485, %v494, %v498
        %v500 = vshrl.u32 %v444, 16
        %v502 = vrot.slane %v500, 4
        %v503 = vor.u32 %v502, %v498
        %v504 = vrot.slane %v503, 4
        %v506 = vshll.u32 %v445, 16
        %v508 = vrot.slane %v506, 5
        %v509 = vsel %vm485, %v504, %v508
        %v511 = vshrl.u32 %v446, 16
        %v513 = vrot.slane %v511, 4
        %v514 = vshll.u32 %v446, 16
        %v516 = vrot.slane %v514, 5
        %v517 = vor.u32 %v513, %v516
        %v518 = vrot.slane %v517, 4
        %v520 = vshll.u32 %v447, 16
        %v522 = vrot.slane %v520, 5
        %v523 = vsel %vm485, %v518, %v522
        %v524 = vshrl.u32 %v447, 16
        %v526 = vrot.slane %v524, 4
        %v527 = vor.u32 %v526, %v522
        %v528 = vrot.slane %v527, 4
        %v530 = vshll.u32 %v448, 16
        %v532 = vrot.slane %v530, 5
        %v533 = vsel %vm485, %v528, %v532
        %v535 = vshrl.u32 %v449, 16
        %v537 = vrot.slane %v535, 4
        %v538 = vshll.u32 %v449, 16
        %v540 = vrot.slane %v538, 5
        %v541 = vor.u32 %v537, %v540
        %v542 = vrot.slane %v541, 4
        %v544 = vshll.u32 %v450, 16
        %v546 = vrot.slane %v544, 5
        %v547 = vsel %vm485, %v542, %v546
        %v548 = vshrl.u32 %v450, 16
        %v550 = vrot.slane %v548, 4
        %v551 = vor.u32 %v550, %v546
        %v552 = vrot.slane %v551, 4
        %v554 = vshll.u32 %v451, 16
        %v556 = vrot.slane %v554, 5
        %v557 = vsel %vm485, %v552, %v556
        %v559 = vshrl.u32 %v452, 16
        %v561 = vrot.slane %v559, 4
        %v562 = vshll.u32 %v452, 16
        %v564 = vrot.slane %v562, 5
        %v565 = vor.u32 %v561, %v564
        %v566 = vrot.slane %v565, 4
        %v568 = vshll.u32 %v453, 16
        %v570 = vrot.slane %v568, 5
        %v571 = vsel %vm485, %v566, %v570
        %v572 = vshrl.u32 %v453, 16
        %v574 = vrot.slane %v572, 4
        %v575 = vor.u32 %v574, %v570
        %v576 = vrot.slane %v575, 4
        %v578 = vshll.u32 %v454, 16
        %v580 = vrot.slane %v578, 5
        %v581 = vsel %vm485, %v576, %v580
        %v583 = vshrl.u32 %v455, 16
        %v585 = vrot.slane %v583, 4
        %v586 = vshll.u32 %v455, 16
        %v588 = vrot.slane %v586, 5
        %v589 = vor.u32 %v585, %v588
        %v590 = vrot.slane %v589, 4
        %v592 = vshll.u32 %v456, 16
        %v594 = vrot.slane %v592, 5
        %v595 = vsel %vm485, %v590, %v594
        %v596 = vshrl.u32 %v456, 16
        %v598 = vrot.slane %v596, 4
        %v599 = vor.u32 %v598, %v594
        %v600 = vrot.slane %v599, 4
        %v602 = vshll.u32 %v457, 16
        %v604 = vrot.slane %v602, 5
        %v605 = vsel %vm485, %v600, %v604
        %v607 = vshrl.u32 %v458, 16
        %v609 = vrot.slane %v607, 4
        %v610 = vshll.u32 %v458, 16
        %v612 = vrot.slane %v610, 5
        %v613 = vor.u32 %v609, %v612
        %v614 = vrot.slane %v613, 4
        %v616 = vshll.u32 %v459, 16
        %v618 = vrot.slane %v616, 5
        %v619 = vsel %vm485, %v614, %v618
        %v620 = vshrl.u32 %v459, 16
        %v622 = vrot.slane %v620, 4
        %v623 = vor.u32 %v622, %v618
        %v624 = vrot.slane %v623, 4
        %v626 = vshll.u32 %v460, 16
        %v628 = vrot.slane %v626, 5
        %v629 = vsel %vm485, %v624, %v628
        %v631 = vshrl.u32 %v461, 16
        %v633 = vrot.slane %v631, 4
        %v634 = vshll.u32 %v461, 16
        %v636 = vrot.slane %v634, 5
        %v637 = vor.u32 %v633, %v636
        %v638 = vrot.slane %v637, 4
        %v640 = vshll.u32 %v462, 16
        %v642 = vrot.slane %v640, 5
        %v643 = vsel %vm485, %v638, %v642
        %v644 = vshrl.u32 %v462, 16
        %v646 = vrot.slane %v644, 4
        %v647 = vor.u32 %v646, %v642
        %v648 = vrot.slane %v647, 4
        %v650 = vshll.u32 %v463, 16
        %v652 = vrot.slane %v650, 5
        %v653 = vsel %vm485, %v648, %v652
        %v655 = vshrl.u32 %v464, 16
        %v657 = vrot.slane %v655, 4
        %v658 = vshll.u32 %v464, 16
        %v660 = vrot.slane %v658, 5
        %v661 = vor.u32 %v657, %v660
        %v662 = vrot.slane %v661, 4
        %v664 = vshll.u32 %v465, 16
        %v666 = vrot.slane %v664, 5
        %v667 = vsel %vm485, %v662, %v666
        %v668 = vshrl.u32 %v465, 16
        %v670 = vrot.slane %v668, 4
        %v671 = vor.u32 %v670, %v666
        %v672 = vrot.slane %v671, 4
        %v674 = vshll.u32 %v466, 16
        %v676 = vrot.slane %v674, 5
        %v677 = vsel %vm485, %v672, %v676
        %s678 = scalar_lea.vmem %s1, 2
        %v679 = vld [vmem:[%s678] sm:$0x3]
        %v680 = vunpack.c.l.b16 %v499
        %v681 = vunpack.c.l.b16 %v509
        %v682 = vunpack.c.l.b16 %v523
        %v683 = vunpack.c.l.b16 %v533
        %v684 = vunpack.c.l.b16 %v547
        %v685 = vunpack.c.l.b16 %v557
        %v686 = vunpack.c.l.b16 %v571
        %v687 = vunpack.c.l.b16 %v581
        %v688 = vunpack.c.l.b16 %v595
        %v689 = vunpack.c.l.b16 %v605
        %v690 = vunpack.c.l.b16 %v619
        %v691 = vunpack.c.l.b16 %v629
        %v692 = vunpack.c.l.b16 %v643
        %v693 = vunpack.c.l.b16 %v653
        %v694 = vunpack.c.l.b16 %v667
        %v695 = vunpack.c.l.b16 %v677
        %v696 = vpack.c.b16 %v681, %v680
        %v697 = vpack.c.b16 %v683, %v682
        %v698 = vpack.c.b16 %v685, %v684
        %v699 = vpack.c.b16 %v687, %v686
        %v700 = vpack.c.b16 %v689, %v688
        %v701 = vpack.c.b16 %v691, %v690
        %v702 = vpack.c.b16 %v693, %v692
        %v703 = vpack.c.b16 %v695, %v694
        %v705 = vsel %vm285, %v696, 0
        %v708 = vsel %vm285, %v697, 0
        %v711 = vsel %vm285, %v698, 0
        %v714 = vsel %vm285, %v699, 0
        %v717 = vsel %vm285, %v700, 0
        %v720 = vsel %vm285, %v701, 0
        %v723 = vsel %vm285, %v702, 0
        %v726 = vsel %vm285, %v703, 0
        %v729 = vsel %vm310, %v679, 0
        %731 = vmatprep.subr.bf16.mxu0 0
        %732 = vmatpush1.bf16.msra.mxu0 %v729
        %733 = vmatprep.subr.bf16.mxu0 0
        %734 = vmatpush1.bf16.msra.mxu0 0
        %735 = vmatprep.subr.bf16.mxu0 0
        %736 = vmatpush1.bf16.msra.mxu0 0
        %737 = vmatprep.subr.bf16.mxu0 0
        %738 = vmatpush1.bf16.msra.mxu0 0
        %739 = vmatprep.subr.bf16.mxu0 0
        %740 = vmatpush1.bf16.msra.mxu0 0
        %741 = vmatprep.subr.bf16.mxu0 0
        %742 = vmatpush1.bf16.msra.mxu0 0
        %743 = vmatprep.subr.bf16.mxu0 0
        %744 = vmatpush1.bf16.msra.mxu0 0
        %745 = vmatprep.subr.bf16.mxu0 0
        %746 = vmatpush1.bf16.msra.mxu0 0
        %747 = vmatprep.subr.bf16.mxu0 0
        %748 = vmatpush1.bf16.msra.mxu0 0
        %749 = vmatprep.subr.bf16.mxu0 0
        %750 = vmatpush1.bf16.msra.mxu0 0
        %751 = vmatprep.subr.bf16.mxu0 0
        %752 = vmatpush1.bf16.msra.mxu0 0
        %753 = vmatprep.subr.bf16.mxu0 0
        %754 = vmatpush1.bf16.msra.mxu0 0
        %755 = vmatprep.subr.bf16.mxu0 0
        %756 = vmatpush1.bf16.msra.mxu0 0
        %757 = vmatprep.subr.bf16.mxu0 0
        %758 = vmatpush1.bf16.msra.mxu0 0
        %759 = vmatprep.subr.bf16.mxu0 0
        %760 = vmatpush1.bf16.msra.mxu0 0
        %761 = vmatprep.subr.bf16.mxu0 0
        %762 = vmatpush1.bf16.msra.mxu0 0
        %763 = vmatprep.mubr.bf16.mxu0 0
        %764 = vmatmul.mubr.bf16.gmra.mrb[0].mxu0 %v705
        %v765 = vpop.f32.mrb[0].mxu0
        %v766 = vadd.f32 0.0, %v765
        %v767 = vpop.f32.mrb[0].mxu0
        %v768 = vpop.f32.mrb[0].mxu0
        %v769 = vadd.f32 0.0, %v768
        %v770 = vpop.f32.mrb[0].mxu0
        %771 = vmatprep.mubr.bf16.mxu0 0
        %772 = vmatmul.mubr.bf16.gmra.mrb[0].mxu0 %v708
        %v773 = vpop.f32.mrb[0].mxu0
        %v774 = vadd.f32 0.0, %v773
        %v775 = vpop.f32.mrb[0].mxu0
        %v776 = vpop.f32.mrb[0].mxu0
        %v777 = vadd.f32 0.0, %v776
        %v778 = vpop.f32.mrb[0].mxu0
        %779 = vmatprep.mubr.bf16.mxu0 0
        %780 = vmatmul.mubr.bf16.gmra.mrb[0].mxu0 %v711
        %v781 = vpop.f32.mrb[0].mxu0
        %v782 = vadd.f32 0.0, %v781
        %v783 = vpop.f32.mrb[0].mxu0
        %v784 = vpop.f32.mrb[0].mxu0
        %v785 = vadd.f32 0.0, %v784
        %v786 = vpop.f32.mrb[0].mxu0
        %787 = vmatprep.mubr.bf16.mxu0 0
        %788 = vmatmul.mubr.bf16.gmra.mrb[0].mxu0 %v714
        %v789 = vpop.f32.mrb[0].mxu0
        %v790 = vadd.f32 0.0, %v789
        %v791 = vpop.f32.mrb[0].mxu0
        %v792 = vpop.f32.mrb[0].mxu0
        %v793 = vadd.f32 0.0, %v792
        %v794 = vpop.f32.mrb[0].mxu0
        %795 = vmatprep.mubr.bf16.mxu0 0
        %796 = vmatmul.mubr.bf16.gmra.mrb[0].mxu0 %v717
        %v797 = vpop.f32.mrb[0].mxu0
        %v798 = vadd.f32 0.0, %v797
        %v799 = vpop.f32.mrb[0].mxu0
        %v800 = vpop.f32.mrb[0].mxu0
        %v801 = vadd.f32 0.0, %v800
        %v802 = vpop.f32.mrb[0].mxu0
        %803 = vmatprep.mubr.bf16.mxu0 0
        %804 = vmatmul.mubr.bf16.gmra.mrb[0].mxu0 %v720
        %v805 = vpop.f32.mrb[0].mxu0
        %v806 = vadd.f32 0.0, %v805
        %v807 = vpop.f32.mrb[0].mxu0
        %v808 = vpop.f32.mrb[0].mxu0
        %v809 = vadd.f32 0.0, %v808
        %v810 = vpop.f32.mrb[0].mxu0
        %811 = vmatprep.mubr.bf16.mxu0 0
        %812 = vmatmul.mubr.bf16.gmra.mrb[0].mxu0 %v723
        %v813 = vpop.f32.mrb[0].mxu0
        %v814 = vadd.f32 0.0, %v813
        %v815 = vpop.f32.mrb[0].mxu0
        %v816 = vpop.f32.mrb[0].mxu0
        %v817 = vadd.f32 0.0, %v816
        %v818 = vpop.f32.mrb[0].mxu0
        %819 = vmatprep.mubr.bf16.mxu0 0
        %820 = vmatmul.mubr.bf16.gmra.mrb[0].mxu0 %v726
        %v821 = vpop.f32.mrb[0].mxu0
        %v822 = vadd.f32 0.0, %v821
        %v823 = vpop.f32.mrb[0].mxu0
        %v824 = vpop.f32.mrb[0].mxu0
        %v825 = vadd.f32 0.0, %v824
        %v826 = vpop.f32.mrb[0].mxu0
        %827 = vdwg.mxu0
        %v828 = vadd.f32 %v467, %v766
        %v829 = vadd.f32 %v468, %v769
        %v830 = vadd.f32 %v469, %v774
        %v831 = vadd.f32 %v470, %v777
        %v832 = vadd.f32 %v471, %v782
        %v833 = vadd.f32 %v472, %v785
        %v834 = vadd.f32 %v473, %v790
        %v835 = vadd.f32 %v474, %v793
        %v836 = vadd.f32 %v475, %v798
        %v837 = vadd.f32 %v476, %v801
        %v838 = vadd.f32 %v477, %v806
        %v839 = vadd.f32 %v478, %v809
        %v840 = vadd.f32 %v479, %v814
        %v841 = vadd.f32 %v480, %v817
        %v842 = vadd.f32 %v481, %v822
        %v843 = vadd.f32 %v482, %v825
        %844 = vst [vmem:[#allocation2] sm:$0xff] %v828
        %845 = vst [vmem:[#allocation2 + $0x8] sm:$0xff] %v829
        %846 = vst [vmem:[#allocation2 + $0x10] sm:$0xff] %v830
        %847 = vst [vmem:[#allocation2 + $0x18] sm:$0xff] %v831
        %848 = vst [vmem:[#allocation2 + $0x20] sm:$0xff] %v832
        %849 = vst [vmem:[#allocation2 + $0x28] sm:$0xff] %v833
        %850 = vst [vmem:[#allocation2 + $0x30] sm:$0xff] %v834
        %851 = vst [vmem:[#allocation2 + $0x38] sm:$0xff] %v835
        %852 = vst [vmem:[#allocation2 + $0x40] sm:$0xff] %v836
        %853 = vst [vmem:[#allocation2 + $0x48] sm:$0xff] %v837
        %854 = vst [vmem:[#allocation2 + $0x50] sm:$0xff] %v838
        %855 = vst [vmem:[#allocation2 + $0x58] sm:$0xff] %v839
        %856 = vst [vmem:[#allocation2 + $0x60] sm:$0xff] %v840
        %857 = vst [vmem:[#allocation2 + $0x68] sm:$0xff] %v841
        %858 = vst [vmem:[#allocation2 + $0x70] sm:$0xff] %v842
        %859 = vst [vmem:[#allocation2 + $0x78] sm:$0xff] %v843
        %v860 = vld [vmem:[%s211] sm:$0xe]
        %v861 = vld [vmem:[%s211 + $0x4] sm:$0xf]
        %v862 = vld [vmem:[%s211 + $0x8] sm:$0x1]
        %v863 = vld [vmem:[%s211 + $0xc] sm:$0xe]
        %v864 = vld [vmem:[%s211 + $0x10] sm:$0xf]
        %v865 = vld [vmem:[%s211 + $0x14] sm:$0x1]
        %v866 = vld [vmem:[%s211 + $0x18] sm:$0xe]
        %v867 = vld [vmem:[%s211 + $0x1c] sm:$0xf]
        %v868 = vld [vmem:[%s211 + $0x20] sm:$0x1]
        %v869 = vld [vmem:[%s211 + $0x24] sm:$0xe]
        %v870 = vld [vmem:[%s211 + $0x28] sm:$0xf]
        %v871 = vld [vmem:[%s211 + $0x2c] sm:$0x1]
        %v872 = vld [vmem:[%s211 + $0x30] sm:$0xe]
        %v873 = vld [vmem:[%s211 + $0x34] sm:$0xf]
        %v874 = vld [vmem:[%s211 + $0x38] sm:$0x1]
        %v875 = vld [vmem:[%s211 + $0x3c] sm:$0xe]
        %v876 = vld [vmem:[%s211 + $0x40] sm:$0xf]
        %v877 = vld [vmem:[%s211 + $0x44] sm:$0x1]
        %v878 = vld [vmem:[%s211 + $0x48] sm:$0xe]
        %v879 = vld [vmem:[%s211 + $0x4c] sm:$0xf]
        %v880 = vld [vmem:[%s211 + $0x50] sm:$0x1]
        %v881 = vld [vmem:[%s211 + $0x54] sm:$0xe]
        %v882 = vld [vmem:[%s211 + $0x58] sm:$0xf]
        %v883 = vld [vmem:[%s211 + $0x5c] sm:$0x1]
        %v884 = vld [vmem:[#allocation2] sm:$0xff]
        %v885 = vld [vmem:[#allocation2 + $0x8] sm:$0xff]
        %v886 = vld [vmem:[#allocation2 + $0x10] sm:$0xff]
        %v887 = vld [vmem:[#allocation2 + $0x18] sm:$0xff]
        %v888 = vld [vmem:[#allocation2 + $0x20] sm:$0xff]
        %v889 = vld [vmem:[#allocation2 + $0x28] sm:$0xff]
        %v890 = vld [vmem:[#allocation2 + $0x30] sm:$0xff]
        %v891 = vld [vmem:[#allocation2 + $0x38] sm:$0xff]
        %v892 = vld [vmem:[#allocation2 + $0x40] sm:$0xff]
        %v893 = vld [vmem:[#allocation2 + $0x48] sm:$0xff]
        %v894 = vld [vmem:[#allocation2 + $0x50] sm:$0xff]
        %v895 = vld [vmem:[#allocation2 + $0x58] sm:$0xff]
        %v896 = vld [vmem:[#allocation2 + $0x60] sm:$0xff]
        %v897 = vld [vmem:[#allocation2 + $0x68] sm:$0xff]
        %v898 = vld [vmem:[#allocation2 + $0x70] sm:$0xff]
        %v899 = vld [vmem:[#allocation2 + $0x78] sm:$0xff]
        %vm924 = vcmask 1042432
        %vm925 = vcmask 1046532
        %vm926 = vmor %vm924, %vm925
        %v927 = vrot.slane %v860, 5
        %v928 = vrot.slane %v927, 4
        %v929 = vrot.slane %v861, 5
        %v930 = vsel %vm926, %v928, %v929
        %v931 = vrot.slane %v929, 4
        %v932 = vrot.slane %v862, 5
        %v933 = vsel %vm926, %v931, %v932
        %v934 = vrot.slane %v863, 5
        %v935 = vrot.slane %v934, 4
        %v936 = vrot.slane %v864, 5
        %v937 = vsel %vm926, %v935, %v936
        %v938 = vrot.slane %v936, 4
        %v939 = vrot.slane %v865, 5
        %v940 = vsel %vm926, %v938, %v939
        %v941 = vrot.slane %v866, 5
        %v942 = vrot.slane %v941, 4
        %v943 = vrot.slane %v867, 5
        %v944 = vsel %vm926, %v942, %v943
        %v945 = vrot.slane %v943, 4
        %v946 = vrot.slane %v868, 5
        %v947 = vsel %vm926, %v945, %v946
        %v948 = vrot.slane %v869, 5
        %v949 = vrot.slane %v948, 4
        %v950 = vrot.slane %v870, 5
        %v951 = vsel %vm926, %v949, %v950
        %v952 = vrot.slane %v950, 4
        %v953 = vrot.slane %v871, 5
        %v954 = vsel %vm926, %v952, %v953
        %v955 = vrot.slane %v872, 5
        %v956 = vrot.slane %v955, 4
        %v957 = vrot.slane %v873, 5
        %v958 = vsel %vm926, %v956, %v957
        %v959 = vrot.slane %v957, 4
        %v960 = vrot.slane %v874, 5
        %v961 = vsel %vm926, %v959, %v960
        %v962 = vrot.slane %v875, 5
        %v963 = vrot.slane %v962, 4
        %v964 = vrot.slane %v876, 5
        %v965 = vsel %vm926, %v963, %v964
        %v966 = vrot.slane %v964, 4
        %v967 = vrot.slane %v877, 5
        %v968 = vsel %vm926, %v966, %v967
        %v969 = vrot.slane %v878, 5
        %v970 = vrot.slane %v969, 4
        %v971 = vrot.slane %v879, 5
        %v972 = vsel %vm926, %v970, %v971
        %v973 = vrot.slane %v971, 4
        %v974 = vrot.slane %v880, 5
        %v975 = vsel %vm926, %v973, %v974
        %v976 = vrot.slane %v881, 5
        %v977 = vrot.slane %v976, 4
        %v978 = vrot.slane %v882, 5
        %v979 = vsel %vm926, %v977, %v978
        %v980 = vrot.slane %v978, 4
        %v981 = vrot.slane %v883, 5
        %v982 = vsel %vm926, %v980, %v981
        %s983 = scalar_lea.vmem %s1, 4
        %v984 = vld [vmem:[%s983] sm:$0x3]
        %v985 = vunpack.c.l.b16 %v930
        %v986 = vunpack.c.l.b16 %v933
        %v987 = vunpack.c.l.b16 %v937
        %v988 = vunpack.c.l.b16 %v940
        %v989 = vunpack.c.l.b16 %v944
        %v990 = vunpack.c.l.b16 %v947
        %v991 = vunpack.c.l.b16 %v951
        %v992 = vunpack.c.l.b16 %v954
        %v993 = vunpack.c.l.b16 %v958
        %v994 = vunpack.c.l.b16 %v961
        %v995 = vunpack.c.l.b16 %v965
        %v996 = vunpack.c.l.b16 %v968
        %v997 = vunpack.c.l.b16 %v972
        %v998 = vunpack.c.l.b16 %v975
        %v999 = vunpack.c.l.b16 %v979
        %v1000 = vunpack.c.l.b16 %v982
        %v1001 = vpack.c.b16 %v986, %v985
        %v1002 = vpack.c.b16 %v988, %v987
        %v1003 = vpack.c.b16 %v990, %v989
        %v1004 = vpack.c.b16 %v992, %v991
        %v1005 = vpack.c.b16 %v994, %v993
        %v1006 = vpack.c.b16 %v996, %v995
        %v1007 = vpack.c.b16 %v998, %v997
        %v1008 = vpack.c.b16 %v1000, %v999
        %v1010 = vsel %vm285, %v1001, 0
        %v1013 = vsel %vm285, %v1002, 0
        %v1016 = vsel %vm285, %v1003, 0
        %v1019 = vsel %vm285, %v1004, 0
        %v1022 = vsel %vm285, %v1005, 0
        %v1025 = vsel %vm285, %v1006, 0
        %v1028 = vsel %vm285, %v1007, 0
        %v1031 = vsel %vm285, %v1008, 0
        %v1034 = vsel %vm310, %v984, 0
        %1036 = vmatprep.subr.bf16.mxu0 0
        %1037 = vmatpush1.bf16.msra.mxu0 %v1034
        %1038 = vmatprep.subr.bf16.mxu0 0
        %1039 = vmatpush1.bf16.msra.mxu0 0
        %1040 = vmatprep.subr.bf16.mxu0 0
        %1041 = vmatpush1.bf16.msra.mxu0 0
        %1042 = vmatprep.subr.bf16.mxu0 0
        %1043 = vmatpush1.bf16.msra.mxu0 0
        %1044 = vmatprep.subr.bf16.mxu0 0
        %1045 = vmatpush1.bf16.msra.mxu0 0
        %1046 = vmatprep.subr.bf16.mxu0 0
        %1047 = vmatpush1.bf16.msra.mxu0 0
        %1048 = vmatprep.subr.bf16.mxu0 0
        %1049 = vmatpush1.bf16.msra.mxu0 0
        %1050 = vmatprep.subr.bf16.mxu0 0
        %1051 = vmatpush1.bf16.msra.mxu0 0
        %1052 = vmatprep.subr.bf16.mxu0 0
        %1053 = vmatpush1.bf16.msra.mxu0 0
        %1054 = vmatprep.subr.bf16.mxu0 0
        %1055 = vmatpush1.bf16.msra.mxu0 0
        %1056 = vmatprep.subr.bf16.mxu0 0
        %1057 = vmatpush1.bf16.msra.mxu0 0
        %1058 = vmatprep.subr.bf16.mxu0 0
        %1059 = vmatpush1.bf16.msra.mxu0 0
        %1060 = vmatprep.subr.bf16.mxu0 0
        %1061 = vmatpush1.bf16.msra.mxu0 0
        %1062 = vmatprep.subr.bf16.mxu0 0
        %1063 = vmatpush1.bf16.msra.mxu0 0
        %1064 = vmatprep.subr.bf16.mxu0 0
        %1065 = vmatpush1.bf16.msra.mxu0 0
        %1066 = vmatprep.subr.bf16.mxu0 0
        %1067 = vmatpush1.bf16.msra.mxu0 0
        %1068 = vmatprep.mubr.bf16.mxu0 0
        %1069 = vmatmul.mubr.bf16.gmra.mrb[0].mxu0 %v1010
        %v1070 = vpop.f32.mrb[0].mxu0
        %v1071 = vadd.f32 0.0, %v1070
        %v1072 = vpop.f32.mrb[0].mxu0
        %v1073 = vpop.f32.mrb[0].mxu0
        %v1074 = vadd.f32 0.0, %v1073
        %v1075 = vpop.f32.mrb[0].mxu0
        %1076 = vmatprep.mubr.bf16.mxu0 0
        %1077 = vmatmul.mubr.bf16.gmra.mrb[0].mxu0 %v1013
        %v1078 = vpop.f32.mrb[0].mxu0
        %v1079 = vadd.f32 0.0, %v1078
        %v1080 = vpop.f32.mrb[0].mxu0
        %v1081 = vpop.f32.mrb[0].mxu0
        %v1082 = vadd.f32 0.0, %v1081
        %v1083 = vpop.f32.mrb[0].mxu0
        %1084 = vmatprep.mubr.bf16.mxu0 0
        %1085 = vmatmul.mubr.bf16.gmra.mrb[0].mxu0 %v1016
        %v1086 = vpop.f32.mrb[0].mxu0
        %v1087 = vadd.f32 0.0, %v1086
        %v1088 = vpop.f32.mrb[0].mxu0
        %v1089 = vpop.f32.mrb[0].mxu0
        %v1090 = vadd.f32 0.0, %v1089
        %v1091 = vpop.f32.mrb[0].mxu0
        %1092 = vmatprep.mubr.bf16.mxu0 0
        %1093 = vmatmul.mubr.bf16.gmra.mrb[0].mxu0 %v1019
        %v1094 = vpop.f32.mrb[0].mxu0
        %v1095 = vadd.f32 0.0, %v1094
        %v1096 = vpop.f32.mrb[0].mxu0
        %v1097 = vpop.f32.mrb[0].mxu0
        %v1098 = vadd.f32 0.0, %v1097
        %v1099 = vpop.f32.mrb[0].mxu0
        %1100 = vmatprep.mubr.bf16.mxu0 0
        %1101 = vmatmul.mubr.bf16.gmra.mrb[0].mxu0 %v1022
        %v1102 = vpop.f32.mrb[0].mxu0
        %v1103 = vadd.f32 0.0, %v1102
        %v1104 = vpop.f32.mrb[0].mxu0
        %v1105 = vpop.f32.mrb[0].mxu0
        %v1106 = vadd.f32 0.0, %v1105
        %v1107 = vpop.f32.mrb[0].mxu0
        %1108 = vmatprep.mubr.bf16.mxu0 0
        %1109 = vmatmul.mubr.bf16.gmra.mrb[0].mxu0 %v1025
        %v1110 = vpop.f32.mrb[0].mxu0
        %v1111 = vadd.f32 0.0, %v1110
        %v1112 = vpop.f32.mrb[0].mxu0
        %v1113 = vpop.f32.mrb[0].mxu0
        %v1114 = vadd.f32 0.0, %v1113
        %v1115 = vpop.f32.mrb[0].mxu0
        %1116 = vmatprep.mubr.bf16.mxu0 0
        %1117 = vmatmul.mubr.bf16.gmra.mrb[0].mxu0 %v1028
        %v1118 = vpop.f32.mrb[0].mxu0
        %v1119 = vadd.f32 0.0, %v1118
        %v1120 = vpop.f32.mrb[0].mxu0
        %v1121 = vpop.f32.mrb[0].mxu0
        %v1122 = vadd.f32 0.0, %v1121
        %v1123 = vpop.f32.mrb[0].mxu0
        %1124 = vmatprep.mubr.bf16.mxu0 0
        %1125 = vmatmul.mubr.bf16.gmra.mrb[0].mxu0 %v1031
        %v1126 = vpop.f32.mrb[0].mxu0
        %v1127 = vadd.f32 0.0, %v1126
        %v1128 = vpop.f32.mrb[0].mxu0
        %v1129 = vpop.f32.mrb[0].mxu0
        %v1130 = vadd.f32 0.0, %v1129
        %v1131 = vpop.f32.mrb[0].mxu0
        %1132 = vdwg.mxu0
        %v1133 = vadd.f32 %v884, %v1071
        %v1134 = vadd.f32 %v885, %v1074
        %v1135 = vadd.f32 %v886, %v1079
        %v1136 = vadd.f32 %v887, %v1082
        %v1137 = vadd.f32 %v888, %v1087
        %v1138 = vadd.f32 %v889, %v1090
        %v1139 = vadd.f32 %v890, %v1095
        %v1140 = vadd.f32 %v891, %v1098
        %v1141 = vadd.f32 %v892, %v1103
        %v1142 = vadd.f32 %v893, %v1106
        %v1143 = vadd.f32 %v894, %v1111
        %v1144 = vadd.f32 %v895, %v1114
        %v1145 = vadd.f32 %v896, %v1119
        %v1146 = vadd.f32 %v897, %v1122
        %v1147 = vadd.f32 %v898, %v1127
        %v1148 = vadd.f32 %v899, %v1130
        %1149 = vst [vmem:[#allocation2] sm:$0xff] %v1133
        %1150 = vst [vmem:[#allocation2 + $0x8] sm:$0xff] %v1134
        %1151 = vst [vmem:[#allocation2 + $0x10] sm:$0xff] %v1135
        %1152 = vst [vmem:[#allocation2 + $0x18] sm:$0xff] %v1136
        %1153 = vst [vmem:[#allocation2 + $0x20] sm:$0xff] %v1137
        %1154 = vst [vmem:[#allocation2 + $0x28] sm:$0xff] %v1138
        %1155 = vst [vmem:[#allocation2 + $0x30] sm:$0xff] %v1139
        %1156 = vst [vmem:[#allocation2 + $0x38] sm:$0xff] %v1140
        %1157 = vst [vmem:[#allocation2 + $0x40] sm:$0xff] %v1141
        %1158 = vst [vmem:[#allocation2 + $0x48] sm:$0xff] %v1142
        %1159 = vst [vmem:[#allocation2 + $0x50] sm:$0xff] %v1143
        %1160 = vst [vmem:[#allocation2 + $0x58] sm:$0xff] %v1144
        %1161 = vst [vmem:[#allocation2 + $0x60] sm:$0xff] %v1145
        %1162 = vst [vmem:[#allocation2 + $0x68] sm:$0xff] %v1146
        %1163 = vst [vmem:[#allocation2 + $0x70] sm:$0xff] %v1147
        %1164 = vst [vmem:[#allocation2 + $0x78] sm:$0xff] %v1148
        %s1165 = sadd.s32 %s185, 1
        %s1166 = smul.u32 %s1165, 3
        %s1167 = smul.addr %s1166, 4
        %s1168 = scalar_lea.vmem %s182, %s1167
        %v1169 = vld [vmem:[%s1168] sm:$0xf]
        %v1170 = vld [vmem:[%s1168 + $0x4] sm:$0xf]
        %v1171 = vld [vmem:[%s1168 + $0xc] sm:$0xf]
        %v1172 = vld [vmem:[%s1168 + $0x10] sm:$0xf]
        %v1173 = vld [vmem:[%s1168 + $0x18] sm:$0xf]
        %v1174 = vld [vmem:[%s1168 + $0x1c] sm:$0xf]
        %v1175 = vld [vmem:[%s1168 + $0x24] sm:$0xf]
        %v1176 = vld [vmem:[%s1168 + $0x28] sm:$0xf]
        %v1177 = vld [vmem:[%s1168 + $0x30] sm:$0xf]
        %v1178 = vld [vmem:[%s1168 + $0x34] sm:$0xf]
        %v1179 = vld [vmem:[%s1168 + $0x3c] sm:$0xf]
        %v1180 = vld [vmem:[%s1168 + $0x40] sm:$0xf]
        %v1181 = vld [vmem:[%s1168 + $0x48] sm:$0xf]
        %v1182 = vld [vmem:[%s1168 + $0x4c] sm:$0xf]
        %v1183 = vld [vmem:[%s1168 + $0x54] sm:$0xf]
        %v1184 = vld [vmem:[%s1168 + $0x58] sm:$0xf]
        %v1185 = vld [vmem:[#allocation2] sm:$0xff]
        %v1186 = vld [vmem:[#allocation2 + $0x8] sm:$0xff]
        %v1187 = vld [vmem:[#allocation2 + $0x10] sm:$0xff]
        %v1188 = vld [vmem:[#allocation2 + $0x18] sm:$0xff]
        %v1189 = vld [vmem:[#allocation2 + $0x20] sm:$0xff]
        %v1190 = vld [vmem:[#allocation2 + $0x28] sm:$0xff]
        %v1191 = vld [vmem:[#allocation2 + $0x30] sm:$0xff]
        %v1192 = vld [vmem:[#allocation2 + $0x38] sm:$0xff]
        %v1193 = vld [vmem:[#allocation2 + $0x40] sm:$0xff]
        %v1194 = vld [vmem:[#allocation2 + $0x48] sm:$0xff]
        %v1195 = vld [vmem:[#allocation2 + $0x50] sm:$0xff]
        %v1196 = vld [vmem:[#allocation2 + $0x58] sm:$0xff]
        %v1197 = vld [vmem:[#allocation2 + $0x60] sm:$0xff]
        %v1198 = vld [vmem:[#allocation2 + $0x68] sm:$0xff]
        %v1199 = vld [vmem:[#allocation2 + $0x70] sm:$0xff]
        %v1200 = vld [vmem:[#allocation2 + $0x78] sm:$0xff]
        %s1201 = scalar_lea.vmem %s1, 6
        %v1202 = vld [vmem:[%s1201] sm:$0x3]
        %v1219 = vunpack.c.l.b16 %v1169
        %v1220 = vunpack.c.l.b16 %v1170
        %v1221 = vunpack.c.l.b16 %v1171
        %v1222 = vunpack.c.l.b16 %v1172
        %v1223 = vunpack.c.l.b16 %v1173
        %v1224 = vunpack.c.l.b16 %v1174
        %v1225 = vunpack.c.l.b16 %v1175
        %v1226 = vunpack.c.l.b16 %v1176
        %v1227 = vunpack.c.l.b16 %v1177
        %v1228 = vunpack.c.l.b16 %v1178
        %v1229 = vunpack.c.l.b16 %v1179
        %v1230 = vunpack.c.l.b16 %v1180
        %v1231 = vunpack.c.l.b16 %v1181
        %v1232 = vunpack.c.l.b16 %v1182
        %v1233 = vunpack.c.l.b16 %v1183
        %v1234 = vunpack.c.l.b16 %v1184
        %v1235 = vpack.c.b16 %v1220, %v1219
        %v1236 = vpack.c.b16 %v1222, %v1221
        %v1237 = vpack.c.b16 %v1224, %v1223
        %v1238 = vpack.c.b16 %v1226, %v1225
        %v1239 = vpack.c.b16 %v1228, %v1227
        %v1240 = vpack.c.b16 %v1230, %v1229
        %v1241 = vpack.c.b16 %v1232, %v1231
        %v1242 = vpack.c.b16 %v1234, %v1233
        %v1244 = vsel %vm285, %v1235, 0
        %v1247 = vsel %vm285, %v1236, 0
        %v1250 = vsel %vm285, %v1237, 0
        %v1253 = vsel %vm285, %v1238, 0
        %v1256 = vsel %vm285, %v1239, 0
        %v1259 = vsel %vm285, %v1240, 0
        %v1262 = vsel %vm285, %v1241, 0
        %v1265 = vsel %vm285, %v1242, 0
        %v1268 = vsel %vm310, %v1202, 0
        %1270 = vmatprep.subr.bf16.mxu0 0
        %1271 = vmatpush1.bf16.msra.mxu0 %v1268
        %1272 = vmatprep.subr.bf16.mxu0 0
        %1273 = vmatpush1.bf16.msra.mxu0 0
        %1274 = vmatprep.subr.bf16.mxu0 0
        %1275 = vmatpush1.bf16.msra.mxu0 0
        %1276 = vmatprep.subr.bf16.mxu0 0
        %1277 = vmatpush1.bf16.msra.mxu0 0
        %1278 = vmatprep.subr.bf16.mxu0 0
        %1279 = vmatpush1.bf16.msra.mxu0 0
        %1280 = vmatprep.subr.bf16.mxu0 0
        %1281 = vmatpush1.bf16.msra.mxu0 0
        %1282 = vmatprep.subr.bf16.mxu0 0
        %1283 = vmatpush1.bf16.msra.mxu0 0
        %1284 = vmatprep.subr.bf16.mxu0 0
        %1285 = vmatpush1.bf16.msra.mxu0 0
        %1286 = vmatprep.subr.bf16.mxu0 0
        %1287 = vmatpush1.bf16.msra.mxu0 0
        %1288 = vmatprep.subr.bf16.mxu0 0
        %1289 = vmatpush1.bf16.msra.mxu0 0
        %1290 = vmatprep.subr.bf16.mxu0 0
        %1291 = vmatpush1.bf16.msra.mxu0 0
        %1292 = vmatprep.subr.bf16.mxu0 0
        %1293 = vmatpush1.bf16.msra.mxu0 0
        %1294 = vmatprep.subr.bf16.mxu0 0
        %1295 = vmatpush1.bf16.msra.mxu0 0
        %1296 = vmatprep.subr.bf16.mxu0 0
        %1297 = vmatpush1.bf16.msra.mxu0 0
        %1298 = vmatprep.subr.bf16.mxu0 0
        %1299 = vmatpush1.bf16.msra.mxu0 0
        %1300 = vmatprep.subr.bf16.mxu0 0
        %1301 = vmatpush1.bf16.msra.mxu0 0
        %1302 = vmatprep.mubr.bf16.mxu0 0
        %1303 = vmatmul.mubr.bf16.gmra.mrb[0].mxu0 %v1244
        %v1304 = vpop.f32.mrb[0].mxu0
        %v1305 = vadd.f32 0.0, %v1304
        %v1306 = vpop.f32.mrb[0].mxu0
        %v1307 = vpop.f32.mrb[0].mxu0
        %v1308 = vadd.f32 0.0, %v1307
        %v1309 = vpop.f32.mrb[0].mxu0
        %1310 = vmatprep.mubr.bf16.mxu0 0
        %1311 = vmatmul.mubr.bf16.gmra.mrb[0].mxu0 %v1247
        %v1312 = vpop.f32.mrb[0].mxu0
        %v1313 = vadd.f32 0.0, %v1312
        %v1314 = vpop.f32.mrb[0].mxu0
        %v1315 = vpop.f32.mrb[0].mxu0
        %v1316 = vadd.f32 0.0, %v1315
        %v1317 = vpop.f32.mrb[0].mxu0
        %1318 = vmatprep.mubr.bf16.mxu0 0
        %1319 = vmatmul.mubr.bf16.gmra.mrb[0].mxu0 %v1250
        %v1320 = vpop.f32.mrb[0].mxu0
        %v1321 = vadd.f32 0.0, %v1320
        %v1322 = vpop.f32.mrb[0].mxu0
        %v1323 = vpop.f32.mrb[0].mxu0
        %v1324 = vadd.f32 0.0, %v1323
        %v1325 = vpop.f32.mrb[0].mxu0
        %1326 = vmatprep.mubr.bf16.mxu0 0
        %1327 = vmatmul.mubr.bf16.gmra.mrb[0].mxu0 %v1253
        %v1328 = vpop.f32.mrb[0].mxu0
        %v1329 = vadd.f32 0.0, %v1328
        %v1330 = vpop.f32.mrb[0].mxu0
        %v1331 = vpop.f32.mrb[0].mxu0
        %v1332 = vadd.f32 0.0, %v1331
        %v1333 = vpop.f32.mrb[0].mxu0
        %1334 = vmatprep.mubr.bf16.mxu0 0
        %1335 = vmatmul.mubr.bf16.gmra.mrb[0].mxu0 %v1256
        %v1336 = vpop.f32.mrb[0].mxu0
        %v1337 = vadd.f32 0.0, %v1336
        %v1338 = vpop.f32.mrb[0].mxu0
        %v1339 = vpop.f32.mrb[0].mxu0
        %v1340 = vadd.f32 0.0, %v1339
        %v1341 = vpop.f32.mrb[0].mxu0
        %1342 = vmatprep.mubr.bf16.mxu0 0
        %1343 = vmatmul.mubr.bf16.gmra.mrb[0].mxu0 %v1259
        %v1344 = vpop.f32.mrb[0].mxu0
        %v1345 = vadd.f32 0.0, %v1344
        %v1346 = vpop.f32.mrb[0].mxu0
        %v1347 = vpop.f32.mrb[0].mxu0
        %v1348 = vadd.f32 0.0, %v1347
        %v1349 = vpop.f32.mrb[0].mxu0
        %1350 = vmatprep.mubr.bf16.mxu0 0
        %1351 = vmatmul.mubr.bf16.gmra.mrb[0].mxu0 %v1262
        %v1352 = vpop.f32.mrb[0].mxu0
        %v1353 = vadd.f32 0.0, %v1352
        %v1354 = vpop.f32.mrb[0].mxu0
        %v1355 = vpop.f32.mrb[0].mxu0
        %v1356 = vadd.f32 0.0, %v1355
        %v1357 = vpop.f32.mrb[0].mxu0
        %1358 = vmatprep.mubr.bf16.mxu0 0
        %1359 = vmatmul.mubr.bf16.gmra.mrb[0].mxu0 %v1265
        %v1360 = vpop.f32.mrb[0].mxu0
        %v1361 = vadd.f32 0.0, %v1360
        %v1362 = vpop.f32.mrb[0].mxu0
        %v1363 = vpop.f32.mrb[0].mxu0
        %v1364 = vadd.f32 0.0, %v1363
        %v1365 = vpop.f32.mrb[0].mxu0
        %1366 = vdwg.mxu0
        %v1367 = vadd.f32 %v1185, %v1305
        %v1368 = vadd.f32 %v1186, %v1308
        %v1369 = vadd.f32 %v1187, %v1313
        %v1370 = vadd.f32 %v1188, %v1316
        %v1371 = vadd.f32 %v1189, %v1321
        %v1372 = vadd.f32 %v1190, %v1324
        %v1373 = vadd.f32 %v1191, %v1329
        %v1374 = vadd.f32 %v1192, %v1332
        %v1375 = vadd.f32 %v1193, %v1337
        %v1376 = vadd.f32 %v1194, %v1340
        %v1377 = vadd.f32 %v1195, %v1345
        %v1378 = vadd.f32 %v1196, %v1348
        %v1379 = vadd.f32 %v1197, %v1353
        %v1380 = vadd.f32 %v1198, %v1356
        %v1381 = vadd.f32 %v1199, %v1361
        %v1382 = vadd.f32 %v1200, %v1364
        %1383 = vst [vmem:[#allocation2] sm:$0xff] %v1367
        %1384 = vst [vmem:[#allocation2 + $0x8] sm:$0xff] %v1368
        %1385 = vst [vmem:[#allocation2 + $0x10] sm:$0xff] %v1369
        %1386 = vst [vmem:[#allocation2 + $0x18] sm:$0xff] %v1370
        %1387 = vst [vmem:[#allocation2 + $0x20] sm:$0xff] %v1371
        %1388 = vst [vmem:[#allocation2 + $0x28] sm:$0xff] %v1372
        %1389 = vst [vmem:[#allocation2 + $0x30] sm:$0xff] %v1373
        %1390 = vst [vmem:[#allocation2 + $0x38] sm:$0xff] %v1374
        %1391 = vst [vmem:[#allocation2 + $0x40] sm:$0xff] %v1375
        %1392 = vst [vmem:[#allocation2 + $0x48] sm:$0xff] %v1376
        %1393 = vst [vmem:[#allocation2 + $0x50] sm:$0xff] %v1377
        %1394 = vst [vmem:[#allocation2 + $0x58] sm:$0xff] %v1378
        %1395 = vst [vmem:[#allocation2 + $0x60] sm:$0xff] %v1379
        %1396 = vst [vmem:[#allocation2 + $0x68] sm:$0xff] %v1380
        %1397 = vst [vmem:[#allocation2 + $0x70] sm:$0xff] %v1381
        %1398 = vst [vmem:[#allocation2 + $0x78] sm:$0xff] %v1382
        %v1399 = vld [vmem:[%s1168] sm:$0xf]
        %v1400 = vld [vmem:[%s1168 + $0x4] sm:$0xf]
        %v1401 = vld [vmem:[%s1168 + $0x8] sm:$0x1]
        %v1402 = vld [vmem:[%s1168 + $0xc] sm:$0xf]
        %v1403 = vld [vmem:[%s1168 + $0x10] sm:$0xf]
        %v1404 = vld [vmem:[%s1168 + $0x14] sm:$0x1]
        %v1405 = vld [vmem:[%s1168 + $0x18] sm:$0xf]
        %v1406 = vld [vmem:[%s1168 + $0x1c] sm:$0xf]
        %v1407 = vld [vmem:[%s1168 + $0x20] sm:$0x1]
        %v1408 = vld [vmem:[%s1168 + $0x24] sm:$0xf]
        %v1409 = vld [vmem:[%s1168 + $0x28] sm:$0xf]
        %v1410 = vld [vmem:[%s1168 + $0x2c] sm:$0x1]
        %v1411 = vld [vmem:[%s1168 + $0x30] sm:$0xf]
        %v1412 = vld [vmem:[%s1168 + $0x34] sm:$0xf]
        %v1413 = vld [vmem:[%s1168 + $0x38] sm:$0x1]
        %v1414 = vld [vmem:[%s1168 + $0x3c] sm:$0xf]
        %v1415 = vld [vmem:[%s1168 + $0x40] sm:$0xf]
        %v1416 = vld [vmem:[%s1168 + $0x44] sm:$0x1]
        %v1417 = vld [vmem:[%s1168 + $0x48] sm:$0xf]
        %v1418 = vld [vmem:[%s1168 + $0x4c] sm:$0xf]
        %v1419 = vld [vmem:[%s1168 + $0x50] sm:$0x1]
        %v1420 = vld [vmem:[%s1168 + $0x54] sm:$0xf]
        %v1421 = vld [vmem:[%s1168 + $0x58] sm:$0xf]
        %v1422 = vld [vmem:[%s1168 + $0x5c] sm:$0x1]
        %v1423 = vld [vmem:[#allocation2] sm:$0xff]
        %v1424 = vld [vmem:[#allocation2 + $0x8] sm:$0xff]
        %v1425 = vld [vmem:[#allocation2 + $0x10] sm:$0xff]
        %v1426 = vld [vmem:[#allocation2 + $0x18] sm:$0xff]
        %v1427 = vld [vmem:[#allocation2 + $0x20] sm:$0xff]
        %v1428 = vld [vmem:[#allocation2 + $0x28] sm:$0xff]
        %v1429 = vld [vmem:[#allocation2 + $0x30] sm:$0xff]
        %v1430 = vld [vmem:[#allocation2 + $0x38] sm:$0xff]
        %v1431 = vld [vmem:[#allocation2 + $0x40] sm:$0xff]
        %v1432 = vld [vmem:[#allocation2 + $0x48] sm:$0xff]
        %v1433 = vld [vmem:[#allocation2 + $0x50] sm:$0xff]
        %v1434 = vld [vmem:[#allocation2 + $0x58] sm:$0xff]
        %v1435 = vld [vmem:[#allocation2 + $0x60] sm:$0xff]
        %v1436 = vld [vmem:[#allocation2 + $0x68] sm:$0xff]
        %v1437 = vld [vmem:[#allocation2 + $0x70] sm:$0xff]
        %v1438 = vld [vmem:[#allocation2 + $0x78] sm:$0xff]
        %v1440 = vshrl.u32 %v1399, 16
        %v1442 = vrot.slane %v1440, 4
        %v1443 = vshll.u32 %v1399, 16
        %v1445 = vrot.slane %v1443, 5
        %v1446 = vor.u32 %v1442, %v1445
        %v1447 = vrot.slane %v1446, 4
        %v1449 = vshll.u32 %v1400, 16
        %v1451 = vrot.slane %v1449, 5
        %v1452 = vsel %vm485, %v1447, %v1451
        %v1453 = vshrl.u32 %v1400, 16
        %v1455 = vrot.slane %v1453, 4
        %v1456 = vor.u32 %v1455, %v1451
        %v1457 = vrot.slane %v1456, 4
        %v1459 = vshll.u32 %v1401, 16
        %v1461 = vrot.slane %v1459, 5
        %v1462 = vsel %vm485, %v1457, %v1461
        %v1464 = vshrl.u32 %v1402, 16
        %v1466 = vrot.slane %v1464, 4
        %v1467 = vshll.u32 %v1402, 16
        %v1469 = vrot.slane %v1467, 5
        %v1470 = vor.u32 %v1466, %v1469
        %v1471 = vrot.slane %v1470, 4
        %v1473 = vshll.u32 %v1403, 16
        %v1475 = vrot.slane %v1473, 5
        %v1476 = vsel %vm485, %v1471, %v1475
        %v1477 = vshrl.u32 %v1403, 16
        %v1479 = vrot.slane %v1477, 4
        %v1480 = vor.u32 %v1479, %v1475
        %v1481 = vrot.slane %v1480, 4
        %v1483 = vshll.u32 %v1404, 16
        %v1485 = vrot.slane %v1483, 5
        %v1486 = vsel %vm485, %v1481, %v1485
        %v1488 = vshrl.u32 %v1405, 16
        %v1490 = vrot.slane %v1488, 4
        %v1491 = vshll.u32 %v1405, 16
        %v1493 = vrot.slane %v1491, 5
        %v1494 = vor.u32 %v1490, %v1493
        %v1495 = vrot.slane %v1494, 4
        %v1497 = vshll.u32 %v1406, 16
        %v1499 = vrot.slane %v1497, 5
        %v1500 = vsel %vm485, %v1495, %v1499
        %v1501 = vshrl.u32 %v1406, 16
        %v1503 = vrot.slane %v1501, 4
        %v1504 = vor.u32 %v1503, %v1499
        %v1505 = vrot.slane %v1504, 4
        %v1507 = vshll.u32 %v1407, 16
        %v1509 = vrot.slane %v1507, 5
        %v1510 = vsel %vm485, %v1505, %v1509
        %v1512 = vshrl.u32 %v1408, 16
        %v1514 = vrot.slane %v1512, 4
        %v1515 = vshll.u32 %v1408, 16
        %v1517 = vrot.slane %v1515, 5
        %v1518 = vor.u32 %v1514, %v1517
        %v1519 = vrot.slane %v1518, 4
        %v1521 = vshll.u32 %v1409, 16
        %v1523 = vrot.slane %v1521, 5
        %v1524 = vsel %vm485, %v1519, %v1523
        %v1525 = vshrl.u32 %v1409, 16
        %v1527 = vrot.slane %v1525, 4
        %v1528 = vor.u32 %v1527, %v1523
        %v1529 = vrot.slane %v1528, 4
        %v1531 = vshll.u32 %v1410, 16
        %v1533 = vrot.slane %v1531, 5
        %v1534 = vsel %vm485, %v1529, %v1533
        %v1536 = vshrl.u32 %v1411, 16
        %v1538 = vrot.slane %v1536, 4
        %v1539 = vshll.u32 %v1411, 16
        %v1541 = vrot.slane %v1539, 5
        %v1542 = vor.u32 %v1538, %v1541
        %v1543 = vrot.slane %v1542, 4
        %v1545 = vshll.u32 %v1412, 16
        %v1547 = vrot.slane %v1545, 5
        %v1548 = vsel %vm485, %v1543, %v1547
        %v1549 = vshrl.u32 %v1412, 16
        %v1551 = vrot.slane %v1549, 4
        %v1552 = vor.u32 %v1551, %v1547
        %v1553 = vrot.slane %v1552, 4
        %v1555 = vshll.u32 %v1413, 16
        %v1557 = vrot.slane %v1555, 5
        %v1558 = vsel %vm485, %v1553, %v1557
        %v1560 = vshrl.u32 %v1414, 16
        %v1562 = vrot.slane %v1560, 4
        %v1563 = vshll.u32 %v1414, 16
        %v1565 = vrot.slane %v1563, 5
        %v1566 = vor.u32 %v1562, %v1565
        %v1567 = vrot.slane %v1566, 4
        %v1569 = vshll.u32 %v1415, 16
        %v1571 = vrot.slane %v1569, 5
        %v1572 = vsel %vm485, %v1567, %v1571
        %v1573 = vshrl.u32 %v1415, 16
        %v1575 = vrot.slane %v1573, 4
        %v1576 = vor.u32 %v1575, %v1571
        %v1577 = vrot.slane %v1576, 4
        %v1579 = vshll.u32 %v1416, 16
        %v1581 = vrot.slane %v1579, 5
        %v1582 = vsel %vm485, %v1577, %v1581
        %v1584 = vshrl.u32 %v1417, 16
        %v1586 = vrot.slane %v1584, 4
        %v1587 = vshll.u32 %v1417, 16
        %v1589 = vrot.slane %v1587, 5
        %v1590 = vor.u32 %v1586, %v1589
        %v1591 = vrot.slane %v1590, 4
        %v1593 = vshll.u32 %v1418, 16
        %v1595 = vrot.slane %v1593, 5
        %v1596 = vsel %vm485, %v1591, %v1595
        %v1597 = vshrl.u32 %v1418, 16
        %v1599 = vrot.slane %v1597, 4
        %v1600 = vor.u32 %v1599, %v1595
        %v1601 = vrot.slane %v1600, 4
        %v1603 = vshll.u32 %v1419, 16
        %v1605 = vrot.slane %v1603, 5
        %v1606 = vsel %vm485, %v1601, %v1605
        %v1608 = vshrl.u32 %v1420, 16
        %v1610 = vrot.slane %v1608, 4
        %v1611 = vshll.u32 %v1420, 16
        %v1613 = vrot.slane %v1611, 5
        %v1614 = vor.u32 %v1610, %v1613
        %v1615 = vrot.slane %v1614, 4
        %v1617 = vshll.u32 %v1421, 16
        %v1619 = vrot.slane %v1617, 5
        %v1620 = vsel %vm485, %v1615, %v1619
        %v1621 = vshrl.u32 %v1421, 16
        %v1623 = vrot.slane %v1621, 4
        %v1624 = vor.u32 %v1623, %v1619
        %v1625 = vrot.slane %v1624, 4
        %v1627 = vshll.u32 %v1422, 16
        %v1629 = vrot.slane %v1627, 5
        %v1630 = vsel %vm485, %v1625, %v1629
        %s1631 = scalar_lea.vmem %s1, 8
        %v1632 = vld [vmem:[%s1631] sm:$0x3]
        %v1633 = vunpack.c.l.b16 %v1452
        %v1634 = vunpack.c.l.b16 %v1462
        %v1635 = vunpack.c.l.b16 %v1476
        %v1636 = vunpack.c.l.b16 %v1486
        %v1637 = vunpack.c.l.b16 %v1500
        %v1638 = vunpack.c.l.b16 %v1510
        %v1639 = vunpack.c.l.b16 %v1524
        %v1640 = vunpack.c.l.b16 %v1534
        %v1641 = vunpack.c.l.b16 %v1548
        %v1642 = vunpack.c.l.b16 %v1558
        %v1643 = vunpack.c.l.b16 %v1572
        %v1644 = vunpack.c.l.b16 %v1582
        %v1645 = vunpack.c.l.b16 %v1596
        %v1646 = vunpack.c.l.b16 %v1606
        %v1647 = vunpack.c.l.b16 %v1620
        %v1648 = vunpack.c.l.b16 %v1630
        %v1649 = vpack.c.b16 %v1634, %v1633
        %v1650 = vpack.c.b16 %v1636, %v1635
        %v1651 = vpack.c.b16 %v1638, %v1637
        %v1652 = vpack.c.b16 %v1640, %v1639
        %v1653 = vpack.c.b16 %v1642, %v1641
        %v1654 = vpack.c.b16 %v1644, %v1643
        %v1655 = vpack.c.b16 %v1646, %v1645
        %v1656 = vpack.c.b16 %v1648, %v1647
        %v1658 = vsel %vm285, %v1649, 0
        %v1661 = vsel %vm285, %v1650, 0
        %v1664 = vsel %vm285, %v1651, 0
        %v1667 = vsel %vm285, %v1652, 0
        %v1670 = vsel %vm285, %v1653, 0
        %v1673 = vsel %vm285, %v1654, 0
        %v1676 = vsel %vm285, %v1655, 0
        %v1679 = vsel %vm285, %v1656, 0
        %v1682 = vsel %vm310, %v1632, 0
        %1684 = vmatprep.subr.bf16.mxu0 0
        %1685 = vmatpush1.bf16.msra.mxu0 %v1682
        %1686 = vmatprep.subr.bf16.mxu0 0
        %1687 = vmatpush1.bf16.msra.mxu0 0
        %1688 = vmatprep.subr.bf16.mxu0 0
        %1689 = vmatpush1.bf16.msra.mxu0 0
        %1690 = vmatprep.subr.bf16.mxu0 0
        %1691 = vmatpush1.bf16.msra.mxu0 0
        %1692 = vmatprep.subr.bf16.mxu0 0
        %1693 = vmatpush1.bf16.msra.mxu0 0
        %1694 = vmatprep.subr.bf16.mxu0 0
        %1695 = vmatpush1.bf16.msra.mxu0 0
        %1696 = vmatprep.subr.bf16.mxu0 0
        %1697 = vmatpush1.bf16.msra.mxu0 0
        %1698 = vmatprep.subr.bf16.mxu0 0
        %1699 = vmatpush1.bf16.msra.mxu0 0
        %1700 = vmatprep.subr.bf16.mxu0 0
        %1701 = vmatpush1.bf16.msra.mxu0 0
        %1702 = vmatprep.subr.bf16.mxu0 0
        %1703 = vmatpush1.bf16.msra.mxu0 0
        %1704 = vmatprep.subr.bf16.mxu0 0
        %1705 = vmatpush1.bf16.msra.mxu0 0
        %1706 = vmatprep.subr.bf16.mxu0 0
        %1707 = vmatpush1.bf16.msra.mxu0 0
        %1708 = vmatprep.subr.bf16.mxu0 0
        %1709 = vmatpush1.bf16.msra.mxu0 0
        %1710 = vmatprep.subr.bf16.mxu0 0
        %1711 = vmatpush1.bf16.msra.mxu0 0
        %1712 = vmatprep.subr.bf16.mxu0 0
        %1713 = vmatpush1.bf16.msra.mxu0 0
        %1714 = vmatprep.subr.bf16.mxu0 0
        %1715 = vmatpush1.bf16.msra.mxu0 0
        %1716 = vmatprep.mubr.bf16.mxu0 0
        %1717 = vmatmul.mubr.bf16.gmra.mrb[0].mxu0 %v1658
        %v1718 = vpop.f32.mrb[0].mxu0
        %v1719 = vadd.f32 0.0, %v1718
        %v1720 = vpop.f32.mrb[0].mxu0
        %v1721 = vpop.f32.mrb[0].mxu0
        %v1722 = vadd.f32 0.0, %v1721
        %v1723 = vpop.f32.mrb[0].mxu0
        %1724 = vmatprep.mubr.bf16.mxu0 0
        %1725 = vmatmul.mubr.bf16.gmra.mrb[0].mxu0 %v1661
        %v1726 = vpop.f32.mrb[0].mxu0
        %v1727 = vadd.f32 0.0, %v1726
        %v1728 = vpop.f32.mrb[0].mxu0
        %v1729 = vpop.f32.mrb[0].mxu0
        %v1730 = vadd.f32 0.0, %v1729
        %v1731 = vpop.f32.mrb[0].mxu0
        %1732 = vmatprep.mubr.bf16.mxu0 0
        %1733 = vmatmul.mubr.bf16.gmra.mrb[0].mxu0 %v1664
        %v1734 = vpop.f32.mrb[0].mxu0
        %v1735 = vadd.f32 0.0, %v1734
        %v1736 = vpop.f32.mrb[0].mxu0
        %v1737 = vpop.f32.mrb[0].mxu0
        %v1738 = vadd.f32 0.0, %v1737
        %v1739 = vpop.f32.mrb[0].mxu0
        %1740 = vmatprep.mubr.bf16.mxu0 0
        %1741 = vmatmul.mubr.bf16.gmra.mrb[0].mxu0 %v1667
        %v1742 = vpop.f32.mrb[0].mxu0
        %v1743 = vadd.f32 0.0, %v1742
        %v1744 = vpop.f32.mrb[0].mxu0
        %v1745 = vpop.f32.mrb[0].mxu0
        %v1746 = vadd.f32 0.0, %v1745
        %v1747 = vpop.f32.mrb[0].mxu0
        %1748 = vmatprep.mubr.bf16.mxu0 0
        %1749 = vmatmul.mubr.bf16.gmra.mrb[0].mxu0 %v1670
        %v1750 = vpop.f32.mrb[0].mxu0
        %v1751 = vadd.f32 0.0, %v1750
        %v1752 = vpop.f32.mrb[0].mxu0
        %v1753 = vpop.f32.mrb[0].mxu0
        %v1754 = vadd.f32 0.0, %v1753
        %v1755 = vpop.f32.mrb[0].mxu0
        %1756 = vmatprep.mubr.bf16.mxu0 0
        %1757 = vmatmul.mubr.bf16.gmra.mrb[0].mxu0 %v1673
        %v1758 = vpop.f32.mrb[0].mxu0
        %v1759 = vadd.f32 0.0, %v1758
        %v1760 = vpop.f32.mrb[0].mxu0
        %v1761 = vpop.f32.mrb[0].mxu0
        %v1762 = vadd.f32 0.0, %v1761
        %v1763 = vpop.f32.mrb[0].mxu0
        %1764 = vmatprep.mubr.bf16.mxu0 0
        %1765 = vmatmul.mubr.bf16.gmra.mrb[0].mxu0 %v1676
        %v1766 = vpop.f32.mrb[0].mxu0
        %v1767 = vadd.f32 0.0, %v1766
        %v1768 = vpop.f32.mrb[0].mxu0
        %v1769 = vpop.f32.mrb[0].mxu0
        %v1770 = vadd.f32 0.0, %v1769
        %v1771 = vpop.f32.mrb[0].mxu0
        %1772 = vmatprep.mubr.bf16.mxu0 0
        %1773 = vmatmul.mubr.bf16.gmra.mrb[0].mxu0 %v1679
        %v1774 = vpop.f32.mrb[0].mxu0
        %v1775 = vadd.f32 0.0, %v1774
        %v1776 = vpop.f32.mrb[0].mxu0
        %v1777 = vpop.f32.mrb[0].mxu0
        %v1778 = vadd.f32 0.0, %v1777
        %v1779 = vpop.f32.mrb[0].mxu0
        %1780 = vdwg.mxu0
        %v1781 = vadd.f32 %v1423, %v1719
        %v1782 = vadd.f32 %v1424, %v1722
        %v1783 = vadd.f32 %v1425, %v1727
        %v1784 = vadd.f32 %v1426, %v1730
        %v1785 = vadd.f32 %v1427, %v1735
        %v1786 = vadd.f32 %v1428, %v1738
        %v1787 = vadd.f32 %v1429, %v1743
        %v1788 = vadd.f32 %v1430, %v1746
        %v1789 = vadd.f32 %v1431, %v1751
        %v1790 = vadd.f32 %v1432, %v1754
        %v1791 = vadd.f32 %v1433, %v1759
        %v1792 = vadd.f32 %v1434, %v1762
        %v1793 = vadd.f32 %v1435, %v1767
        %v1794 = vadd.f32 %v1436, %v1770
        %v1795 = vadd.f32 %v1437, %v1775
        %v1796 = vadd.f32 %v1438, %v1778
        %1797 = vst [vmem:[#allocation2] sm:$0xff] %v1781
        %1798 = vst [vmem:[#allocation2 + $0x8] sm:$0xff] %v1782
        %1799 = vst [vmem:[#allocation2 + $0x10] sm:$0xff] %v1783
        %1800 = vst [vmem:[#allocation2 + $0x18] sm:$0xff] %v1784
        %1801 = vst [vmem:[#allocation2 + $0x20] sm:$0xff] %v1785
        %1802 = vst [vmem:[#allocation2 + $0x28] sm:$0xff] %v1786
        %1803 = vst [vmem:[#allocation2 + $0x30] sm:$0xff] %v1787
        %1804 = vst [vmem:[#allocation2 + $0x38] sm:$0xff] %v1788
        %1805 = vst [vmem:[#allocation2 + $0x40] sm:$0xff] %v1789
        %1806 = vst [vmem:[#allocation2 + $0x48] sm:$0xff] %v1790
        %1807 = vst [vmem:[#allocation2 + $0x50] sm:$0xff] %v1791
        %1808 = vst [vmem:[#allocation2 + $0x58] sm:$0xff] %v1792
        %1809 = vst [vmem:[#allocation2 + $0x60] sm:$0xff] %v1793
        %1810 = vst [vmem:[#allocation2 + $0x68] sm:$0xff] %v1794
        %1811 = vst [vmem:[#allocation2 + $0x70] sm:$0xff] %v1795
        %1812 = vst [vmem:[#allocation2 + $0x78] sm:$0xff] %v1796
        %v1813 = vld [vmem:[%s1168] sm:$0xe]
        %v1814 = vld [vmem:[%s1168 + $0x4] sm:$0xf]
        %v1815 = vld [vmem:[%s1168 + $0x8] sm:$0x1]
        %v1816 = vld [vmem:[%s1168 + $0xc] sm:$0xe]
        %v1817 = vld [vmem:[%s1168 + $0x10] sm:$0xf]
        %v1818 = vld [vmem:[%s1168 + $0x14] sm:$0x1]
        %v1819 = vld [vmem:[%s1168 + $0x18] sm:$0xe]
        %v1820 = vld [vmem:[%s1168 + $0x1c] sm:$0xf]
        %v1821 = vld [vmem:[%s1168 + $0x20] sm:$0x1]
        %v1822 = vld [vmem:[%s1168 + $0x24] sm:$0xe]
        %v1823 = vld [vmem:[%s1168 + $0x28] sm:$0xf]
        %v1824 = vld [vmem:[%s1168 + $0x2c] sm:$0x1]
        %v1825 = vld [vmem:[%s1168 + $0x30] sm:$0xe]
        %v1826 = vld [vmem:[%s1168 + $0x34] sm:$0xf]
        %v1827 = vld [vmem:[%s1168 + $0x38] sm:$0x1]
        %v1828 = vld [vmem:[%s1168 + $0x3c] sm:$0xe]
        %v1829 = vld [vmem:[%s1168 + $0x40] sm:$0xf]
        %v1830 = vld [vmem:[%s1168 + $0x44] sm:$0x1]
        %v1831 = vld [vmem:[%s1168 + $0x48] sm:$0xe]
        %v1832 = vld [vmem:[%s1168 + $0x4c] sm:$0xf]
        %v1833 = vld [vmem:[%s1168 + $0x50] sm:$0x1]
        %v1834 = vld [vmem:[%s1168 + $0x54] sm:$0xe]
        %v1835 = vld [vmem:[%s1168 + $0x58] sm:$0xf]
        %v1836 = vld [vmem:[%s1168 + $0x5c] sm:$0x1]
        %v1837 = vld [vmem:[#allocation2] sm:$0xff]
        %v1838 = vld [vmem:[#allocation2 + $0x8] sm:$0xff]
        %v1839 = vld [vmem:[#allocation2 + $0x10] sm:$0xff]
        %v1840 = vld [vmem:[#allocation2 + $0x18] sm:$0xff]
        %v1841 = vld [vmem:[#allocation2 + $0x20] sm:$0xff]
        %v1842 = vld [vmem:[#allocation2 + $0x28] sm:$0xff]
        %v1843 = vld [vmem:[#allocation2 + $0x30] sm:$0xff]
        %v1844 = vld [vmem:[#allocation2 + $0x38] sm:$0xff]
        %v1845 = vld [vmem:[#allocation2 + $0x40] sm:$0xff]
        %v1846 = vld [vmem:[#allocation2 + $0x48] sm:$0xff]
        %v1847 = vld [vmem:[#allocation2 + $0x50] sm:$0xff]
        %v1848 = vld [vmem:[#allocation2 + $0x58] sm:$0xff]
        %v1849 = vld [vmem:[#allocation2 + $0x60] sm:$0xff]
        %v1850 = vld [vmem:[#allocation2 + $0x68] sm:$0xff]
        %v1851 = vld [vmem:[#allocation2 + $0x70] sm:$0xff]
        %v1852 = vld [vmem:[#allocation2 + $0x78] sm:$0xff]
        %v1877 = vrot.slane %v1813, 5
        %v1878 = vrot.slane %v1877, 4
        %v1879 = vrot.slane %v1814, 5
        %v1880 = vsel %vm926, %v1878, %v1879
        %v1881 = vrot.slane %v1879, 4
        %v1882 = vrot.slane %v1815, 5
        %v1883 = vsel %vm926, %v1881, %v1882
        %v1884 = vrot.slane %v1816, 5
        %v1885 = vrot.slane %v1884, 4
        %v1886 = vrot.slane %v1817, 5
        %v1887 = vsel %vm926, %v1885, %v1886
        %v1888 = vrot.slane %v1886, 4
        %v1889 = vrot.slane %v1818, 5
        %v1890 = vsel %vm926, %v1888, %v1889
        %v1891 = vrot.slane %v1819, 5
        %v1892 = vrot.slane %v1891, 4
        %v1893 = vrot.slane %v1820, 5
        %v1894 = vsel %vm926, %v1892, %v1893
        %v1895 = vrot.slane %v1893, 4
        %v1896 = vrot.slane %v1821, 5
        %v1897 = vsel %vm926, %v1895, %v1896
        %v1898 = vrot.slane %v1822, 5
        %v1899 = vrot.slane %v1898, 4
        %v1900 = vrot.slane %v1823, 5
        %v1901 = vsel %vm926, %v1899, %v1900
        %v1902 = vrot.slane %v1900, 4
        %v1903 = vrot.slane %v1824, 5
        %v1904 = vsel %vm926, %v1902, %v1903
        %v1905 = vrot.slane %v1825, 5
        %v1906 = vrot.slane %v1905, 4
        %v1907 = vrot.slane %v1826, 5
        %v1908 = vsel %vm926, %v1906, %v1907
        %v1909 = vrot.slane %v1907, 4
        %v1910 = vrot.slane %v1827, 5
        %v1911 = vsel %vm926, %v1909, %v1910
        %v1912 = vrot.slane %v1828, 5
        %v1913 = vrot.slane %v1912, 4
        %v1914 = vrot.slane %v1829, 5
        %v1915 = vsel %vm926, %v1913, %v1914
        %v1916 = vrot.slane %v1914, 4
        %v1917 = vrot.slane %v1830, 5
        %v1918 = vsel %vm926, %v1916, %v1917
        %v1919 = vrot.slane %v1831, 5
        %v1920 = vrot.slane %v1919, 4
        %v1921 = vrot.slane %v1832, 5
        %v1922 = vsel %vm926, %v1920, %v1921
        %v1923 = vrot.slane %v1921, 4
        %v1924 = vrot.slane %v1833, 5
        %v1925 = vsel %vm926, %v1923, %v1924
        %v1926 = vrot.slane %v1834, 5
        %v1927 = vrot.slane %v1926, 4
        %v1928 = vrot.slane %v1835, 5
        %v1929 = vsel %vm926, %v1927, %v1928
        %v1930 = vrot.slane %v1928, 4
        %v1931 = vrot.slane %v1836, 5
        %v1932 = vsel %vm926, %v1930, %v1931
        %s1933 = scalar_lea.vmem %s1, 10
        %v1934 = vld [vmem:[%s1933] sm:$0x3]
        %v1935 = vunpack.c.l.b16 %v1880
        %v1936 = vunpack.c.l.b16 %v1883
        %v1937 = vunpack.c.l.b16 %v1887
        %v1938 = vunpack.c.l.b16 %v1890
        %v1939 = vunpack.c.l.b16 %v1894
        %v1940 = vunpack.c.l.b16 %v1897
        %v1941 = vunpack.c.l.b16 %v1901
        %v1942 = vunpack.c.l.b16 %v1904
        %v1943 = vunpack.c.l.b16 %v1908
        %v1944 = vunpack.c.l.b16 %v1911
        %v1945 = vunpack.c.l.b16 %v1915
        %v1946 = vunpack.c.l.b16 %v1918
        %v1947 = vunpack.c.l.b16 %v1922
        %v1948 = vunpack.c.l.b16 %v1925
        %v1949 = vunpack.c.l.b16 %v1929
        %v1950 = vunpack.c.l.b16 %v1932
        %v1951 = vpack.c.b16 %v1936, %v1935
        %v1952 = vpack.c.b16 %v1938, %v1937
        %v1953 = vpack.c.b16 %v1940, %v1939
        %v1954 = vpack.c.b16 %v1942, %v1941
        %v1955 = vpack.c.b16 %v1944, %v1943
        %v1956 = vpack.c.b16 %v1946, %v1945
        %v1957 = vpack.c.b16 %v1948, %v1947
        %v1958 = vpack.c.b16 %v1950, %v1949
        %v1960 = vsel %vm285, %v1951, 0
        %v1963 = vsel %vm285, %v1952, 0
        %v1966 = vsel %vm285, %v1953, 0
        %v1969 = vsel %vm285, %v1954, 0
        %v1972 = vsel %vm285, %v1955, 0
        %v1975 = vsel %vm285, %v1956, 0
        %v1978 = vsel %vm285, %v1957, 0
        %v1981 = vsel %vm285, %v1958, 0
        %v1984 = vsel %vm310, %v1934, 0
        %1986 = vmatprep.subr.bf16.mxu0 0
        %1987 = vmatpush1.bf16.msra.mxu0 %v1984
        %1988 = vmatprep.subr.bf16.mxu0 0
        %1989 = vmatpush1.bf16.msra.mxu0 0
        %1990 = vmatprep.subr.bf16.mxu0 0
        %1991 = vmatpush1.bf16.msra.mxu0 0
        %1992 = vmatprep.subr.bf16.mxu0 0
        %1993 = vmatpush1.bf16.msra.mxu0 0
        %1994 = vmatprep.subr.bf16.mxu0 0
        %1995 = vmatpush1.bf16.msra.mxu0 0
        %1996 = vmatprep.subr.bf16.mxu0 0
        %1997 = vmatpush1.bf16.msra.mxu0 0
        %1998 = vmatprep.subr.bf16.mxu0 0
        %1999 = vmatpush1.bf16.msra.mxu0 0
        %2000 = vmatprep.subr.bf16.mxu0 0
        %2001 = vmatpush1.bf16.msra.mxu0 0
        %2002 = vmatprep.subr.bf16.mxu0 0
        %2003 = vmatpush1.bf16.msra.mxu0 0
        %2004 = vmatprep.subr.bf16.mxu0 0
        %2005 = vmatpush1.bf16.msra.mxu0 0
        %2006 = vmatprep.subr.bf16.mxu0 0
        %2007 = vmatpush1.bf16.msra.mxu0 0
        %2008 = vmatprep.subr.bf16.mxu0 0
        %2009 = vmatpush1.bf16.msra.mxu0 0
        %2010 = vmatprep.subr.bf16.mxu0 0
        %2011 = vmatpush1.bf16.msra.mxu0 0
        %2012 = vmatprep.subr.bf16.mxu0 0
        %2013 = vmatpush1.bf16.msra.mxu0 0
        %2014 = vmatprep.subr.bf16.mxu0 0
        %2015 = vmatpush1.bf16.msra.mxu0 0
        %2016 = vmatprep.subr.bf16.mxu0 0
        %2017 = vmatpush1.bf16.msra.mxu0 0
        %2018 = vmatprep.mubr.bf16.mxu0 0
        %2019 = vmatmul.mubr.bf16.gmra.mrb[0].mxu0 %v1960
        %v2020 = vpop.f32.mrb[0].mxu0
        %v2021 = vadd.f32 0.0, %v2020
        %v2022 = vpop.f32.mrb[0].mxu0
        %v2023 = vpop.f32.mrb[0].mxu0
        %v2024 = vadd.f32 0.0, %v2023
        %v2025 = vpop.f32.mrb[0].mxu0
        %2026 = vmatprep.mubr.bf16.mxu0 0
        %2027 = vmatmul.mubr.bf16.gmra.mrb[0].mxu0 %v1963
        %v2028 = vpop.f32.mrb[0].mxu0
        %v2029 = vadd.f32 0.0, %v2028
        %v2030 = vpop.f32.mrb[0].mxu0
        %v2031 = vpop.f32.mrb[0].mxu0
        %v2032 = vadd.f32 0.0, %v2031
        %v2033 = vpop.f32.mrb[0].mxu0
        %2034 = vmatprep.mubr.bf16.mxu0 0
        %2035 = vmatmul.mubr.bf16.gmra.mrb[0].mxu0 %v1966
        %v2036 = vpop.f32.mrb[0].mxu0
        %v2037 = vadd.f32 0.0, %v2036
        %v2038 = vpop.f32.mrb[0].mxu0
        %v2039 = vpop.f32.mrb[0].mxu0
        %v2040 = vadd.f32 0.0, %v2039
        %v2041 = vpop.f32.mrb[0].mxu0
        %2042 = vmatprep.mubr.bf16.mxu0 0
        %2043 = vmatmul.mubr.bf16.gmra.mrb[0].mxu0 %v1969
        %v2044 = vpop.f32.mrb[0].mxu0
        %v2045 = vadd.f32 0.0, %v2044
        %v2046 = vpop.f32.mrb[0].mxu0
        %v2047 = vpop.f32.mrb[0].mxu0
        %v2048 = vadd.f32 0.0, %v2047
        %v2049 = vpop.f32.mrb[0].mxu0
        %2050 = vmatprep.mubr.bf16.mxu0 0
        %2051 = vmatmul.mubr.bf16.gmra.mrb[0].mxu0 %v1972
        %v2052 = vpop.f32.mrb[0].mxu0
        %v2053 = vadd.f32 0.0, %v2052
        %v2054 = vpop.f32.mrb[0].mxu0
        %v2055 = vpop.f32.mrb[0].mxu0
        %v2056 = vadd.f32 0.0, %v2055
        %v2057 = vpop.f32.mrb[0].mxu0
        %2058 = vmatprep.mubr.bf16.mxu0 0
        %2059 = vmatmul.mubr.bf16.gmra.mrb[0].mxu0 %v1975
        %v2060 = vpop.f32.mrb[0].mxu0
        %v2061 = vadd.f32 0.0, %v2060
        %v2062 = vpop.f32.mrb[0].mxu0
        %v2063 = vpop.f32.mrb[0].mxu0
        %v2064 = vadd.f32 0.0, %v2063
        %v2065 = vpop.f32.mrb[0].mxu0
        %2066 = vmatprep.mubr.bf16.mxu0 0
        %2067 = vmatmul.mubr.bf16.gmra.mrb[0].mxu0 %v1978
        %v2068 = vpop.f32.mrb[0].mxu0
        %v2069 = vadd.f32 0.0, %v2068
        %v2070 = vpop.f32.mrb[0].mxu0
        %v2071 = vpop.f32.mrb[0].mxu0
        %v2072 = vadd.f32 0.0, %v2071
        %v2073 = vpop.f32.mrb[0].mxu0
        %2074 = vmatprep.mubr.bf16.mxu0 0
        %2075 = vmatmul.mubr.bf16.gmra.mrb[0].mxu0 %v1981
        %v2076 = vpop.f32.mrb[0].mxu0
        %v2077 = vadd.f32 0.0, %v2076
        %v2078 = vpop.f32.mrb[0].mxu0
        %v2079 = vpop.f32.mrb[0].mxu0
        %v2080 = vadd.f32 0.0, %v2079
        %v2081 = vpop.f32.mrb[0].mxu0
        %2082 = vdwg.mxu0
        %v2083 = vadd.f32 %v1837, %v2021
        %v2084 = vadd.f32 %v1838, %v2024
        %v2085 = vadd.f32 %v1839, %v2029
        %v2086 = vadd.f32 %v1840, %v2032
        %v2087 = vadd.f32 %v1841, %v2037
        %v2088 = vadd.f32 %v1842, %v2040
        %v2089 = vadd.f32 %v1843, %v2045
        %v2090 = vadd.f32 %v1844, %v2048
        %v2091 = vadd.f32 %v1845, %v2053
        %v2092 = vadd.f32 %v1846, %v2056
        %v2093 = vadd.f32 %v1847, %v2061
        %v2094 = vadd.f32 %v1848, %v2064
        %v2095 = vadd.f32 %v1849, %v2069
        %v2096 = vadd.f32 %v1850, %v2072
        %v2097 = vadd.f32 %v1851, %v2077
        %v2098 = vadd.f32 %v1852, %v2080
        %2099 = vst [vmem:[#allocation2] sm:$0xff] %v2083
        %2100 = vst [vmem:[#allocation2 + $0x8] sm:$0xff] %v2084
        %2101 = vst [vmem:[#allocation2 + $0x10] sm:$0xff] %v2085
        %2102 = vst [vmem:[#allocation2 + $0x18] sm:$0xff] %v2086
        %2103 = vst [vmem:[#allocation2 + $0x20] sm:$0xff] %v2087
        %2104 = vst [vmem:[#allocation2 + $0x28] sm:$0xff] %v2088
        %2105 = vst [vmem:[#allocation2 + $0x30] sm:$0xff] %v2089
        %2106 = vst [vmem:[#allocation2 + $0x38] sm:$0xff] %v2090
        %2107 = vst [vmem:[#allocation2 + $0x40] sm:$0xff] %v2091
        %2108 = vst [vmem:[#allocation2 + $0x48] sm:$0xff] %v2092
        %2109 = vst [vmem:[#allocation2 + $0x50] sm:$0xff] %v2093
        %2110 = vst [vmem:[#allocation2 + $0x58] sm:$0xff] %v2094
        %2111 = vst [vmem:[#allocation2 + $0x60] sm:$0xff] %v2095
        %2112 = vst [vmem:[#allocation2 + $0x68] sm:$0xff] %v2096
        %2113 = vst [vmem:[#allocation2 + $0x70] sm:$0xff] %v2097
        %2114 = vst [vmem:[#allocation2 + $0x78] sm:$0xff] %v2098
        %s2115 = sadd.s32 %s185, 2
        %s2116 = smul.u32 %s2115, 3
        %s2117 = smul.addr %s2116, 4
        %s2118 = scalar_lea.vmem %s182, %s2117
        %v2119 = vld [vmem:[%s2118] sm:$0xf]
        %v2120 = vld [vmem:[%s2118 + $0x4] sm:$0xf]
        %v2121 = vld [vmem:[%s2118 + $0xc] sm:$0xf]
        %v2122 = vld [vmem:[%s2118 + $0x10] sm:$0xf]
        %v2123 = vld [vmem:[%s2118 + $0x18] sm:$0xf]
        %v2124 = vld [vmem:[%s2118 + $0x1c] sm:$0xf]
        %v2125 = vld [vmem:[%s2118 + $0x24] sm:$0xf]
        %v2126 = vld [vmem:[%s2118 + $0x28] sm:$0xf]
        %v2127 = vld [vmem:[%s2118 + $0x30] sm:$0xf]
        %v2128 = vld [vmem:[%s2118 + $0x34] sm:$0xf]
        %v2129 = vld [vmem:[%s2118 + $0x3c] sm:$0xf]
        %v2130 = vld [vmem:[%s2118 + $0x40] sm:$0xf]
        %v2131 = vld [vmem:[%s2118 + $0x48] sm:$0xf]
        %v2132 = vld [vmem:[%s2118 + $0x4c] sm:$0xf]
        %v2133 = vld [vmem:[%s2118 + $0x54] sm:$0xf]
        %v2134 = vld [vmem:[%s2118 + $0x58] sm:$0xf]
        %v2135 = vld [vmem:[#allocation2] sm:$0xff]
        %v2136 = vld [vmem:[#allocation2 + $0x8] sm:$0xff]
        %v2137 = vld [vmem:[#allocation2 + $0x10] sm:$0xff]
        %v2138 = vld [vmem:[#allocation2 + $0x18] sm:$0xff]
        %v2139 = vld [vmem:[#allocation2 + $0x20] sm:$0xff]
        %v2140 = vld [vmem:[#allocation2 + $0x28] sm:$0xff]
        %v2141 = vld [vmem:[#allocation2 + $0x30] sm:$0xff]
        %v2142 = vld [vmem:[#allocation2 + $0x38] sm:$0xff]
        %v2143 = vld [vmem:[#allocation2 + $0x40] sm:$0xff]
        %v2144 = vld [vmem:[#allocation2 + $0x48] sm:$0xff]
        %v2145 = vld [vmem:[#allocation2 + $0x50] sm:$0xff]
        %v2146 = vld [vmem:[#allocation2 + $0x58] sm:$0xff]
        %v2147 = vld [vmem:[#allocation2 + $0x60] sm:$0xff]
        %v2148 = vld [vmem:[#allocation2 + $0x68] sm:$0xff]
        %v2149 = vld [vmem:[#allocation2 + $0x70] sm:$0xff]
        %v2150 = vld [vmem:[#allocation2 + $0x78] sm:$0xff]
        %s2151 = scalar_lea.vmem %s1, 12
        %v2152 = vld [vmem:[%s2151] sm:$0x3]
        %v2169 = vunpack.c.l.b16 %v2119
        %v2170 = vunpack.c.l.b16 %v2120
        %v2171 = vunpack.c.l.b16 %v2121
        %v2172 = vunpack.c.l.b16 %v2122
        %v2173 = vunpack.c.l.b16 %v2123
        %v2174 = vunpack.c.l.b16 %v2124
        %v2175 = vunpack.c.l.b16 %v2125
        %v2176 = vunpack.c.l.b16 %v2126
        %v2177 = vunpack.c.l.b16 %v2127
        %v2178 = vunpack.c.l.b16 %v2128
        %v2179 = vunpack.c.l.b16 %v2129
        %v2180 = vunpack.c.l.b16 %v2130
        %v2181 = vunpack.c.l.b16 %v2131
        %v2182 = vunpack.c.l.b16 %v2132
        %v2183 = vunpack.c.l.b16 %v2133
        %v2184 = vunpack.c.l.b16 %v2134
        %v2185 = vpack.c.b16 %v2170, %v2169
        %v2186 = vpack.c.b16 %v2172, %v2171
        %v2187 = vpack.c.b16 %v2174, %v2173
        %v2188 = vpack.c.b16 %v2176, %v2175
        %v2189 = vpack.c.b16 %v2178, %v2177
        %v2190 = vpack.c.b16 %v2180, %v2179
        %v2191 = vpack.c.b16 %v2182, %v2181
        %v2192 = vpack.c.b16 %v2184, %v2183
        %v2194 = vsel %vm285, %v2185, 0
        %v2197 = vsel %vm285, %v2186, 0
        %v2200 = vsel %vm285, %v2187, 0
        %v2203 = vsel %vm285, %v2188, 0
        %v2206 = vsel %vm285, %v2189, 0
        %v2209 = vsel %vm285, %v2190, 0
        %v2212 = vsel %vm285, %v2191, 0
        %v2215 = vsel %vm285, %v2192, 0
        %v2218 = vsel %vm310, %v2152, 0
        %2220 = vmatprep.subr.bf16.mxu0 0
        %2221 = vmatpush1.bf16.msra.mxu0 %v2218
        %2222 = vmatprep.subr.bf16.mxu0 0
        %2223 = vmatpush1.bf16.msra.mxu0 0
        %2224 = vmatprep.subr.bf16.mxu0 0
        %2225 = vmatpush1.bf16.msra.mxu0 0
        %2226 = vmatprep.subr.bf16.mxu0 0
        %2227 = vmatpush1.bf16.msra.mxu0 0
        %2228 = vmatprep.subr.bf16.mxu0 0
        %2229 = vmatpush1.bf16.msra.mxu0 0
        %2230 = vmatprep.subr.bf16.mxu0 0
        %2231 = vmatpush1.bf16.msra.mxu0 0
        %2232 = vmatprep.subr.bf16.mxu0 0
        %2233 = vmatpush1.bf16.msra.mxu0 0
        %2234 = vmatprep.subr.bf16.mxu0 0
        %2235 = vmatpush1.bf16.msra.mxu0 0
        %2236 = vmatprep.subr.bf16.mxu0 0
        %2237 = vmatpush1.bf16.msra.mxu0 0
        %2238 = vmatprep.subr.bf16.mxu0 0
        %2239 = vmatpush1.bf16.msra.mxu0 0
        %2240 = vmatprep.subr.bf16.mxu0 0
        %2241 = vmatpush1.bf16.msra.mxu0 0
        %2242 = vmatprep.subr.bf16.mxu0 0
        %2243 = vmatpush1.bf16.msra.mxu0 0
        %2244 = vmatprep.subr.bf16.mxu0 0
        %2245 = vmatpush1.bf16.msra.mxu0 0
        %2246 = vmatprep.subr.bf16.mxu0 0
        %2247 = vmatpush1.bf16.msra.mxu0 0
        %2248 = vmatprep.subr.bf16.mxu0 0
        %2249 = vmatpush1.bf16.msra.mxu0 0
        %2250 = vmatprep.subr.bf16.mxu0 0
        %2251 = vmatpush1.bf16.msra.mxu0 0
        %2252 = vmatprep.mubr.bf16.mxu0 0
        %2253 = vmatmul.mubr.bf16.gmra.mrb[0].mxu0 %v2194
        %v2254 = vpop.f32.mrb[0].mxu0
        %v2255 = vadd.f32 0.0, %v2254
        %v2256 = vpop.f32.mrb[0].mxu0
        %v2257 = vpop.f32.mrb[0].mxu0
        %v2258 = vadd.f32 0.0, %v2257
        %v2259 = vpop.f32.mrb[0].mxu0
        %2260 = vmatprep.mubr.bf16.mxu0 0
        %2261 = vmatmul.mubr.bf16.gmra.mrb[0].mxu0 %v2197
        %v2262 = vpop.f32.mrb[0].mxu0
        %v2263 = vadd.f32 0.0, %v2262
        %v2264 = vpop.f32.mrb[0].mxu0
        %v2265 = vpop.f32.mrb[0].mxu0
        %v2266 = vadd.f32 0.0, %v2265
        %v2267 = vpop.f32.mrb[0].mxu0
        %2268 = vmatprep.mubr.bf16.mxu0 0
        %2269 = vmatmul.mubr.bf16.gmra.mrb[0].mxu0 %v2200
        %v2270 = vpop.f32.mrb[0].mxu0
        %v2271 = vadd.f32 0.0, %v2270
        %v2272 = vpop.f32.mrb[0].mxu0
        %v2273 = vpop.f32.mrb[0].mxu0
        %v2274 = vadd.f32 0.0, %v2273
        %v2275 = vpop.f32.mrb[0].mxu0
        %2276 = vmatprep.mubr.bf16.mxu0 0
        %2277 = vmatmul.mubr.bf16.gmra.mrb[0].mxu0 %v2203
        %v2278 = vpop.f32.mrb[0].mxu0
        %v2279 = vadd.f32 0.0, %v2278
        %v2280 = vpop.f32.mrb[0].mxu0
        %v2281 = vpop.f32.mrb[0].mxu0
        %v2282 = vadd.f32 0.0, %v2281
        %v2283 = vpop.f32.mrb[0].mxu0
        %2284 = vmatprep.mubr.bf16.mxu0 0
        %2285 = vmatmul.mubr.bf16.gmra.mrb[0].mxu0 %v2206
        %v2286 = vpop.f32.mrb[0].mxu0
        %v2287 = vadd.f32 0.0, %v2286
        %v2288 = vpop.f32.mrb[0].mxu0
        %v2289 = vpop.f32.mrb[0].mxu0
        %v2290 = vadd.f32 0.0, %v2289
        %v2291 = vpop.f32.mrb[0].mxu0
        %2292 = vmatprep.mubr.bf16.mxu0 0
        %2293 = vmatmul.mubr.bf16.gmra.mrb[0].mxu0 %v2209
        %v2294 = vpop.f32.mrb[0].mxu0
        %v2295 = vadd.f32 0.0, %v2294
        %v2296 = vpop.f32.mrb[0].mxu0
        %v2297 = vpop.f32.mrb[0].mxu0
        %v2298 = vadd.f32 0.0, %v2297
        %v2299 = vpop.f32.mrb[0].mxu0
        %2300 = vmatprep.mubr.bf16.mxu0 0
        %2301 = vmatmul.mubr.bf16.gmra.mrb[0].mxu0 %v2212
        %v2302 = vpop.f32.mrb[0].mxu0
        %v2303 = vadd.f32 0.0, %v2302
        %v2304 = vpop.f32.mrb[0].mxu0
        %v2305 = vpop.f32.mrb[0].mxu0
        %v2306 = vadd.f32 0.0, %v2305
        %v2307 = vpop.f32.mrb[0].mxu0
        %2308 = vmatprep.mubr.bf16.mxu0 0
        %2309 = vmatmul.mubr.bf16.gmra.mrb[0].mxu0 %v2215
        %v2310 = vpop.f32.mrb[0].mxu0
        %v2311 = vadd.f32 0.0, %v2310
        %v2312 = vpop.f32.mrb[0].mxu0
        %v2313 = vpop.f32.mrb[0].mxu0
        %v2314 = vadd.f32 0.0, %v2313
        %v2315 = vpop.f32.mrb[0].mxu0
        %2316 = vdwg.mxu0
        %v2317 = vadd.f32 %v2135, %v2255
        %v2318 = vadd.f32 %v2136, %v2258
        %v2319 = vadd.f32 %v2137, %v2263
        %v2320 = vadd.f32 %v2138, %v2266
        %v2321 = vadd.f32 %v2139, %v2271
        %v2322 = vadd.f32 %v2140, %v2274
        %v2323 = vadd.f32 %v2141, %v2279
        %v2324 = vadd.f32 %v2142, %v2282
        %v2325 = vadd.f32 %v2143, %v2287
        %v2326 = vadd.f32 %v2144, %v2290
        %v2327 = vadd.f32 %v2145, %v2295
        %v2328 = vadd.f32 %v2146, %v2298
        %v2329 = vadd.f32 %v2147, %v2303
        %v2330 = vadd.f32 %v2148, %v2306
        %v2331 = vadd.f32 %v2149, %v2311
        %v2332 = vadd.f32 %v2150, %v2314
        %2333 = vst [vmem:[#allocation2] sm:$0xff] %v2317
        %2334 = vst [vmem:[#allocation2 + $0x8] sm:$0xff] %v2318
        %2335 = vst [vmem:[#allocation2 + $0x10] sm:$0xff] %v2319
        %2336 = vst [vmem:[#allocation2 + $0x18] sm:$0xff] %v2320
        %2337 = vst [vmem:[#allocation2 + $0x20] sm:$0xff] %v2321
        %2338 = vst [vmem:[#allocation2 + $0x28] sm:$0xff] %v2322
        %2339 = vst [vmem:[#allocation2 + $0x30] sm:$0xff] %v2323
        %2340 = vst [vmem:[#allocation2 + $0x38] sm:$0xff] %v2324
        %2341 = vst [vmem:[#allocation2 + $0x40] sm:$0xff] %v2325
        %2342 = vst [vmem:[#allocation2 + $0x48] sm:$0xff] %v2326
        %2343 = vst [vmem:[#allocation2 + $0x50] sm:$0xff] %v2327
        %2344 = vst [vmem:[#allocation2 + $0x58] sm:$0xff] %v2328
        %2345 = vst [vmem:[#allocation2 + $0x60] sm:$0xff] %v2329
        %2346 = vst [vmem:[#allocation2 + $0x68] sm:$0xff] %v2330
        %2347 = vst [vmem:[#allocation2 + $0x70] sm:$0xff] %v2331
        %2348 = vst [vmem:[#allocation2 + $0x78] sm:$0xff] %v2332
        %v2349 = vld [vmem:[%s2118] sm:$0xf]
        %v2350 = vld [vmem:[%s2118 + $0x4] sm:$0xf]
        %v2351 = vld [vmem:[%s2118 + $0x8] sm:$0x1]
        %v2352 = vld [vmem:[%s2118 + $0xc] sm:$0xf]
        %v2353 = vld [vmem:[%s2118 + $0x10] sm:$0xf]
        %v2354 = vld [vmem:[%s2118 + $0x14] sm:$0x1]
        %v2355 = vld [vmem:[%s2118 + $0x18] sm:$0xf]
        %v2356 = vld [vmem:[%s2118 + $0x1c] sm:$0xf]
        %v2357 = vld [vmem:[%s2118 + $0x20] sm:$0x1]
        %v2358 = vld [vmem:[%s2118 + $0x24] sm:$0xf]
        %v2359 = vld [vmem:[%s2118 + $0x28] sm:$0xf]
        %v2360 = vld [vmem:[%s2118 + $0x2c] sm:$0x1]
        %v2361 = vld [vmem:[%s2118 + $0x30] sm:$0xf]
        %v2362 = vld [vmem:[%s2118 + $0x34] sm:$0xf]
        %v2363 = vld [vmem:[%s2118 + $0x38] sm:$0x1]
        %v2364 = vld [vmem:[%s2118 + $0x3c] sm:$0xf]
        %v2365 = vld [vmem:[%s2118 + $0x40] sm:$0xf]
        %v2366 = vld [vmem:[%s2118 + $0x44] sm:$0x1]
        %v2367 = vld [vmem:[%s2118 + $0x48] sm:$0xf]
        %v2368 = vld [vmem:[%s2118 + $0x4c] sm:$0xf]
        %v2369 = vld [vmem:[%s2118 + $0x50] sm:$0x1]
        %v2370 = vld [vmem:[%s2118 + $0x54] sm:$0xf]
        %v2371 = vld [vmem:[%s2118 + $0x58] sm:$0xf]
        %v2372 = vld [vmem:[%s2118 + $0x5c] sm:$0x1]
        %v2373 = vld [vmem:[#allocation2] sm:$0xff]
        %v2374 = vld [vmem:[#allocation2 + $0x8] sm:$0xff]
        %v2375 = vld [vmem:[#allocation2 + $0x10] sm:$0xff]
        %v2376 = vld [vmem:[#allocation2 + $0x18] sm:$0xff]
        %v2377 = vld [vmem:[#allocation2 + $0x20] sm:$0xff]
        %v2378 = vld [vmem:[#allocation2 + $0x28] sm:$0xff]
        %v2379 = vld [vmem:[#allocation2 + $0x30] sm:$0xff]
        %v2380 = vld [vmem:[#allocation2 + $0x38] sm:$0xff]
        %v2381 = vld [vmem:[#allocation2 + $0x40] sm:$0xff]
        %v2382 = vld [vmem:[#allocation2 + $0x48] sm:$0xff]
        %v2383 = vld [vmem:[#allocation2 + $0x50] sm:$0xff]
        %v2384 = vld [vmem:[#allocation2 + $0x58] sm:$0xff]
        %v2385 = vld [vmem:[#allocation2 + $0x60] sm:$0xff]
        %v2386 = vld [vmem:[#allocation2 + $0x68] sm:$0xff]
        %v2387 = vld [vmem:[#allocation2 + $0x70] sm:$0xff]
        %v2388 = vld [vmem:[#allocation2 + $0x78] sm:$0xff]
        %v2390 = vshrl.u32 %v2349, 16
        %v2392 = vrot.slane %v2390, 4
        %v2393 = vshll.u32 %v2349, 16
        %v2395 = vrot.slane %v2393, 5
        %v2396 = vor.u32 %v2392, %v2395
        %v2397 = vrot.slane %v2396, 4
        %v2399 = vshll.u32 %v2350, 16
        %v2401 = vrot.slane %v2399, 5
        %v2402 = vsel %vm485, %v2397, %v2401
        %v2403 = vshrl.u32 %v2350, 16
        %v2405 = vrot.slane %v2403, 4
        %v2406 = vor.u32 %v2405, %v2401
        %v2407 = vrot.slane %v2406, 4
        %v2409 = vshll.u32 %v2351, 16
        %v2411 = vrot.slane %v2409, 5
        %v2412 = vsel %vm485, %v2407, %v2411
        %v2414 = vshrl.u32 %v2352, 16
        %v2416 = vrot.slane %v2414, 4
        %v2417 = vshll.u32 %v2352, 16
        %v2419 = vrot.slane %v2417, 5
        %v2420 = vor.u32 %v2416, %v2419
        %v2421 = vrot.slane %v2420, 4
        %v2423 = vshll.u32 %v2353, 16
        %v2425 = vrot.slane %v2423, 5
        %v2426 = vsel %vm485, %v2421, %v2425
        %v2427 = vshrl.u32 %v2353, 16
        %v2429 = vrot.slane %v2427, 4
        %v2430 = vor.u32 %v2429, %v2425
        %v2431 = vrot.slane %v2430, 4
        %v2433 = vshll.u32 %v2354, 16
        %v2435 = vrot.slane %v2433, 5
        %v2436 = vsel %vm485, %v2431, %v2435
        %v2438 = vshrl.u32 %v2355, 16
        %v2440 = vrot.slane %v2438, 4
        %v2441 = vshll.u32 %v2355, 16
        %v2443 = vrot.slane %v2441, 5
        %v2444 = vor.u32 %v2440, %v2443
        %v2445 = vrot.slane %v2444, 4
        %v2447 = vshll.u32 %v2356, 16
        %v2449 = vrot.slane %v2447, 5
        %v2450 = vsel %vm485, %v2445, %v2449
        %v2451 = vshrl.u32 %v2356, 16
        %v2453 = vrot.slane %v2451, 4
        %v2454 = vor.u32 %v2453, %v2449
        %v2455 = vrot.slane %v2454, 4
        %v2457 = vshll.u32 %v2357, 16
        %v2459 = vrot.slane %v2457, 5
        %v2460 = vsel %vm485, %v2455, %v2459
        %v2462 = vshrl.u32 %v2358, 16
        %v2464 = vrot.slane %v2462, 4
        %v2465 = vshll.u32 %v2358, 16
        %v2467 = vrot.slane %v2465, 5
        %v2468 = vor.u32 %v2464, %v2467
        %v2469 = vrot.slane %v2468, 4
        %v2471 = vshll.u32 %v2359, 16
        %v2473 = vrot.slane %v2471, 5
        %v2474 = vsel %vm485, %v2469, %v2473
        %v2475 = vshrl.u32 %v2359, 16
        %v2477 = vrot.slane %v2475, 4
        %v2478 = vor.u32 %v2477, %v2473
        %v2479 = vrot.slane %v2478, 4
        %v2481 = vshll.u32 %v2360, 16
        %v2483 = vrot.slane %v2481, 5
        %v2484 = vsel %vm485, %v2479, %v2483
        %v2486 = vshrl.u32 %v2361, 16
        %v2488 = vrot.slane %v2486, 4
        %v2489 = vshll.u32 %v2361, 16
        %v2491 = vrot.slane %v2489, 5
        %v2492 = vor.u32 %v2488, %v2491
        %v2493 = vrot.slane %v2492, 4
        %v2495 = vshll.u32 %v2362, 16
        %v2497 = vrot.slane %v2495, 5
        %v2498 = vsel %vm485, %v2493, %v2497
        %v2499 = vshrl.u32 %v2362, 16
        %v2501 = vrot.slane %v2499, 4
        %v2502 = vor.u32 %v2501, %v2497
        %v2503 = vrot.slane %v2502, 4
        %v2505 = vshll.u32 %v2363, 16
        %v2507 = vrot.slane %v2505, 5
        %v2508 = vsel %vm485, %v2503, %v2507
        %v2510 = vshrl.u32 %v2364, 16
        %v2512 = vrot.slane %v2510, 4
        %v2513 = vshll.u32 %v2364, 16
        %v2515 = vrot.slane %v2513, 5
        %v2516 = vor.u32 %v2512, %v2515
        %v2517 = vrot.slane %v2516, 4
        %v2519 = vshll.u32 %v2365, 16
        %v2521 = vrot.slane %v2519, 5
        %v2522 = vsel %vm485, %v2517, %v2521
        %v2523 = vshrl.u32 %v2365, 16
        %v2525 = vrot.slane %v2523, 4
        %v2526 = vor.u32 %v2525, %v2521
        %v2527 = vrot.slane %v2526, 4
        %v2529 = vshll.u32 %v2366, 16
        %v2531 = vrot.slane %v2529, 5
        %v2532 = vsel %vm485, %v2527, %v2531
        %v2534 = vshrl.u32 %v2367, 16
        %v2536 = vrot.slane %v2534, 4
        %v2537 = vshll.u32 %v2367, 16
        %v2539 = vrot.slane %v2537, 5
        %v2540 = vor.u32 %v2536, %v2539
        %v2541 = vrot.slane %v2540, 4
        %v2543 = vshll.u32 %v2368, 16
        %v2545 = vrot.slane %v2543, 5
        %v2546 = vsel %vm485, %v2541, %v2545
        %v2547 = vshrl.u32 %v2368, 16
        %v2549 = vrot.slane %v2547, 4
        %v2550 = vor.u32 %v2549, %v2545
        %v2551 = vrot.slane %v2550, 4
        %v2553 = vshll.u32 %v2369, 16
        %v2555 = vrot.slane %v2553, 5
        %v2556 = vsel %vm485, %v2551, %v2555
        %v2558 = vshrl.u32 %v2370, 16
        %v2560 = vrot.slane %v2558, 4
        %v2561 = vshll.u32 %v2370, 16
        %v2563 = vrot.slane %v2561, 5
        %v2564 = vor.u32 %v2560, %v2563
        %v2565 = vrot.slane %v2564, 4
        %v2567 = vshll.u32 %v2371, 16
        %v2569 = vrot.slane %v2567, 5
        %v2570 = vsel %vm485, %v2565, %v2569
        %v2571 = vshrl.u32 %v2371, 16
        %v2573 = vrot.slane %v2571, 4
        %v2574 = vor.u32 %v2573, %v2569
        %v2575 = vrot.slane %v2574, 4
        %v2577 = vshll.u32 %v2372, 16
        %v2579 = vrot.slane %v2577, 5
        %v2580 = vsel %vm485, %v2575, %v2579
        %s2581 = scalar_lea.vmem %s1, 14
        %v2582 = vld [vmem:[%s2581] sm:$0x3]
        %v2583 = vunpack.c.l.b16 %v2402
        %v2584 = vunpack.c.l.b16 %v2412
        %v2585 = vunpack.c.l.b16 %v2426
        %v2586 = vunpack.c.l.b16 %v2436
        %v2587 = vunpack.c.l.b16 %v2450
        %v2588 = vunpack.c.l.b16 %v2460
        %v2589 = vunpack.c.l.b16 %v2474
        %v2590 = vunpack.c.l.b16 %v2484
        %v2591 = vunpack.c.l.b16 %v2498
        %v2592 = vunpack.c.l.b16 %v2508
        %v2593 = vunpack.c.l.b16 %v2522
        %v2594 = vunpack.c.l.b16 %v2532
        %v2595 = vunpack.c.l.b16 %v2546
        %v2596 = vunpack.c.l.b16 %v2556
        %v2597 = vunpack.c.l.b16 %v2570
        %v2598 = vunpack.c.l.b16 %v2580
        %v2599 = vpack.c.b16 %v2584, %v2583
        %v2600 = vpack.c.b16 %v2586, %v2585
        %v2601 = vpack.c.b16 %v2588, %v2587
        %v2602 = vpack.c.b16 %v2590, %v2589
        %v2603 = vpack.c.b16 %v2592, %v2591
        %v2604 = vpack.c.b16 %v2594, %v2593
        %v2605 = vpack.c.b16 %v2596, %v2595
        %v2606 = vpack.c.b16 %v2598, %v2597
        %v2608 = vsel %vm285, %v2599, 0
        %v2611 = vsel %vm285, %v2600, 0
        %v2614 = vsel %vm285, %v2601, 0
        %v2617 = vsel %vm285, %v2602, 0
        %v2620 = vsel %vm285, %v2603, 0
        %v2623 = vsel %vm285, %v2604, 0
        %v2626 = vsel %vm285, %v2605, 0
        %v2629 = vsel %vm285, %v2606, 0
        %v2632 = vsel %vm310, %v2582, 0
        %2634 = vmatprep.subr.bf16.mxu0 0
        %2635 = vmatpush1.bf16.msra.mxu0 %v2632
        %2636 = vmatprep.subr.bf16.mxu0 0
        %2637 = vmatpush1.bf16.msra.mxu0 0
        %2638 = vmatprep.subr.bf16.mxu0 0
        %2639 = vmatpush1.bf16.msra.mxu0 0
        %2640 = vmatprep.subr.bf16.mxu0 0
        %2641 = vmatpush1.bf16.msra.mxu0 0
        %2642 = vmatprep.subr.bf16.mxu0 0
        %2643 = vmatpush1.bf16.msra.mxu0 0
        %2644 = vmatprep.subr.bf16.mxu0 0
        %2645 = vmatpush1.bf16.msra.mxu0 0
        %2646 = vmatprep.subr.bf16.mxu0 0
        %2647 = vmatpush1.bf16.msra.mxu0 0
        %2648 = vmatprep.subr.bf16.mxu0 0
        %2649 = vmatpush1.bf16.msra.mxu0 0
        %2650 = vmatprep.subr.bf16.mxu0 0
        %2651 = vmatpush1.bf16.msra.mxu0 0
        %2652 = vmatprep.subr.bf16.mxu0 0
        %2653 = vmatpush1.bf16.msra.mxu0 0
        %2654 = vmatprep.subr.bf16.mxu0 0
        %2655 = vmatpush1.bf16.msra.mxu0 0
        %2656 = vmatprep.subr.bf16.mxu0 0
        %2657 = vmatpush1.bf16.msra.mxu0 0
        %2658 = vmatprep.subr.bf16.mxu0 0
        %2659 = vmatpush1.bf16.msra.mxu0 0
        %2660 = vmatprep.subr.bf16.mxu0 0
        %2661 = vmatpush1.bf16.msra.mxu0 0
        %2662 = vmatprep.subr.bf16.mxu0 0
        %2663 = vmatpush1.bf16.msra.mxu0 0
        %2664 = vmatprep.subr.bf16.mxu0 0
        %2665 = vmatpush1.bf16.msra.mxu0 0
        %2666 = vmatprep.mubr.bf16.mxu0 0
        %2667 = vmatmul.mubr.bf16.gmra.mrb[0].mxu0 %v2608
        %v2668 = vpop.f32.mrb[0].mxu0
        %v2669 = vadd.f32 0.0, %v2668
        %v2670 = vpop.f32.mrb[0].mxu0
        %v2671 = vpop.f32.mrb[0].mxu0
        %v2672 = vadd.f32 0.0, %v2671
        %v2673 = vpop.f32.mrb[0].mxu0
        %2674 = vmatprep.mubr.bf16.mxu0 0
        %2675 = vmatmul.mubr.bf16.gmra.mrb[0].mxu0 %v2611
        %v2676 = vpop.f32.mrb[0].mxu0
        %v2677 = vadd.f32 0.0, %v2676
        %v2678 = vpop.f32.mrb[0].mxu0
        %v2679 = vpop.f32.mrb[0].mxu0
        %v2680 = vadd.f32 0.0, %v2679
        %v2681 = vpop.f32.mrb[0].mxu0
        %2682 = vmatprep.mubr.bf16.mxu0 0
        %2683 = vmatmul.mubr.bf16.gmra.mrb[0].mxu0 %v2614
        %v2684 = vpop.f32.mrb[0].mxu0
        %v2685 = vadd.f32 0.0, %v2684
        %v2686 = vpop.f32.mrb[0].mxu0
        %v2687 = vpop.f32.mrb[0].mxu0
        %v2688 = vadd.f32 0.0, %v2687
        %v2689 = vpop.f32.mrb[0].mxu0
        %2690 = vmatprep.mubr.bf16.mxu0 0
        %2691 = vmatmul.mubr.bf16.gmra.mrb[0].mxu0 %v2617
        %v2692 = vpop.f32.mrb[0].mxu0
        %v2693 = vadd.f32 0.0, %v2692
        %v2694 = vpop.f32.mrb[0].mxu0
        %v2695 = vpop.f32.mrb[0].mxu0
        %v2696 = vadd.f32 0.0, %v2695
        %v2697 = vpop.f32.mrb[0].mxu0
        %2698 = vmatprep.mubr.bf16.mxu0 0
        %2699 = vmatmul.mubr.bf16.gmra.mrb[0].mxu0 %v2620
        %v2700 = vpop.f32.mrb[0].mxu0
        %v2701 = vadd.f32 0.0, %v2700
        %v2702 = vpop.f32.mrb[0].mxu0
        %v2703 = vpop.f32.mrb[0].mxu0
        %v2704 = vadd.f32 0.0, %v2703
        %v2705 = vpop.f32.mrb[0].mxu0
        %2706 = vmatprep.mubr.bf16.mxu0 0
        %2707 = vmatmul.mubr.bf16.gmra.mrb[0].mxu0 %v2623
        %v2708 = vpop.f32.mrb[0].mxu0
        %v2709 = vadd.f32 0.0, %v2708
        %v2710 = vpop.f32.mrb[0].mxu0
        %v2711 = vpop.f32.mrb[0].mxu0
        %v2712 = vadd.f32 0.0, %v2711
        %v2713 = vpop.f32.mrb[0].mxu0
        %2714 = vmatprep.mubr.bf16.mxu0 0
        %2715 = vmatmul.mubr.bf16.gmra.mrb[0].mxu0 %v2626
        %v2716 = vpop.f32.mrb[0].mxu0
        %v2717 = vadd.f32 0.0, %v2716
        %v2718 = vpop.f32.mrb[0].mxu0
        %v2719 = vpop.f32.mrb[0].mxu0
        %v2720 = vadd.f32 0.0, %v2719
        %v2721 = vpop.f32.mrb[0].mxu0
        %2722 = vmatprep.mubr.bf16.mxu0 0
        %2723 = vmatmul.mubr.bf16.gmra.mrb[0].mxu0 %v2629
        %v2724 = vpop.f32.mrb[0].mxu0
        %v2725 = vadd.f32 0.0, %v2724
        %v2726 = vpop.f32.mrb[0].mxu0
        %v2727 = vpop.f32.mrb[0].mxu0
        %v2728 = vadd.f32 0.0, %v2727
        %v2729 = vpop.f32.mrb[0].mxu0
        %2730 = vdwg.mxu0
        %v2731 = vadd.f32 %v2373, %v2669
        %v2732 = vadd.f32 %v2374, %v2672
        %v2733 = vadd.f32 %v2375, %v2677
        %v2734 = vadd.f32 %v2376, %v2680
        %v2735 = vadd.f32 %v2377, %v2685
        %v2736 = vadd.f32 %v2378, %v2688
        %v2737 = vadd.f32 %v2379, %v2693
        %v2738 = vadd.f32 %v2380, %v2696
        %v2739 = vadd.f32 %v2381, %v2701
        %v2740 = vadd.f32 %v2382, %v2704
        %v2741 = vadd.f32 %v2383, %v2709
        %v2742 = vadd.f32 %v2384, %v2712
        %v2743 = vadd.f32 %v2385, %v2717
        %v2744 = vadd.f32 %v2386, %v2720
        %v2745 = vadd.f32 %v2387, %v2725
        %v2746 = vadd.f32 %v2388, %v2728
        %2747 = vst [vmem:[#allocation2] sm:$0xff] %v2731
        %2748 = vst [vmem:[#allocation2 + $0x8] sm:$0xff] %v2732
        %2749 = vst [vmem:[#allocation2 + $0x10] sm:$0xff] %v2733
        %2750 = vst [vmem:[#allocation2 + $0x18] sm:$0xff] %v2734
        %2751 = vst [vmem:[#allocation2 + $0x20] sm:$0xff] %v2735
        %2752 = vst [vmem:[#allocation2 + $0x28] sm:$0xff] %v2736
        %2753 = vst [vmem:[#allocation2 + $0x30] sm:$0xff] %v2737
        %2754 = vst [vmem:[#allocation2 + $0x38] sm:$0xff] %v2738
        %2755 = vst [vmem:[#allocation2 + $0x40] sm:$0xff] %v2739
        %2756 = vst [vmem:[#allocation2 + $0x48] sm:$0xff] %v2740
        %2757 = vst [vmem:[#allocation2 + $0x50] sm:$0xff] %v2741
        %2758 = vst [vmem:[#allocation2 + $0x58] sm:$0xff] %v2742
        %2759 = vst [vmem:[#allocation2 + $0x60] sm:$0xff] %v2743
        %2760 = vst [vmem:[#allocation2 + $0x68] sm:$0xff] %v2744
        %2761 = vst [vmem:[#allocation2 + $0x70] sm:$0xff] %v2745
        %2762 = vst [vmem:[#allocation2 + $0x78] sm:$0xff] %v2746
        %v2763 = vld [vmem:[%s2118] sm:$0xe]
        %v2764 = vld [vmem:[%s2118 + $0x4] sm:$0xf]
        %v2765 = vld [vmem:[%s2118 + $0x8] sm:$0x1]
        %v2766 = vld [vmem:[%s2118 + $0xc] sm:$0xe]
        %v2767 = vld [vmem:[%s2118 + $0x10] sm:$0xf]
        %v2768 = vld [vmem:[%s2118 + $0x14] sm:$0x1]
        %v2769 = vld [vmem:[%s2118 + $0x18] sm:$0xe]
        %v2770 = vld [vmem:[%s2118 + $0x1c] sm:$0xf]
        %v2771 = vld [vmem:[%s2118 + $0x20] sm:$0x1]
        %v2772 = vld [vmem:[%s2118 + $0x24] sm:$0xe]
        %v2773 = vld [vmem:[%s2118 + $0x28] sm:$0xf]
        %v2774 = vld [vmem:[%s2118 + $0x2c] sm:$0x1]
        %v2775 = vld [vmem:[%s2118 + $0x30] sm:$0xe]
        %v2776 = vld [vmem:[%s2118 + $0x34] sm:$0xf]
        %v2777 = vld [vmem:[%s2118 + $0x38] sm:$0x1]
        %v2778 = vld [vmem:[%s2118 + $0x3c] sm:$0xe]
        %v2779 = vld [vmem:[%s2118 + $0x40] sm:$0xf]
        %v2780 = vld [vmem:[%s2118 + $0x44] sm:$0x1]
        %v2781 = vld [vmem:[%s2118 + $0x48] sm:$0xe]
        %v2782 = vld [vmem:[%s2118 + $0x4c] sm:$0xf]
        %v2783 = vld [vmem:[%s2118 + $0x50] sm:$0x1]
        %v2784 = vld [vmem:[%s2118 + $0x54] sm:$0xe]
        %v2785 = vld [vmem:[%s2118 + $0x58] sm:$0xf]
        %v2786 = vld [vmem:[%s2118 + $0x5c] sm:$0x1]
        %v2787 = vld [vmem:[#allocation2] sm:$0xff]
        %v2788 = vld [vmem:[#allocation2 + $0x8] sm:$0xff]
        %v2789 = vld [vmem:[#allocation2 + $0x10] sm:$0xff]
        %v2790 = vld [vmem:[#allocation2 + $0x18] sm:$0xff]
        %v2791 = vld [vmem:[#allocation2 + $0x20] sm:$0xff]
        %v2792 = vld [vmem:[#allocation2 + $0x28] sm:$0xff]
        %v2793 = vld [vmem:[#allocation2 + $0x30] sm:$0xff]
        %v2794 = vld [vmem:[#allocation2 + $0x38] sm:$0xff]
        %v2795 = vld [vmem:[#allocation2 + $0x40] sm:$0xff]
        %v2796 = vld [vmem:[#allocation2 + $0x48] sm:$0xff]
        %v2797 = vld [vmem:[#allocation2 + $0x50] sm:$0xff]
        %v2798 = vld [vmem:[#allocation2 + $0x58] sm:$0xff]
        %v2799 = vld [vmem:[#allocation2 + $0x60] sm:$0xff]
        %v2800 = vld [vmem:[#allocation2 + $0x68] sm:$0xff]
        %v2801 = vld [vmem:[#allocation2 + $0x70] sm:$0xff]
        %v2802 = vld [vmem:[#allocation2 + $0x78] sm:$0xff]
        %v2827 = vrot.slane %v2763, 5
        %v2828 = vrot.slane %v2827, 4
        %v2829 = vrot.slane %v2764, 5
        %v2830 = vsel %vm926, %v2828, %v2829
        %v2831 = vrot.slane %v2829, 4
        %v2832 = vrot.slane %v2765, 5
        %v2833 = vsel %vm926, %v2831, %v2832
        %v2834 = vrot.slane %v2766, 5
        %v2835 = vrot.slane %v2834, 4
        %v2836 = vrot.slane %v2767, 5
        %v2837 = vsel %vm926, %v2835, %v2836
        %v2838 = vrot.slane %v2836, 4
        %v2839 = vrot.slane %v2768, 5
        %v2840 = vsel %vm926, %v2838, %v2839
        %v2841 = vrot.slane %v2769, 5
        %v2842 = vrot.slane %v2841, 4
        %v2843 = vrot.slane %v2770, 5
        %v2844 = vsel %vm926, %v2842, %v2843
        %v2845 = vrot.slane %v2843, 4
        %v2846 = vrot.slane %v2771, 5
        %v2847 = vsel %vm926, %v2845, %v2846
        %v2848 = vrot.slane %v2772, 5
        %v2849 = vrot.slane %v2848, 4
        %v2850 = vrot.slane %v2773, 5
        %v2851 = vsel %vm926, %v2849, %v2850
        %v2852 = vrot.slane %v2850, 4
        %v2853 = vrot.slane %v2774, 5
        %v2854 = vsel %vm926, %v2852, %v2853
        %v2855 = vrot.slane %v2775, 5
        %v2856 = vrot.slane %v2855, 4
        %v2857 = vrot.slane %v2776, 5
        %v2858 = vsel %vm926, %v2856, %v2857
        %v2859 = vrot.slane %v2857, 4
        %v2860 = vrot.slane %v2777, 5
        %v2861 = vsel %vm926, %v2859, %v2860
        %v2862 = vrot.slane %v2778, 5
        %v2863 = vrot.slane %v2862, 4
        %v2864 = vrot.slane %v2779, 5
        %v2865 = vsel %vm926, %v2863, %v2864
        %v2866 = vrot.slane %v2864, 4
        %v2867 = vrot.slane %v2780, 5
        %v2868 = vsel %vm926, %v2866, %v2867
        %v2869 = vrot.slane %v2781, 5
        %v2870 = vrot.slane %v2869, 4
        %v2871 = vrot.slane %v2782, 5
        %v2872 = vsel %vm926, %v2870, %v2871
        %v2873 = vrot.slane %v2871, 4
        %v2874 = vrot.slane %v2783, 5
        %v2875 = vsel %vm926, %v2873, %v2874
        %v2876 = vrot.slane %v2784, 5
        %v2877 = vrot.slane %v2876, 4
        %v2878 = vrot.slane %v2785, 5
        %v2879 = vsel %vm926, %v2877, %v2878
        %v2880 = vrot.slane %v2878, 4
        %v2881 = vrot.slane %v2786, 5
        %v2882 = vsel %vm926, %v2880, %v2881
        %s2883 = scalar_lea.vmem %s1, 16
        %v2884 = vld [vmem:[%s2883] sm:$0x3]
        %v2885 = vunpack.c.l.b16 %v2830
        %v2886 = vunpack.c.l.b16 %v2833
        %v2887 = vunpack.c.l.b16 %v2837
        %v2888 = vunpack.c.l.b16 %v2840
        %v2889 = vunpack.c.l.b16 %v2844
        %v2890 = vunpack.c.l.b16 %v2847
        %v2891 = vunpack.c.l.b16 %v2851
        %v2892 = vunpack.c.l.b16 %v2854
        %v2893 = vunpack.c.l.b16 %v2858
        %v2894 = vunpack.c.l.b16 %v2861
        %v2895 = vunpack.c.l.b16 %v2865
        %v2896 = vunpack.c.l.b16 %v2868
        %v2897 = vunpack.c.l.b16 %v2872
        %v2898 = vunpack.c.l.b16 %v2875
        %v2899 = vunpack.c.l.b16 %v2879
        %v2900 = vunpack.c.l.b16 %v2882
        %v2901 = vpack.c.b16 %v2886, %v2885
        %v2902 = vpack.c.b16 %v2888, %v2887
        %v2903 = vpack.c.b16 %v2890, %v2889
        %v2904 = vpack.c.b16 %v2892, %v2891
        %v2905 = vpack.c.b16 %v2894, %v2893
        %v2906 = vpack.c.b16 %v2896, %v2895
        %v2907 = vpack.c.b16 %v2898, %v2897
        %v2908 = vpack.c.b16 %v2900, %v2899
        %v2910 = vsel %vm285, %v2901, 0
        %v2913 = vsel %vm285, %v2902, 0
        %v2916 = vsel %vm285, %v2903, 0
        %v2919 = vsel %vm285, %v2904, 0
        %v2922 = vsel %vm285, %v2905, 0
        %v2925 = vsel %vm285, %v2906, 0
        %v2928 = vsel %vm285, %v2907, 0
        %v2931 = vsel %vm285, %v2908, 0
        %v2934 = vsel %vm310, %v2884, 0
        %2936 = vmatprep.subr.bf16.mxu0 0
        %2937 = vmatpush1.bf16.msra.mxu0 %v2934
        %2938 = vmatprep.subr.bf16.mxu0 0
        %2939 = vmatpush1.bf16.msra.mxu0 0
        %2940 = vmatprep.subr.bf16.mxu0 0
        %2941 = vmatpush1.bf16.msra.mxu0 0
        %2942 = vmatprep.subr.bf16.mxu0 0
        %2943 = vmatpush1.bf16.msra.mxu0 0
        %2944 = vmatprep.subr.bf16.mxu0 0
        %2945 = vmatpush1.bf16.msra.mxu0 0
        %2946 = vmatprep.subr.bf16.mxu0 0
        %2947 = vmatpush1.bf16.msra.mxu0 0
        %2948 = vmatprep.subr.bf16.mxu0 0
        %2949 = vmatpush1.bf16.msra.mxu0 0
        %2950 = vmatprep.subr.bf16.mxu0 0
        %2951 = vmatpush1.bf16.msra.mxu0 0
        %2952 = vmatprep.subr.bf16.mxu0 0
        %2953 = vmatpush1.bf16.msra.mxu0 0
        %2954 = vmatprep.subr.bf16.mxu0 0
        %2955 = vmatpush1.bf16.msra.mxu0 0
        %2956 = vmatprep.subr.bf16.mxu0 0
        %2957 = vmatpush1.bf16.msra.mxu0 0
        %2958 = vmatprep.subr.bf16.mxu0 0
        %2959 = vmatpush1.bf16.msra.mxu0 0
        %2960 = vmatprep.subr.bf16.mxu0 0
        %2961 = vmatpush1.bf16.msra.mxu0 0
        %2962 = vmatprep.subr.bf16.mxu0 0
        %2963 = vmatpush1.bf16.msra.mxu0 0
        %2964 = vmatprep.subr.bf16.mxu0 0
        %2965 = vmatpush1.bf16.msra.mxu0 0
        %2966 = vmatprep.subr.bf16.mxu0 0
        %2967 = vmatpush1.bf16.msra.mxu0 0
        %2968 = vmatprep.mubr.bf16.mxu0 0
        %2969 = vmatmul.mubr.bf16.gmra.mrb[0].mxu0 %v2910
        %v2970 = vpop.f32.mrb[0].mxu0
        %v2971 = vadd.f32 0.0, %v2970
        %v2972 = vpop.f32.mrb[0].mxu0
        %v2973 = vpop.f32.mrb[0].mxu0
        %v2974 = vadd.f32 0.0, %v2973
        %v2975 = vpop.f32.mrb[0].mxu0
        %2976 = vmatprep.mubr.bf16.mxu0 0
        %2977 = vmatmul.mubr.bf16.gmra.mrb[0].mxu0 %v2913
        %v2978 = vpop.f32.mrb[0].mxu0
        %v2979 = vadd.f32 0.0, %v2978
        %v2980 = vpop.f32.mrb[0].mxu0
        %v2981 = vpop.f32.mrb[0].mxu0
        %v2982 = vadd.f32 0.0, %v2981
        %v2983 = vpop.f32.mrb[0].mxu0
        %2984 = vmatprep.mubr.bf16.mxu0 0
        %2985 = vmatmul.mubr.bf16.gmra.mrb[0].mxu0 %v2916
        %v2986 = vpop.f32.mrb[0].mxu0
        %v2987 = vadd.f32 0.0, %v2986
        %v2988 = vpop.f32.mrb[0].mxu0
        %v2989 = vpop.f32.mrb[0].mxu0
        %v2990 = vadd.f32 0.0, %v2989
        %v2991 = vpop.f32.mrb[0].mxu0
        %2992 = vmatprep.mubr.bf16.mxu0 0
        %2993 = vmatmul.mubr.bf16.gmra.mrb[0].mxu0 %v2919
        %v2994 = vpop.f32.mrb[0].mxu0
        %v2995 = vadd.f32 0.0, %v2994
        %v2996 = vpop.f32.mrb[0].mxu0
        %v2997 = vpop.f32.mrb[0].mxu0
        %v2998 = vadd.f32 0.0, %v2997
        %v2999 = vpop.f32.mrb[0].mxu0
        %3000 = vmatprep.mubr.bf16.mxu0 0
        %3001 = vmatmul.mubr.bf16.gmra.mrb[0].mxu0 %v2922
        %v3002 = vpop.f32.mrb[0].mxu0
        %v3003 = vadd.f32 0.0, %v3002
        %v3004 = vpop.f32.mrb[0].mxu0
        %v3005 = vpop.f32.mrb[0].mxu0
        %v3006 = vadd.f32 0.0, %v3005
        %v3007 = vpop.f32.mrb[0].mxu0
        %3008 = vmatprep.mubr.bf16.mxu0 0
        %3009 = vmatmul.mubr.bf16.gmra.mrb[0].mxu0 %v2925
        %v3010 = vpop.f32.mrb[0].mxu0
        %v3011 = vadd.f32 0.0, %v3010
        %v3012 = vpop.f32.mrb[0].mxu0
        %v3013 = vpop.f32.mrb[0].mxu0
        %v3014 = vadd.f32 0.0, %v3013
        %v3015 = vpop.f32.mrb[0].mxu0
        %3016 = vmatprep.mubr.bf16.mxu0 0
        %3017 = vmatmul.mubr.bf16.gmra.mrb[0].mxu0 %v2928
        %v3018 = vpop.f32.mrb[0].mxu0
        %v3019 = vadd.f32 0.0, %v3018
        %v3020 = vpop.f32.mrb[0].mxu0
        %v3021 = vpop.f32.mrb[0].mxu0
        %v3022 = vadd.f32 0.0, %v3021
        %v3023 = vpop.f32.mrb[0].mxu0
        %3024 = vmatprep.mubr.bf16.mxu0 0
        %3025 = vmatmul.mubr.bf16.gmra.mrb[0].mxu0 %v2931
        %v3026 = vpop.f32.mrb[0].mxu0
        %v3027 = vadd.f32 0.0, %v3026
        %v3028 = vpop.f32.mrb[0].mxu0
        %v3029 = vpop.f32.mrb[0].mxu0
        %v3030 = vadd.f32 0.0, %v3029
        %v3031 = vpop.f32.mrb[0].mxu0
        %3032 = vdwg.mxu0
        %v3033 = vadd.f32 %v2787, %v2971
        %v3034 = vadd.f32 %v2788, %v2974
        %v3035 = vadd.f32 %v2789, %v2979
        %v3036 = vadd.f32 %v2790, %v2982
        %v3037 = vadd.f32 %v2791, %v2987
        %v3038 = vadd.f32 %v2792, %v2990
        %v3039 = vadd.f32 %v2793, %v2995
        %v3040 = vadd.f32 %v2794, %v2998
        %v3041 = vadd.f32 %v2795, %v3003
        %v3042 = vadd.f32 %v2796, %v3006
        %v3043 = vadd.f32 %v2797, %v3011
        %v3044 = vadd.f32 %v2798, %v3014
        %v3045 = vadd.f32 %v2799, %v3019
        %v3046 = vadd.f32 %v2800, %v3022
        %v3047 = vadd.f32 %v2801, %v3027
        %v3048 = vadd.f32 %v2802, %v3030
        %3049 = vst [vmem:[#allocation2] sm:$0xff] %v3033
        %3050 = vst [vmem:[#allocation2 + $0x8] sm:$0xff] %v3034
        %3051 = vst [vmem:[#allocation2 + $0x10] sm:$0xff] %v3035
        %3052 = vst [vmem:[#allocation2 + $0x18] sm:$0xff] %v3036
        %3053 = vst [vmem:[#allocation2 + $0x20] sm:$0xff] %v3037
        %3054 = vst [vmem:[#allocation2 + $0x28] sm:$0xff] %v3038
        %3055 = vst [vmem:[#allocation2 + $0x30] sm:$0xff] %v3039
        %3056 = vst [vmem:[#allocation2 + $0x38] sm:$0xff] %v3040
        %3057 = vst [vmem:[#allocation2 + $0x40] sm:$0xff] %v3041
        %3058 = vst [vmem:[#allocation2 + $0x48] sm:$0xff] %v3042
        %3059 = vst [vmem:[#allocation2 + $0x50] sm:$0xff] %v3043
        %3060 = vst [vmem:[#allocation2 + $0x58] sm:$0xff] %v3044
        %3061 = vst [vmem:[#allocation2 + $0x60] sm:$0xff] %v3045
        %3062 = vst [vmem:[#allocation2 + $0x68] sm:$0xff] %v3046
        %3063 = vst [vmem:[#allocation2 + $0x70] sm:$0xff] %v3047
        %3064 = vst [vmem:[#allocation2 + $0x78] sm:$0xff] %v3048
        %v3065 = vld [vmem:[#allocation2] sm:$0xff]
        %v3066 = vld [vmem:[#allocation2 + $0x8] sm:$0xff]
        %v3067 = vld [vmem:[#allocation2 + $0x10] sm:$0xff]
        %v3068 = vld [vmem:[#allocation2 + $0x18] sm:$0xff]
        %v3069 = vld [vmem:[#allocation2 + $0x20] sm:$0xff]
        %v3070 = vld [vmem:[#allocation2 + $0x28] sm:$0xff]
        %v3071 = vld [vmem:[#allocation2 + $0x30] sm:$0xff]
        %v3072 = vld [vmem:[#allocation2 + $0x38] sm:$0xff]
        %v3073 = vld [vmem:[#allocation2 + $0x40] sm:$0xff]
        %v3074 = vld [vmem:[#allocation2 + $0x48] sm:$0xff]
        %v3075 = vld [vmem:[#allocation2 + $0x50] sm:$0xff]
        %v3076 = vld [vmem:[#allocation2 + $0x58] sm:$0xff]
        %v3077 = vld [vmem:[#allocation2 + $0x60] sm:$0xff]
        %v3078 = vld [vmem:[#allocation2 + $0x68] sm:$0xff]
        %v3079 = vld [vmem:[#allocation2 + $0x70] sm:$0xff]
        %v3080 = vld [vmem:[#allocation2 + $0x78] sm:$0xff]
        %v3081 = vxor.u32 %v3065, 2147483648
        %v3082 = vxor.u32 %v3066, 2147483648
        %v3083 = vxor.u32 %v3067, 2147483648
        %v3084 = vxor.u32 %v3068, 2147483648
        %v3085 = vxor.u32 %v3069, 2147483648
        %v3086 = vxor.u32 %v3070, 2147483648
        %v3087 = vxor.u32 %v3071, 2147483648
        %v3088 = vxor.u32 %v3072, 2147483648
        %v3089 = vxor.u32 %v3073, 2147483648
        %v3090 = vxor.u32 %v3074, 2147483648
        %v3091 = vxor.u32 %v3075, 2147483648
        %v3092 = vxor.u32 %v3076, 2147483648
        %v3093 = vxor.u32 %v3077, 2147483648
        %v3094 = vxor.u32 %v3078, 2147483648
        %v3095 = vxor.u32 %v3079, 2147483648
        %v3096 = vxor.u32 %v3080, 2147483648
        %v3097 = vmul.f32 %v3081, 1.442695
        %v3098 = vpow.pop %v3097
        %v3099 = vmul.f32 %v3082, 1.442695
        %v3100 = vpow.pop %v3099
        %v3101 = vmul.f32 %v3083, 1.442695
        %v3102 = vpow.pop %v3101
        %v3103 = vmul.f32 %v3084, 1.442695
        %v3104 = vpow.pop %v3103
        %v3105 = vmul.f32 %v3085, 1.442695
        %v3106 = vpow.pop %v3105
        %v3107 = vmul.f32 %v3086, 1.442695
        %v3108 = vpow.pop %v3107
        %v3109 = vmul.f32 %v3087, 1.442695
        %v3110 = vpow.pop %v3109
        %v3111 = vmul.f32 %v3088, 1.442695
        %v3112 = vpow.pop %v3111
        %v3113 = vmul.f32 %v3089, 1.442695
        %v3114 = vpow.pop %v3113
        %v3115 = vmul.f32 %v3090, 1.442695
        %v3116 = vpow.pop %v3115
        %v3117 = vmul.f32 %v3091, 1.442695
        %v3118 = vpow.pop %v3117
        %v3119 = vmul.f32 %v3092, 1.442695
        %v3120 = vpow.pop %v3119
        %v3121 = vmul.f32 %v3093, 1.442695
        %v3122 = vpow.pop %v3121
        %v3123 = vmul.f32 %v3094, 1.442695
        %v3124 = vpow.pop %v3123
        %v3125 = vmul.f32 %v3095, 1.442695
        %v3126 = vpow.pop %v3125
        %v3127 = vmul.f32 %v3096, 1.442695
        %v3128 = vpow.pop %v3127
        %v3129 = vadd.f32 %v3098, 1.0
        %v3130 = vadd.f32 %v3100, 1.0
        %v3131 = vadd.f32 %v3102, 1.0
        %v3132 = vadd.f32 %v3104, 1.0
        %v3133 = vadd.f32 %v3106, 1.0
        %v3134 = vadd.f32 %v3108, 1.0
        %v3135 = vadd.f32 %v3110, 1.0
        %v3136 = vadd.f32 %v3112, 1.0
        %v3137 = vadd.f32 %v3114, 1.0
        %v3138 = vadd.f32 %v3116, 1.0
        %v3139 = vadd.f32 %v3118, 1.0
        %v3140 = vadd.f32 %v3120, 1.0
        %v3141 = vadd.f32 %v3122, 1.0
        %v3142 = vadd.f32 %v3124, 1.0
        %v3143 = vadd.f32 %v3126, 1.0
        %v3144 = vadd.f32 %v3128, 1.0
        %v3145 = vrcp.pop %v3129
        %v3146 = vmul.f32 1.0, %v3145
        %v3147 = vrcp.pop %v3130
        %v3148 = vmul.f32 1.0, %v3147
        %v3149 = vrcp.pop %v3131
        %v3150 = vmul.f32 1.0, %v3149
        %v3151 = vrcp.pop %v3132
        %v3152 = vmul.f32 1.0, %v3151
        %v3153 = vrcp.pop %v3133
        %v3154 = vmul.f32 1.0, %v3153
        %v3155 = vrcp.pop %v3134
        %v3156 = vmul.f32 1.0, %v3155
        %v3157 = vrcp.pop %v3135
        %v3158 = vmul.f32 1.0, %v3157
        %v3159 = vrcp.pop %v3136
        %v3160 = vmul.f32 1.0, %v3159
        %v3161 = vrcp.pop %v3137
        %v3162 = vmul.f32 1.0, %v3161
        %v3163 = vrcp.pop %v3138
        %v3164 = vmul.f32 1.0, %v3163
        %v3165 = vrcp.pop %v3139
        %v3166 = vmul.f32 1.0, %v3165
        %v3167 = vrcp.pop %v3140
        %v3168 = vmul.f32 1.0, %v3167
        %v3169 = vrcp.pop %v3141
        %v3170 = vmul.f32 1.0, %v3169
        %v3171 = vrcp.pop %v3142
        %v3172 = vmul.f32 1.0, %v3171
        %v3173 = vrcp.pop %v3143
        %v3174 = vmul.f32 1.0, %v3173
        %v3175 = vrcp.pop %v3144
        %v3176 = vmul.f32 1.0, %v3175
        %v3177 = vmul.f32 %v3065, %v3146
        %v3178 = vmul.f32 %v3066, %v3148
        %v3179 = vmul.f32 %v3067, %v3150
        %v3180 = vmul.f32 %v3068, %v3152
        %v3181 = vmul.f32 %v3069, %v3154
        %v3182 = vmul.f32 %v3070, %v3156
        %v3183 = vmul.f32 %v3071, %v3158
        %v3184 = vmul.f32 %v3072, %v3160
        %v3185 = vmul.f32 %v3073, %v3162
        %v3186 = vmul.f32 %v3074, %v3164
        %v3187 = vmul.f32 %v3075, %v3166
        %v3188 = vmul.f32 %v3076, %v3168
        %v3189 = vmul.f32 %v3077, %v3170
        %v3190 = vmul.f32 %v3078, %v3172
        %v3191 = vmul.f32 %v3079, %v3174
        %v3192 = vmul.f32 %v3080, %v3176
        %3193 = vst [vmem:[%s177] sm:$0xff] %v3177
        %3194 = vst [vmem:[%s177 + $0x8] sm:$0xff] %v3178
        %3195 = vst [vmem:[%s177 + $0x10] sm:$0xff] %v3179
        %3196 = vst [vmem:[%s177 + $0x18] sm:$0xff] %v3180
        %3197 = vst [vmem:[%s177 + $0x20] sm:$0xff] %v3181
        %3198 = vst [vmem:[%s177 + $0x28] sm:$0xff] %v3182
        %3199 = vst [vmem:[%s177 + $0x30] sm:$0xff] %v3183
        %3200 = vst [vmem:[%s177 + $0x38] sm:$0xff] %v3184
        %3201 = vst [vmem:[%s177 + $0x40] sm:$0xff] %v3185
        %3202 = vst [vmem:[%s177 + $0x48] sm:$0xff] %v3186
        %3203 = vst [vmem:[%s177 + $0x50] sm:$0xff] %v3187
        %3204 = vst [vmem:[%s177 + $0x58] sm:$0xff] %v3188
        %3205 = vst [vmem:[%s177 + $0x60] sm:$0xff] %v3189
        %3206 = vst [vmem:[%s177 + $0x68] sm:$0xff] %v3190
        %3207 = vst [vmem:[%s177 + $0x70] sm:$0xff] %v3191
        %3208 = vst [vmem:[%s177 + $0x78] sm:$0xff] %v3192
        %s3209 = sand.u32 %s107, 1
        %s3210 = scalar_lea.sflag [#allocation4], %s3209
        %s3211 = sand.u32 %s107, 1
        %s3212 = smul.addr %s3211, 128
        %s3213 = scalar_lea.vmem [#allocation3], %s3212
        // Predicated region
        $region33: #{tpu_custom_call.1} parent=31 // pred_check
          %p3214 = pneg %p117
        $region34: #{tpu_custom_call.1} parent=31 // pred_check_branch
          %3216 = sbr.rel (%p3214) target = $region36
        $region35: #{tpu_custom_call.1} parent=31 // pred_region
          %s3217 = smul.u32 16, %s22
          %s3219 = ssub.s32 2048, 2048
          %3220 = vsyncadd %s3210, %s3219
          %s3221 = smul.addr %s21, 32
          %s3222 = sadd.s32 %s3217, %s3221
          %s3223 = smul.addr %s3222, 128
          %s3224 = scalar_lea.hbm %s3, %s3223
          %s3225 = sshll.u32 %s3213, 4
          %s3226 = int_to_ptr.vmem [resolvable:$true] %s3225
          %3231 = dma.vmem_to_hbm [thread:$0]  %s3226, 2048, %s3224, %s3210, 128, 128, 8
        $region36: #{tpu_custom_call.1} parent=31 // pred_fallthru
          _
      $region32: #{tpu_custom_call.1} parent=5 // pred_fallthru
        _
      %p3232 = scmp.le.s32.totalorder 2, %s12
      // Predicated region
      $region37: #{tpu_custom_call.1} parent=5 // pred_check
        %p3233 = pneg %p3232
      $region38: #{tpu_custom_call.1} parent=5 // pred_check_branch
        %3235 = sbr.rel (%p3233) target = $region40
      $region39: #{tpu_custom_call.1} parent=5 // pred_region
        %s3236 = ssub.s32 %s12, 2
        // Predicated region
        $region41: #{tpu_custom_call.1} parent=39 // pred_check
          %p3237 = pneg %p123
        $region42: #{tpu_custom_call.1} parent=39 // pred_check_branch
          %3239 = sbr.rel (%p3237) target = $region44
        $region43: #{tpu_custom_call.1} parent=39 // pred_region
          %s3240 = sand.u32 %s108, 1
          %s3241 = scalar_lea.sflag [#allocation4], %s3240
          %s3242 = sand.u32 %s108, 1
          %s3243 = smul.addr %s3242, 128
          %s3244 = scalar_lea.vmem [#allocation3], %s3243
          %3245 = dma.done %s3241, 2048
        $region44: #{tpu_custom_call.1} parent=39 // pred_fallthru
          _
      $region40: #{tpu_custom_call.1} parent=5 // pred_fallthru
        _
    $region6: #{tpu_custom_call.1} parent=1 // loop_footer
      %s16 = sadd.s32 1, %s12
    $region7: #{tpu_custom_call.1} parent=1 // loop_footer_branch
      %11 = sbr.rel target = $region3
    $region8: #{tpu_custom_call.1} parent=1 // loop_exit
      _
    %3246 = vsyncpa [#allocation4], 1
    %s3247 = scalar_lea.sflag [#allocation4], 1
    %3248 = vsyncpa %s3247, 1

</llo_original>
